<compile_context>
chip_gen: v6e
topology: v6e:2x2x1
jax: 0.10.0
libtpu: 0.0.40
codegen_flags: <defaults>
</compile_context>

<pallas_src>
import jax
import jax.numpy as jnp
from jax.experimental import pallas as pl
from jax.experimental.pallas import tpu as pltpu

# ----------------------------- tiny BART config -----------------------------
VOCAB = 128
D_MODEL = 32
N_HEADS = 2
HEAD_DIM = D_MODEL // N_HEADS
FFN_DIM = 64
ENC_LAYERS = 1
DEC_LAYERS = 1
PAD_TOKEN_ID = 1
DECODER_START_TOKEN_ID = 2
POS_OFFSET = 2          # BART learned-position-embedding offset
MAX_POS = 64
NEG_INF = -1e9
LN_EPS = 1e-5
IGNORE_INDEX = -100

VMEM = pltpu.MemorySpace.VMEM


def _vspec():
    return pl.BlockSpec(memory_space=VMEM)


def _cost(flops, transcendentals, *arrays):
    nbytes = sum(int(a.size) * a.dtype.itemsize for a in arrays)
    return pl.CostEstimate(flops=int(flops), transcendentals=int(transcendentals),
                           bytes_accessed=int(nbytes))


# --------------------------- in-kernel building blocks -----------------------
def _bf16_dot(a, b):
    # MXU matmul: bf16 operands, f32 accumulation.
    return jnp.dot(a.astype(jnp.bfloat16), b.astype(jnp.bfloat16),
                   preferred_element_type=jnp.float32)


def _layernorm(x, g, b):
    mu = jnp.mean(x, axis=-1, keepdims=True)
    var = jnp.mean((x - mu) ** 2, axis=-1, keepdims=True)
    return (x - mu) * jax.lax.rsqrt(var + LN_EPS) * g + b


def _attention(q, k, v, mask):
    """q:(Tq,D) k,v:(Tk,D) f32, mask:(Tq,Tk) additive. Head split/merge in VMEM.
    Attention scale is pre-folded into the Q projection weights."""
    outs = []
    for h in range(N_HEADS):                      # static unroll, N_HEADS=2
        sl = slice(h * HEAD_DIM, (h + 1) * HEAD_DIM)
        qh = q[:, sl].astype(jnp.bfloat16)
        kh = k[:, sl].astype(jnp.bfloat16)
        vh = v[:, sl].astype(jnp.bfloat16)
        s = jax.lax.dot_general(qh, kh, (((1,), (1,)), ((), ())),
                                preferred_element_type=jnp.float32)
        s = s + mask
        s = s - jnp.max(s, axis=-1, keepdims=True)
        p = jnp.exp(s)
        p = p * pl.reciprocal(jnp.sum(p, axis=-1, keepdims=True), approx=True)
        outs.append(_bf16_dot(p, vh))
    return jnp.concatenate(outs, axis=-1)         # (Tq, D)


# ------------------------------- Pallas kernels ------------------------------
def _ln_kernel(x_ref, g_ref, b_ref, o_ref):
    o_ref[...] = _layernorm(x_ref[...], g_ref[...], b_ref[...])


ENC_WEIGHTS = ("qkv_w", "qkv_b", "o_w", "o_b", "ln1_g", "ln1_b",
               "fc1_w", "fc1_b", "fc2_w", "fc2_b", "ln2_g", "ln2_b")


def _enc_layer_kernel(x_ref, mask_ref, *refs):
    out_ref = refs[-1]
    (qkv_w, qkv_b, o_w, o_b, ln1_g, ln1_b,
     fc1_w, fc1_b, fc2_w, fc2_b, ln2_g, ln2_b) = refs[:-1]

    x = x_ref[0]                                   # (S, D) f32
    mask = mask_ref[0]                             # (S, S) additive
    # self-attention (fused QKV matmul)
    qkv = _bf16_dot(x, qkv_w[...]) + qkv_b[...]    # (S, 3D)
    attn = _attention(qkv[:, :D_MODEL], qkv[:, D_MODEL:2 * D_MODEL],
                      qkv[:, 2 * D_MODEL:], mask)
    x = _layernorm(x + _bf16_dot(attn, o_w[...]) + o_b[...], ln1_g[...], ln1_b[...])
    # FFN
    # TODO(synk): HF BART uses exact (erf) GELU; tanh approximation used here.
    h = jax.nn.gelu(_bf16_dot(x, fc1_w[...]) + fc1_b[...], approximate=True)
    h = _bf16_dot(h, fc2_w[...]) + fc2_b[...]
    out_ref[0] = _layernorm(x + h, ln2_g[...], ln2_b[...])


DEC_WEIGHTS = ("sa_qkv_w", "sa_qkv_b", "sa_o_w", "sa_o_b", "ln1_g", "ln1_b",
               "ca_q_w", "ca_q_b", "ca_kv_w", "ca_kv_b", "ca_o_w", "ca_o_b",
               "ln2_g", "ln2_b",
               "fc1_w", "fc1_b", "fc2_w", "fc2_b", "ln3_g", "ln3_b")


def _dec_layer_kernel(x_ref, enc_ref, self_mask_ref, cross_mask_ref, *refs):
    out_ref = refs[-1]
    (sa_qkv_w, sa_qkv_b, sa_o_w, sa_o_b, ln1_g, ln1_b,
     ca_q_w, ca_q_b, ca_kv_w, ca_kv_b, ca_o_w, ca_o_b, ln2_g, ln2_b,
     fc1_w, fc1_b, fc2_w, fc2_b, ln3_g, ln3_b) = refs[:-1]

    x = x_ref[0]                                   # (T, D)
    enc = enc_ref[0]                               # (S_enc, D)
    # causal self-attention (fused QKV matmul)
    qkv = _bf16_dot(x, sa_qkv_w[...]) + sa_qkv_b[...]
    attn = _attention(qkv[:, :D_MODEL], qkv[:, D_MODEL:2 * D_MODEL],
                      qkv[:, 2 * D_MODEL:], self_mask_ref[...])
    x = _layernorm(x + _bf16_dot(attn, sa_o_w[...]) + sa_o_b[...],
                   ln1_g[...], ln1_b[...])
    # cross-attention (fused KV matmul on encoder hidden)
    q = _bf16_dot(x, ca_q_w[...]) + ca_q_b[...]
    kv = _bf16_dot(enc, ca_kv_w[...]) + ca_kv_b[...]
    attn = _attention(q, kv[:, :D_MODEL], kv[:, D_MODEL:], cross_mask_ref[0])
    x = _layernorm(x + _bf16_dot(attn, ca_o_w[...]) + ca_o_b[...],
                   ln2_g[...], ln2_b[...])
    # FFN
    h = jax.nn.gelu(_bf16_dot(x, fc1_w[...]) + fc1_b[...], approximate=True)
    h = _bf16_dot(h, fc2_w[...]) + fc2_b[...]
    out_ref[0] = _layernorm(x + h, ln3_g[...], ln3_b[...])


def _lm_head_ce_kernel(y_ref, w_ref, bias_ref, labels_ref, logits_ref, loss_ref):
    # Fused lm_head projection + CrossEntropyLoss (ignore_index=-100, mean reduction).
    logits = _bf16_dot(y_ref[...], w_ref[...]) + bias_ref[...]     # (N, V) f32
    logits_ref[...] = logits
    lab = labels_ref[...]                                          # (N, 1) int32
    m = jnp.max(logits, axis=-1, keepdims=True)
    lse = jnp.log(jnp.sum(jnp.exp(logits - m), axis=-1, keepdims=True)) + m
    iota = jax.lax.broadcasted_iota(jnp.int32, logits.shape, 1)
    tgt = jnp.sum(jnp.where(iota == lab, logits, 0.0), axis=-1, keepdims=True)
    valid = (lab != IGNORE_INDEX).astype(jnp.float32)
    per_tok = (lse - tgt) * valid
    denom = jnp.maximum(jnp.sum(valid), 1.0)
    loss_ref[...] = jnp.broadcast_to(jnp.sum(per_tok) / denom, (1, 1))


# ------------------------------ kernel wrappers -------------------------------
def pallas_embed_layernorm(x, g, b):
    lead = x.shape[:-1]
    x2 = x.reshape(-1, D_MODEL).astype(jnp.float32)
    out = pl.pallas_call(
        _ln_kernel,
        out_shape=jax.ShapeDtypeStruct(x2.shape, jnp.float32),
        in_specs=[_vspec()] * 3,
        out_specs=_vspec(),
        cost_estimate=_cost(8 * x2.size, x2.shape[0], x2, g, b, x2),
    )(x2, g, b)
    return out.reshape(lead + (D_MODEL,))


def encoder_layer(lp, x, enc_mask):
    b, s, d = x.shape
    weights = [lp[name] for name in ENC_WEIGHTS]
    flops = b * (2 * s * d * 3 * d + 4 * N_HEADS * s * s * HEAD_DIM
                 + 2 * s * d * d + 4 * s * d * FFN_DIM)
    trans = b * (N_HEADS * s * s + s * FFN_DIM)
    return pl.pallas_call(
        _enc_layer_kernel,
        out_shape=jax.ShapeDtypeStruct((b, s, d), jnp.float32),
        grid=(b,),
        in_specs=[pl.BlockSpec((1, s, d), lambda i: (i, 0, 0)),
                  pl.BlockSpec((1, s, s), lambda i: (i, 0, 0))]
                 + [pl.BlockSpec(w.shape, lambda i: (0, 0)) for w in weights],
        out_specs=pl.BlockSpec((1, s, d), lambda i: (i, 0, 0)),
        compiler_params=pltpu.CompilerParams(dimension_semantics=("parallel",)),
        cost_estimate=_cost(flops, trans, x, enc_mask, *weights, x),
    )(x, enc_mask, *weights)


def decoder_layer(lp, x, enc_hidden, causal_mask, cross_mask):
    b, t, d = x.shape
    s_enc = enc_hidden.shape[1]
    weights = [lp[name] for name in DEC_WEIGHTS]
    flops = b * (2 * t * d * 3 * d + 4 * N_HEADS * t * t * HEAD_DIM + 2 * t * d * d
                 + 2 * t * d * d + 2 * s_enc * d * 2 * d
                 + 4 * N_HEADS * t * s_enc * HEAD_DIM + 2 * t * d * d
                 + 4 * t * d * FFN_DIM)
    trans = b * (N_HEADS * t * (t + s_enc) + t * FFN_DIM)
    return pl.pallas_call(
        _dec_layer_kernel,
        out_shape=jax.ShapeDtypeStruct((b, t, d), jnp.float32),
        grid=(b,),
        in_specs=[pl.BlockSpec((1, t, d), lambda i: (i, 0, 0)),
                  pl.BlockSpec((1, s_enc, d), lambda i: (i, 0, 0)),
                  pl.BlockSpec((t, t), lambda i: (0, 0)),
                  pl.BlockSpec((1, t, s_enc), lambda i: (i, 0, 0))]
                 + [pl.BlockSpec(w.shape, lambda i: (0, 0)) for w in weights],
        out_specs=pl.BlockSpec((1, t, d), lambda i: (i, 0, 0)),
        compiler_params=pltpu.CompilerParams(dimension_semantics=("parallel",)),
        cost_estimate=_cost(flops, trans, x, enc_hidden, causal_mask, cross_mask,
                            *weights, x),
    )(x, enc_hidden, causal_mask, cross_mask, *weights)


def lm_head_and_loss(y2, emb_t, bias, labels2):
    n = y2.shape[0]
    logits, loss = pl.pallas_call(
        _lm_head_ce_kernel,
        out_shape=(jax.ShapeDtypeStruct((n, VOCAB), jnp.float32),
                   jax.ShapeDtypeStruct((1, 1), jnp.float32)),
        in_specs=[_vspec()] * 4,
        out_specs=(_vspec(), _vspec()),
        cost_estimate=_cost(2 * n * D_MODEL * VOCAB + 6 * n * VOCAB, n * VOCAB,
                            y2, emb_t, bias, labels2, y2),
        # TODO(synk): add row/vocab tiling (running logsumexp) before scaling to
        # real BART sizes; at toy sizes everything fits in VMEM untiled.
    )(y2, emb_t, bias, labels2)
    return logits, loss[0, 0]


# ------------------------------ model plumbing -------------------------------
def shift_tokens_right(labels, pad_id, start_id):
    shifted = jnp.roll(labels, 1, axis=-1)
    shifted = shifted.at[:, 0].set(start_id)
    shifted = jnp.where(shifted == IGNORE_INDEX, pad_id, shifted)
    return shifted


def comment_model_forward(params, input_ids, attention_mask, labels):
    """Mirrors CommentModel.forward(input_ids, attention_mask, labels=labels)."""
    b, s_enc = input_ids.shape
    t_dec = labels.shape[1]

    # labels is not None -> decoder_input_ids = shift_tokens_right(labels, ...)
    decoder_input_ids = shift_tokens_right(labels, PAD_TOKEN_ID, DECODER_START_TOKEN_ID)

    pad_add = (1.0 - attention_mask.astype(jnp.float32)) * NEG_INF        # (B, S_enc)

    # ----- encoder -----
    x = jnp.take(params["emb"], input_ids, axis=0)                        # gather
    x = x + params["pos_enc"][POS_OFFSET:POS_OFFSET + s_enc][None, :, :]
    x = pallas_embed_layernorm(x, params["ln_emb_enc_g"], params["ln_emb_enc_b"])
    enc_mask = jnp.broadcast_to(pad_add[:, None, :], (b, s_enc, s_enc))   # (B,Tq,Tk)
    for lp in params["enc_layers"]:
        x = encoder_layer(lp, x, enc_mask)
    encoder_hidden = x

    # ----- decoder -----
    y = jnp.take(params["emb"], decoder_input_ids, axis=0)
    y = y + params["pos_dec"][POS_OFFSET:POS_OFFSET + t_dec][None, :, :]
    y = pallas_embed_layernorm(y, params["ln_emb_dec_g"], params["ln_emb_dec_b"])
    causal = jnp.where(jnp.tril(jnp.ones((t_dec, t_dec), jnp.float32)) > 0,
                       0.0, NEG_INF)                                      # (T, T)
    cross_mask = jnp.broadcast_to(pad_add[:, None, :], (b, t_dec, s_enc))
    for lp in params["dec_layers"]:
        y = decoder_layer(lp, y, encoder_hidden, causal, cross_mask)

    # ----- lm_head (tied, pre-transposed) + final_logits_bias + CrossEntropy -----
    logits2, masked_lm_loss = lm_head_and_loss(
        y.reshape(-1, D_MODEL), params["emb_T"], params["final_logits_bias"],
        labels.reshape(-1, 1).astype(jnp.int32))
    lm_logits = logits2.reshape(b, t_dec, VOCAB)
    # Seq2SeqLMOutput(loss=..., logits=...); caches / attentions not implemented.
    # TODO(synk): use_cache / past_key_values and attention/hidden-state outputs
    # of the HF BART output objects are not reproduced (inference-cache plumbing).
    return masked_lm_loss, lm_logits


# --------------------------- deterministic init ------------------------------
def _rand_w(key, din, dout):
    return 0.02 * jax.random.normal(key, (din, dout), jnp.float32)


def _self_attn_params(key, prefix=""):
    kq, kk, kv, ko = jax.random.split(key, 4)
    scale = HEAD_DIM ** -0.5
    qkv_w = jnp.concatenate([_rand_w(kq, D_MODEL, D_MODEL) * scale,  # scale folded in
                             _rand_w(kk, D_MODEL, D_MODEL),
                             _rand_w(kv, D_MODEL, D_MODEL)], axis=1)
    return {f"{prefix}qkv_w": qkv_w.astype(jnp.bfloat16),
            f"{prefix}qkv_b": jnp.zeros((1, 3 * D_MODEL), jnp.float32),
            f"{prefix}o_w": _rand_w(ko, D_MODEL, D_MODEL).astype(jnp.bfloat16),
            f"{prefix}o_b": jnp.zeros((1, D_MODEL), jnp.float32)}


def _cross_attn_params(key):
    kq, kk, kv, ko = jax.random.split(key, 4)
    scale = HEAD_DIM ** -0.5
    kv_w = jnp.concatenate([_rand_w(kk, D_MODEL, D_MODEL),
                            _rand_w(kv, D_MODEL, D_MODEL)], axis=1)
    return dict(ca_q_w=(_rand_w(kq, D_MODEL, D_MODEL) * scale).astype(jnp.bfloat16),
                ca_q_b=jnp.zeros((1, D_MODEL), jnp.float32),
                ca_kv_w=kv_w.astype(jnp.bfloat16),
                ca_kv_b=jnp.zeros((1, 2 * D_MODEL), jnp.float32),
                ca_o_w=_rand_w(ko, D_MODEL, D_MODEL).astype(jnp.bfloat16),
                ca_o_b=jnp.zeros((1, D_MODEL), jnp.float32))


def _ln(prefix):
    return {f"{prefix}_g": jnp.ones((1, D_MODEL), jnp.float32),
            f"{prefix}_b": jnp.zeros((1, D_MODEL), jnp.float32)}


def _ffn_params(k1, k2):
    return dict(fc1_w=_rand_w(k1, D_MODEL, FFN_DIM).astype(jnp.bfloat16),
                fc1_b=jnp.zeros((1, FFN_DIM), jnp.float32),
                fc2_w=_rand_w(k2, FFN_DIM, D_MODEL).astype(jnp.bfloat16),
                fc2_b=jnp.zeros((1, D_MODEL), jnp.float32))


def _enc_layer_params(key):
    k0, k1, k2 = jax.random.split(key, 3)
    p = {}
    p.update(_self_attn_params(k0))
    p.update(_ln("ln1"))
    p.update(_ffn_params(k1, k2))
    p.update(_ln("ln2"))
    return p


def _dec_layer_params(key):
    k0, k1, k2, k3 = jax.random.split(key, 4)
    p = {}
    p.update(_self_attn_params(k0, prefix="sa_"))
    p.update(_ln("ln1"))
    p.update(_cross_attn_params(k1))
    p.update(_ln("ln2"))
    p.update(_ffn_params(k2, k3))
    p.update(_ln("ln3"))
    return p


def init_params(key):
    keys = jax.random.split(key, 8)
    emb = 0.02 * jax.random.normal(keys[0], (VOCAB, D_MODEL), jnp.float32)
    return dict(
        emb=emb,                                       # gather table (f32)
        emb_T=emb.T.astype(jnp.bfloat16),              # tied lm_head, pre-transposed
        pos_enc=0.02 * jax.random.normal(keys[1], (MAX_POS, D_MODEL), jnp.float32),
        pos_dec=0.02 * jax.random.normal(keys[2], (MAX_POS, D_MODEL), jnp.float32),
        ln_emb_enc_g=jnp.ones((1, D_MODEL), jnp.float32),
        ln_emb_enc_b=jnp.zeros((1, D_MODEL), jnp.float32),
        ln_emb_dec_g=jnp.ones((1, D_MODEL), jnp.float32),
        ln_emb_dec_b=jnp.zeros((1, D_MODEL), jnp.float32),
        enc_layers=[_enc_layer_params(k) for k in jax.random.split(keys[3], ENC_LAYERS)],
        dec_layers=[_dec_layer_params(k) for k in jax.random.split(keys[4], DEC_LAYERS)],
        final_logits_bias=jnp.zeros((1, VOCAB), jnp.float32),
    )


# ----------------------------------- main ------------------------------------
if __name__ == "__main__":
    key = jax.random.PRNGKey(0)
    kp, ki, kl = jax.random.split(key, 3)

    B, S_ENC, T_DEC = 2, 8, 8
    params = init_params(kp)
    input_ids = jax.random.randint(ki, (B, S_ENC), 3, VOCAB, dtype=jnp.int32)
    attention_mask = jnp.ones((B, S_ENC), jnp.int32).at[1, 6:].set(0)
    labels = jax.random.randint(kl, (B, T_DEC), 3, VOCAB, dtype=jnp.int32)

    fwd = jax.jit(comment_model_forward)
    loss, logits = fwd(params, input_ids, attention_mask, labels)
    jax.block_until_ready((loss, logits))
    assert logits.shape == (B, T_DEC, VOCAB)
    assert bool(jnp.isfinite(loss))
    assert bool(jnp.all(jnp.isfinite(logits)))
    print("KERNEL_OK")
</pallas_src>

<mosaic_0001>
module attributes {stable_mosaic.version = 11 : i64} {
  func.func @_ln_kernel(%arg0: memref<16x32xf32, #tpu.memory_space<vmem>>, %arg1: memref<1x32xf32, #tpu.memory_space<vmem>>, %arg2: memref<1x32xf32, #tpu.memory_space<vmem>>, %arg3: memref<16x32xf32, #tpu.memory_space<vmem>>) attributes {dimension_semantics = [], scalar_prefetch = 0 : i64, scratch_operands = 0 : i64, tpu.core_type = #tpu.core_type<tc>} {
    %c0 = arith.constant 0 : index
    %c0_0 = arith.constant 0 : index
    %0 = vector.load %arg0[%c0, %c0_0] : memref<16x32xf32, #tpu.memory_space<vmem>>, vector<16x32xf32>
    %c0_1 = arith.constant 0 : index
    %c0_2 = arith.constant 0 : index
    %1 = vector.load %arg1[%c0_1, %c0_2] : memref<1x32xf32, #tpu.memory_space<vmem>>, vector<1x32xf32>
    %c0_3 = arith.constant 0 : index
    %c0_4 = arith.constant 0 : index
    %2 = vector.load %arg2[%c0_3, %c0_4] : memref<1x32xf32, #tpu.memory_space<vmem>>, vector<1x32xf32>
    %cst = arith.constant dense<0.000000e+00> : vector<16xf32>
    %3 = vector.multi_reduction <add>, %0, %cst [1] : vector<16x32xf32> to vector<16xf32>
    %4 = vector.shape_cast %3 : vector<16xf32> to vector<16x1xf32>
    %cst_5 = arith.constant 3.200000e+01 : f32
    %5 = vector.broadcast %cst_5 : f32 to vector<16x1xf32>
    %6 = arith.divf %4, %5 : vector<16x1xf32>
    %7 = vector.broadcast %6 : vector<16x1xf32> to vector<16x32xf32>
    %8 = arith.subf %0, %7 : vector<16x32xf32>
    %9 = arith.mulf %8, %8 : vector<16x32xf32>
    %cst_6 = arith.constant dense<0.000000e+00> : vector<16xf32>
    %10 = vector.multi_reduction <add>, %9, %cst_6 [1] : vector<16x32xf32> to vector<16xf32>
    %11 = vector.shape_cast %10 : vector<16xf32> to vector<16x1xf32>
    %cst_7 = arith.constant 3.200000e+01 : f32
    %12 = vector.broadcast %cst_7 : f32 to vector<16x1xf32>
    %13 = arith.divf %11, %12 : vector<16x1xf32>
    %14 = vector.broadcast %6 : vector<16x1xf32> to vector<16x32xf32>
    %15 = arith.subf %0, %14 : vector<16x32xf32>
    %cst_8 = arith.constant 9.99999974E-6 : f32
    %16 = vector.broadcast %cst_8 : f32 to vector<16x1xf32>
    %17 = arith.addf %13, %16 : vector<16x1xf32>
    %18 = math.rsqrt %17 : vector<16x1xf32>
    %19 = vector.broadcast %18 : vector<16x1xf32> to vector<16x32xf32>
    %20 = arith.mulf %15, %19 : vector<16x32xf32>
    %21 = vector.broadcast %1 : vector<1x32xf32> to vector<16x32xf32>
    %22 = arith.mulf %20, %21 : vector<16x32xf32>
    %23 = vector.broadcast %2 : vector<1x32xf32> to vector<16x32xf32>
    %24 = arith.addf %22, %23 : vector<16x32xf32>
    %c0_9 = arith.constant 0 : index
    %c0_10 = arith.constant 0 : index
    %25 = vector.load %arg3[%c0_9, %c0_10] : memref<16x32xf32, #tpu.memory_space<vmem>>, vector<16x32xf32>
    tpu.vector_store %arg3[%c0_9, %c0_10], %24 {strides = array<i32>} : memref<16x32xf32, #tpu.memory_space<vmem>>, vector<16x32xf32>,
    return
  }
}

module attributes {stable_mosaic.version = 11 : i64} {
  func.func @_dec_layer_kernel(%arg0: i32, %arg1: memref<1x8x32xf32, #tpu.memory_space<vmem>>, %arg2: memref<1x8x32xf32, #tpu.memory_space<vmem>>, %arg3: memref<8x8xf32, #tpu.memory_space<vmem>>, %arg4: memref<1x8x8xf32, #tpu.memory_space<vmem>>, %arg5: memref<32x96xbf16, #tpu.memory_space<vmem>>, %arg6: memref<1x96xf32, #tpu.memory_space<vmem>>, %arg7: memref<32x32xbf16, #tpu.memory_space<vmem>>, %arg8: memref<1x32xf32, #tpu.memory_space<vmem>>, %arg9: memref<1x32xf32, #tpu.memory_space<vmem>>, %arg10: memref<1x32xf32, #tpu.memory_space<vmem>>, %arg11: memref<32x32xbf16, #tpu.memory_space<vmem>>, %arg12: memref<1x32xf32, #tpu.memory_space<vmem>>, %arg13: memref<32x64xbf16, #tpu.memory_space<vmem>>, %arg14: memref<1x64xf32, #tpu.memory_space<vmem>>, %arg15: memref<32x32xbf16, #tpu.memory_space<vmem>>, %arg16: memref<1x32xf32, #tpu.memory_space<vmem>>, %arg17: memref<1x32xf32, #tpu.memory_space<vmem>>, %arg18: memref<1x32xf32, #tpu.memory_space<vmem>>, %arg19: memref<32x64xbf16, #tpu.memory_space<vmem>>, %arg20: memref<1x64xf32, #tpu.memory_space<vmem>>, %arg21: memref<64x32xbf16, #tpu.memory_space<vmem>>, %arg22: memref<1x32xf32, #tpu.memory_space<vmem>>, %arg23: memref<1x32xf32, #tpu.memory_space<vmem>>, %arg24: memref<1x32xf32, #tpu.memory_space<vmem>>, %arg25: memref<1x8x32xf32, #tpu.memory_space<vmem>>) attributes {dimension_semantics = [#tpu.dimension_semantics<parallel>], iteration_bounds = array<i64: 2>, scalar_prefetch = 0 : i64, scratch_operands = 0 : i64, tpu.core_type = #tpu.core_type<tc>, window_params = [{transform_indices = @transform_0, window_bounds = array<i64: 1, 8, 32>}, {transform_indices = @transform_1, window_bounds = array<i64: 1, 8, 32>}, {pipeline_mode = #tpu.pipeline_mode<synchronous>, transform_indices = @transform_2, window_bounds = array<i64: 8, 8>}, {transform_indices = @transform_3, window_bounds = array<i64: 1, 8, 8>}, {pipeline_mode = #tpu.pipeline_mode<synchronous>, transform_indices = @transform_4, window_bounds = array<i64: 32, 96>}, {pipeline_mode = #tpu.pipeline_mode<synchronous>, transform_indices = @transform_5, window_bounds = array<i64: 1, 96>}, {pipeline_mode = #tpu.pipeline_mode<synchronous>, transform_indices = @transform_6, window_bounds = array<i64: 32, 32>}, {pipeline_mode = #tpu.pipeline_mode<synchronous>, transform_indices = @transform_7, window_bounds = array<i64: 1, 32>}, {pipeline_mode = #tpu.pipeline_mode<synchronous>, transform_indices = @transform_8, window_bounds = array<i64: 1, 32>}, {pipeline_mode = #tpu.pipeline_mode<synchronous>, transform_indices = @transform_9, window_bounds = array<i64: 1, 32>}, {pipeline_mode = #tpu.pipeline_mode<synchronous>, transform_indices = @transform_10, window_bounds = array<i64: 32, 32>}, {pipeline_mode = #tpu.pipeline_mode<synchronous>, transform_indices = @transform_11, window_bounds = array<i64: 1, 32>}, {pipeline_mode = #tpu.pipeline_mode<synchronous>, transform_indices = @transform_12, window_bounds = array<i64: 32, 64>}, {pipeline_mode = #tpu.pipeline_mode<synchronous>, transform_indices = @transform_13, window_bounds = array<i64: 1, 64>}, {pipeline_mode = #tpu.pipeline_mode<synchronous>, transform_indices = @transform_14, window_bounds = array<i64: 32, 32>}, {pipeline_mode = #tpu.pipeline_mode<synchronous>, transform_indices = @transform_15, window_bounds = array<i64: 1, 32>}, {pipeline_mode = #tpu.pipeline_mode<synchronous>, transform_indices = @transform_16, window_bounds = array<i64: 1, 32>}, {pipeline_mode = #tpu.pipeline_mode<synchronous>, transform_indices = @transform_17, window_bounds = array<i64: 1, 32>}, {pipeline_mode = #tpu.pipeline_mode<synchronous>, transform_indices = @transform_18, window_bounds = array<i64: 32, 64>}, {pipeline_mode = #tpu.pipeline_mode<synchronous>, transform_indices = @transform_19, window_bounds = array<i64: 1, 64>}, {pipeline_mode = #tpu.pipeline_mode<synchronous>, transform_indices = @transform_20, window_bounds = array<i64: 64, 32>}, {pipeline_mode = #tpu.pipeline_mode<synchronous>, transform_indices = @transform_21, window_bounds = array<i64: 1, 32>}, {pipeline_mode = #tpu.pipeline_mode<synchronous>, transform_indices = @transform_22, window_bounds = array<i64: 1, 32>}, {pipeline_mode = #tpu.pipeline_mode<synchronous>, transform_indices = @transform_23, window_bounds = array<i64: 1, 32>}, {transform_indices = @transform_24, window_bounds = array<i64: 1, 8, 32>}]} {
    %c0 = arith.constant 0 : index
    %c0_0 = arith.constant 0 : index
    %c0_1 = arith.constant 0 : index
    %0 = vector.load %arg1[%c0, %c0_0, %c0_1] : memref<1x8x32xf32, #tpu.memory_space<vmem>>, vector<1x8x32xf32>
    %1 = vector.shape_cast %0 : vector<1x8x32xf32> to vector<8x32xf32>
    %c0_2 = arith.constant 0 : index
    %c0_3 = arith.constant 0 : index
    %c0_4 = arith.constant 0 : index
    %2 = vector.load %arg2[%c0_2, %c0_3, %c0_4] : memref<1x8x32xf32, #tpu.memory_space<vmem>>, vector<1x8x32xf32>
    %3 = vector.shape_cast %2 : vector<1x8x32xf32> to vector<8x32xf32>
    %c0_5 = arith.constant 0 : index
    %c0_6 = arith.constant 0 : index
    %4 = vector.load %arg5[%c0_5, %c0_6] : memref<32x96xbf16, #tpu.memory_space<vmem>>, vector<32x96xbf16>
    %5 = arith.truncf %1 : vector<8x32xf32> to vector<8x32xbf16>
    %cst = arith.constant dense<0.000000e+00> : vector<8x96xf32>
    %6 = tpu.matmul %5, %4, %cst {dimension_numbers = #tpu.dot_dimension_numbers<[1], [0], [0], [1], [0, 0, 1, 1], [], []>} : vector<8x32xbf16>, vector<32x96xbf16>, vector<8x96xf32> -> vector<8x96xf32>
    %c0_7 = arith.constant 0 : index
    %c0_8 = arith.constant 0 : index
    %7 = vector.load %arg6[%c0_7, %c0_8] : memref<1x96xf32, #tpu.memory_space<vmem>>, vector<1x96xf32>
    %8 = vector.broadcast %7 : vector<1x96xf32> to vector<8x96xf32>
    %9 = arith.addf %6, %8 : vector<8x96xf32>
    %10 = vector.extract_strided_slice %9 {offsets = [0, 0], sizes = [8, 32], strides = [1, 1]} : vector<8x96xf32> to vector<8x32xf32>
    %11 = vector.extract_strided_slice %9 {offsets = [0, 32], sizes = [8, 32], strides = [1, 1]} : vector<8x96xf32> to vector<8x32xf32>
    %12 = vector.extract_strided_slice %9 {offsets = [0, 64], sizes = [8, 32], strides = [1, 1]} : vector<8x96xf32> to vector<8x32xf32>
    %c0_9 = arith.constant 0 : index
    %c0_10 = arith.constant 0 : index
    %13 = vector.load %arg3[%c0_9, %c0_10] : memref<8x8xf32, #tpu.memory_space<vmem>>, vector<8x8xf32>
    %14 = vector.shape_cast %13 : vector<8x8xf32> to vector<8x8xf32>
    %15 = vector.extract_strided_slice %10 {offsets = [0, 0], sizes = [8, 16], strides = [1, 1]} : vector<8x32xf32> to vector<8x16xf32>
    %16 = arith.truncf %15 : vector<8x16xf32> to vector<8x16xbf16>
    %17 = vector.extract_strided_slice %11 {offsets = [0, 0], sizes = [8, 16], strides = [1, 1]} : vector<8x32xf32> to vector<8x16xf32>
    %18 = arith.truncf %17 : vector<8x16xf32> to vector<8x16xbf16>
    %19 = vector.extract_strided_slice %12 {offsets = [0, 0], sizes = [8, 16], strides = [1, 1]} : vector<8x32xf32> to vector<8x16xf32>
    %20 = arith.truncf %19 : vector<8x16xf32> to vector<8x16xbf16>
    %cst_11 = arith.constant dense<0.000000e+00> : vector<8x8xf32>
    %21 = tpu.matmul %16, %18, %cst_11 {dimension_numbers = #tpu.dot_dimension_numbers<[1], [1], [0], [0], [0, 0, 1, 0], [], []>} : vector<8x16xbf16>, vector<8x16xbf16>, vector<8x8xf32> -> vector<8x8xf32>
    %22 = arith.addf %21, %14 : vector<8x8xf32>
    %cst_12 = arith.constant dense<0xFF800000> : vector<8xf32>
    %23 = vector.multi_reduction <maximumf>, %22, %cst_12 [1] : vector<8x8xf32> to vector<8xf32>
    %24 = vector.shape_cast %23 : vector<8xf32> to vector<8x1xf32>
    %25 = vector.broadcast %24 : vector<8x1xf32> to vector<8x8xf32>
    %26 = arith.subf %22, %25 : vector<8x8xf32>
    %27 = math.exp %26 : vector<8x8xf32>
    %cst_13 = arith.constant dense<0.000000e+00> : vector<8xf32>
    %28 = vector.multi_reduction <add>, %27, %cst_13 [1] : vector<8x8xf32> to vector<8xf32>
    %29 = vector.shape_cast %28 : vector<8xf32> to vector<8x1xf32>
    %30 = tpu.reciprocal %29 {approx = true} : vector<8x1xf32> -> vector<8x1xf32>
    %31 = vector.broadcast %30 : vector<8x1xf32> to vector<8x8xf32>
    %32 = arith.mulf %27, %31 : vector<8x8xf32>
    %33 = arith.truncf %32 : vector<8x8xf32> to vector<8x8xbf16>
    %cst_14 = arith.constant dense<0.000000e+00> : vector<8x16xf32>
    %34 = tpu.matmul %33, %20, %cst_14 {dimension_numbers = #tpu.dot_dimension_numbers<[1], [0], [0], [1], [0, 0, 1, 1], [], []>} : vector<8x8xbf16>, vector<8x16xbf16>, vector<8x16xf32> -> vector<8x16xf32>
    %35 = vector.extract_strided_slice %10 {offsets = [0, 16], sizes = [8, 16], strides = [1, 1]} : vector<8x32xf32> to vector<8x16xf32>
    %36 = arith.truncf %35 : vector<8x16xf32> to vector<8x16xbf16>
    %37 = vector.extract_strided_slice %11 {offsets = [0, 16], sizes = [8, 16], strides = [1, 1]} : vector<8x32xf32> to vector<8x16xf32>
    %38 = arith.truncf %37 : vector<8x16xf32> to vector<8x16xbf16>
    %39 = vector.extract_strided_slice %12 {offsets = [0, 16], sizes = [8, 16], strides = [1, 1]} : vector<8x32xf32> to vector<8x16xf32>
    %40 = arith.truncf %39 : vector<8x16xf32> to vector<8x16xbf16>
    %cst_15 = arith.constant dense<0.000000e+00> : vector<8x8xf32>
    %41 = tpu.matmul %36, %38, %cst_15 {dimension_numbers = #tpu.dot_dimension_numbers<[1], [1], [0], [0], [0, 0, 1, 0], [], []>} : vector<8x16xbf16>, vector<8x16xbf16>, vector<8x8xf32> -> vector<8x8xf32>
    %42 = arith.addf %41, %14 : vector<8x8xf32>
    %cst_16 = arith.constant dense<0xFF800000> : vector<8xf32>
    %43 = vector.multi_reduction <maximumf>, %42, %cst_16 [1] : vector<8x8xf32> to vector<8xf32>
    %44 = vector.shape_cast %43 : vector<8xf32> to vector<8x1xf32>
    %45 = vector.broadcast %44 : vector<8x1xf32> to vector<8x8xf32>
    %46 = arith.subf %42, %45 : vector<8x8xf32>
    %47 = math.exp %46 : vector<8x8xf32>
    %cst_17 = arith.constant dense<0.000000e+00> : vector<8xf32>
    %48 = vector.multi_reduction <add>, %47, %cst_17 [1] : vector<8x8xf32> to vector<8xf32>
    %49 = vector.shape_cast %48 : vector<8xf32> to vector<8x1xf32>
    %50 = tpu.reciprocal %49 {approx = true} : vector<8x1xf32> -> vector<8x1xf32>
    %51 = vector.broadcast %50 : vector<8x1xf32> to vector<8x8xf32>
    %52 = arith.mulf %47, %51 : vector<8x8xf32>
    %53 = arith.truncf %52 : vector<8x8xf32> to vector<8x8xbf16>
    %cst_18 = arith.constant dense<0.000000e+00> : vector<8x16xf32>
    %54 = tpu.matmul %53, %40, %cst_18 {dimension_numbers = #tpu.dot_dimension_numbers<[1], [0], [0], [1], [0, 0, 1, 1], [], []>} : vector<8x8xbf16>, vector<8x16xbf16>, vector<8x16xf32> -> vector<8x16xf32>
    %55 = tpu.concatenate %34, %54 in 1 : vector<8x16xf32>, vector<8x16xf32> -> vector<8x32xf32>
    %c0_19 = arith.constant 0 : index
    %c0_20 = arith.constant 0 : index
    %56 = vector.load %arg7[%c0_19, %c0_20] : memref<32x32xbf16, #tpu.memory_space<vmem>>, vector<32x32xbf16>
    %57 = arith.truncf %55 : vector<8x32xf32> to vector<8x32xbf16>
    %cst_21 = arith.constant dense<0.000000e+00> : vector<8x32xf32>
    %58 = tpu.matmul %57, %56, %cst_21 {dimension_numbers = #tpu.dot_dimension_numbers<[1], [0], [0], [1], [0, 0, 1, 1], [], []>} : vector<8x32xbf16>, vector<32x32xbf16>, vector<8x32xf32> -> vector<8x32xf32>
    %59 = arith.addf %1, %58 : vector<8x32xf32>
    %c0_22 = arith.constant 0 : index
    %c0_23 = arith.constant 0 : index
    %60 = vector.load %arg8[%c0_22, %c0_23] : memref<1x32xf32, #tpu.memory_space<vmem>>, vector<1x32xf32>
    %61 = vector.broadcast %60 : vector<1x32xf32> to vector<8x32xf32>
    %62 = arith.addf %59, %61 : vector<8x32xf32>
    %c0_24 = arith.constant 0 : index
    %c0_25 = arith.constant 0 : index
    %63 = vector.load %arg9[%c0_24, %c0_25] : memref<1x32xf32, #tpu.memory_space<vmem>>, vector<1x32xf32>
    %c0_26 = arith.constant 0 : index
    %c0_27 = arith.constant 0 : index
    %64 = vector.load %arg10[%c0_26, %c0_27] : memref<1x32xf32, #tpu.memory_space<vmem>>, vector<1x32xf32>
    %cst_28 = arith.constant dense<0.000000e+00> : vector<8xf32>
    %65 = vector.multi_reduction <add>, %62, %cst_28 [1] : vector<8x32xf32> to vector<8xf32>
    %66 = vector.shape_cast %65 : vector<8xf32> to vector<8x1xf32>
    %cst_29 = arith.constant 3.200000e+01 : f32
    %67 = vector.broadcast %cst_29 : f32 to vector<8x1xf32>
    %68 = arith.divf %66, %67 : vector<8x1xf32>
    %69 = vector.broadcast %68 : vector<8x1xf32> to vector<8x32xf32>
    %70 = arith.subf %62, %69 : vector<8x32xf32>
    %71 = arith.mulf %70, %70 : vector<8x32xf32>
    %cst_30 = arith.constant dense<0.000000e+00> : vector<8xf32>
    %72 = vector.multi_reduction <add>, %71, %cst_30 [1] : vector<8x32xf32> to vector<8xf32>
    %73 = vector.shape_cast %72 : vector<8xf32> to vector<8x1xf32>
    %cst_31 = arith.constant 3.200000e+01 : f32
    %74 = vector.broadcast %cst_31 : f32 to vector<8x1xf32>
    %75 = arith.divf %73, %74 : vector<8x1xf32>
    %76 = vector.broadcast %68 : vector<8x1xf32> to vector<8x32xf32>
    %77 = arith.subf %62, %76 : vector<8x32xf32>
    %cst_32 = arith.constant 9.99999974E-6 : f32
    %78 = vector.broadcast %cst_32 : f32 to vector<8x1xf32>
    %79 = arith.addf %75, %78 : vector<8x1xf32>
    %80 = math.rsqrt %79 : vector<8x1xf32>
    %81 = vector.broadcast %80 : vector<8x1xf32> to vector<8x32xf32>
    %82 = arith.mulf %77, %81 : vector<8x32xf32>
    %83 = vector.broadcast %63 : vector<1x32xf32> to vector<8x32xf32>
    %84 = arith.mulf %82, %83 : vector<8x32xf32>
    %85 = vector.broadcast %64 : vector<1x32xf32> to vector<8x32xf32>
    %86 = arith.addf %84, %85 : vector<8x32xf32>
    %c0_33 = arith.constant 0 : index
    %c0_34 = arith.constant 0 : index
    %87 = vector.load %arg11[%c0_33, %c0_34] : memref<32x32xbf16, #tpu.memory_space<vmem>>, vector<32x32xbf16>
    %88 = arith.truncf %86 : vector<8x32xf32> to vector<8x32xbf16>
    %cst_35 = arith.constant dense<0.000000e+00> : vector<8x32xf32>
    %89 = tpu.matmul %88, %87, %cst_35 {dimension_numbers = #tpu.dot_dimension_numbers<[1], [0], [0], [1], [0, 0, 1, 1], [], []>} : vector<8x32xbf16>, vector<32x32xbf16>, vector<8x32xf32> -> vector<8x32xf32>
    %c0_36 = arith.constant 0 : index
    %c0_37 = arith.constant 0 : index
    %90 = vector.load %arg12[%c0_36, %c0_37] : memref<1x32xf32, #tpu.memory_space<vmem>>, vector<1x32xf32>
    %91 = vector.broadcast %90 : vector<1x32xf32> to vector<8x32xf32>
    %92 = arith.addf %89, %91 : vector<8x32xf32>
    %c0_38 = arith.constant 0 : index
    %c0_39 = arith.constant 0 : index
    %93 = vector.load %arg13[%c0_38, %c0_39] : memref<32x64xbf16, #tpu.memory_space<vmem>>, vector<32x64xbf16>
    %94 = arith.truncf %3 : vector<8x32xf32> to vector<8x32xbf16>
    %cst_40 = arith.constant dense<0.000000e+00> : vector<8x64xf32>
    %95 = tpu.matmul %94, %93, %cst_40 {dimension_numbers = #tpu.dot_dimension_numbers<[1], [0], [0], [1], [0, 0, 1, 1], [], []>} : vector<8x32xbf16>, vector<32x64xbf16>, vector<8x64xf32> -> vector<8x64xf32>
    %c0_41 = arith.constant 0 : index
    %c0_42 = arith.constant 0 : index
    %96 = vector.load %arg14[%c0_41, %c0_42] : memref<1x64xf32, #tpu.memory_space<vmem>>, vector<1x64xf32>
    %97 = vector.broadcast %96 : vector<1x64xf32> to vector<8x64xf32>
    %98 = arith.addf %95, %97 : vector<8x64xf32>
    %99 = vector.extract_strided_slice %98 {offsets = [0, 0], sizes = [8, 32], strides = [1, 1]} : vector<8x64xf32> to vector<8x32xf32>
    %100 = vector.extract_strided_slice %98 {offsets = [0, 32], sizes = [8, 32], strides = [1, 1]} : vector<8x64xf32> to vector<8x32xf32>
    %c0_43 = arith.constant 0 : index
    %c0_44 = arith.constant 0 : index
    %c0_45 = arith.constant 0 : index
    %101 = vector.load %arg4[%c0_43, %c0_44, %c0_45] : memref<1x8x8xf32, #tpu.memory_space<vmem>>, vector<1x8x8xf32>
    %102 = vector.shape_cast %101 : vector<1x8x8xf32> to vector<8x8xf32>
    %103 = vector.extract_strided_slice %92 {offsets = [0, 0], sizes = [8, 16], strides = [1, 1]} : vector<8x32xf32> to vector<8x16xf32>
    %104 = arith.truncf %103 : vector<8x16xf32> to vector<8x16xbf16>
    %105 = vector.extract_strided_slice %99 {offsets = [0, 0], sizes = [8, 16], strides = [1, 1]} : vector<8x32xf32> to vector<8x16xf32>
    %106 = arith.truncf %105 : vector<8x16xf32> to vector<8x16xbf16>
    %107 = vector.extract_strided_slice %100 {offsets = [0, 0], sizes = [8, 16], strides = [1, 1]} : vector<8x32xf32> to vector<8x16xf32>
    %108 = arith.truncf %107 : vector<8x16xf32> to vector<8x16xbf16>
    %cst_46 = arith.constant dense<0.000000e+00> : vector<8x8xf32>
    %109 = tpu.matmul %104, %106, %cst_46 {dimension_numbers = #tpu.dot_dimension_numbers<[1], [1], [0], [0], [0, 0, 1, 0], [], []>} : vector<8x16xbf16>, vector<8x16xbf16>, vector<8x8xf32> -> vector<8x8xf32>
    %110 = arith.addf %109, %102 : vector<8x8xf32>
    %cst_47 = arith.constant dense<0xFF800000> : vector<8xf32>
    %111 = vector.multi_reduction <maximumf>, %110, %cst_47 [1] : vector<8x8xf32> to vector<8xf32>
    %112 = vector.shape_cast %111 : vector<8xf32> to vector<8x1xf32>
    %113 = vector.broadcast %112 : vector<8x1xf32> to vector<8x8xf32>
    %114 = arith.subf %110, %113 : vector<8x8xf32>
    %115 = math.exp %114 : vector<8x8xf32>
    %cst_48 = arith.constant dense<0.000000e+00> : vector<8xf32>
    %116 = vector.multi_reduction <add>, %115, %cst_48 [1] : vector<8x8xf32> to vector<8xf32>
    %117 = vector.shape_cast %116 : vector<8xf32> to vector<8x1xf32>
    %118 = tpu.reciprocal %117 {approx = true} : vector<8x1xf32> -> vector<8x1xf32>
    %119 = vector.broadcast %118 : vector<8x1xf32> to vector<8x8xf32>
    %120 = arith.mulf %115, %119 : vector<8x8xf32>
    %121 = arith.truncf %120 : vector<8x8xf32> to vector<8x8xbf16>
    %cst_49 = arith.constant dense<0.000000e+00> : vector<8x16xf32>
    %122 = tpu.matmul %121, %108, %cst_49 {dimension_numbers = #tpu.dot_dimension_numbers<[1], [0], [0], [1], [0, 0, 1, 1], [], []>} : vector<8x8xbf16>, vector<8x16xbf16>, vector<8x16xf32> -> vector<8x16xf32>
    %123 = vector.extract_strided_slice %92 {offsets = [0, 16], sizes = [8, 16], strides = [1, 1]} : vector<8x32xf32> to vector<8x16xf32>
    %124 = arith.truncf %123 : vector<8x16xf32> to vector<8x16xbf16>
    %125 = vector.extract_strided_slice %99 {offsets = [0, 16], sizes = [8, 16], strides = [1, 1]} : vector<8x32xf32> to vector<8x16xf32>
    %126 = arith.truncf %125 : vector<8x16xf32> to vector<8x16xbf16>
    %127 = vector.extract_strided_slice %100 {offsets = [0, 16], sizes = [8, 16], strides = [1, 1]} : vector<8x32xf32> to vector<8x16xf32>
    %128 = arith.truncf %127 : vector<8x16xf32> to vector<8x16xbf16>
    %cst_50 = arith.constant dense<0.000000e+00> : vector<8x8xf32>
    %129 = tpu.matmul %124, %126, %cst_50 {dimension_numbers = #tpu.dot_dimension_numbers<[1], [1], [0], [0], [0, 0, 1, 0], [], []>} : vector<8x16xbf16>, vector<8x16xbf16>, vector<8x8xf32> -> vector<8x8xf32>
    %130 = arith.addf %129, %102 : vector<8x8xf32>
    %cst_51 = arith.constant dense<0xFF800000> : vector<8xf32>
    %131 = vector.multi_reduction <maximumf>, %130, %cst_51 [1] : vector<8x8xf32> to vector<8xf32>
    %132 = vector.shape_cast %131 : vector<8xf32> to vector<8x1xf32>
    %133 = vector.broadcast %132 : vector<8x1xf32> to vector<8x8xf32>
    %134 = arith.subf %130, %133 : vector<8x8xf32>
    %135 = math.exp %134 : vector<8x8xf32>
    %cst_52 = arith.constant dense<0.000000e+00> : vector<8xf32>
    %136 = vector.multi_reduction <add>, %135, %cst_52 [1] : vector<8x8xf32> to vector<8xf32>
    %137 = vector.shape_cast %136 : vector<8xf32> to vector<8x1xf32>
    %138 = tpu.reciprocal %137 {approx = true} : vector<8x1xf32> -> vector<8x1xf32>
    %139 = vector.broadcast %138 : vector<8x1xf32> to vector<8x8xf32>
    %140 = arith.mulf %135, %139 : vector<8x8xf32>
    %141 = arith.truncf %140 : vector<8x8xf32> to vector<8x8xbf16>
    %cst_53 = arith.constant dense<0.000000e+00> : vector<8x16xf32>
    %142 = tpu.matmul %141, %128, %cst_53 {dimension_numbers = #tpu.dot_dimension_numbers<[1], [0], [0], [1], [0, 0, 1, 1], [], []>} : vector<8x8xbf16>, vector<8x16xbf16>, vector<8x16xf32> -> vector<8x16xf32>
    %143 = tpu.concatenate %122, %142 in 1 : vector<8x16xf32>, vector<8x16xf32> -> vector<8x32xf32>
    %c0_54 = arith.constant 0 : index
    %c0_55 = arith.constant 0 : index
    %144 = vector.load %arg15[%c0_54, %c0_55] : memref<32x32xbf16, #tpu.memory_space<vmem>>, vector<32x32xbf16>
    %145 = arith.truncf %143 : vector<8x32xf32> to vector<8x32xbf16>
    %cst_56 = arith.constant dense<0.000000e+00> : vector<8x32xf32>
    %146 = tpu.matmul %145, %144, %cst_56 {dimension_numbers = #tpu.dot_dimension_numbers<[1], [0], [0], [1], [0, 0, 1, 1], [], []>} : vector<8x32xbf16>, vector<32x32xbf16>, vector<8x32xf32> -> vector<8x32xf32>
    %147 = arith.addf %86, %146 : vector<8x32xf32>
    %c0_57 = arith.constant 0 : index
    %c0_58 = arith.constant 0 : index
    %148 = vector.load %arg16[%c0_57, %c0_58] : memref<1x32xf32, #tpu.memory_space<vmem>>, vector<1x32xf32>
    %149 = vector.broadcast %148 : vector<1x32xf32> to vector<8x32xf32>
    %150 = arith.addf %147, %149 : vector<8x32xf32>
    %c0_59 = arith.constant 0 : index
    %c0_60 = arith.constant 0 : index
    %151 = vector.load %arg17[%c0_59, %c0_60] : memref<1x32xf32, #tpu.memory_space<vmem>>, vector<1x32xf32>
    %c0_61 = arith.constant 0 : index
    %c0_62 = arith.constant 0 : index
    %152 = vector.load %arg18[%c0_61, %c0_62] : memref<1x32xf32, #tpu.memory_space<vmem>>, vector<1x32xf32>
    %cst_63 = arith.constant dense<0.000000e+00> : vector<8xf32>
    %153 = vector.multi_reduction <add>, %150, %cst_63 [1] : vector<8x32xf32> to vector<8xf32>
    %154 = vector.shape_cast %153 : vector<8xf32> to vector<8x1xf32>
    %cst_64 = arith.constant 3.200000e+01 : f32
    %155 = vector.broadcast %cst_64 : f32 to vector<8x1xf32>
    %156 = arith.divf %154, %155 : vector<8x1xf32>
    %157 = vector.broadcast %156 : vector<8x1xf32> to vector<8x32xf32>
    %158 = arith.subf %150, %157 : vector<8x32xf32>
    %159 = arith.mulf %158, %158 : vector<8x32xf32>
    %cst_65 = arith.constant dense<0.000000e+00> : vector<8xf32>
    %160 = vector.multi_reduction <add>, %159, %cst_65 [1] : vector<8x32xf32> to vector<8xf32>
    %161 = vector.shape_cast %160 : vector<8xf32> to vector<8x1xf32>
    %cst_66 = arith.constant 3.200000e+01 : f32
    %162 = vector.broadcast %cst_66 : f32 to vector<8x1xf32>
    %163 = arith.divf %161, %162 : vector<8x1xf32>
    %164 = vector.broadcast %156 : vector<8x1xf32> to vector<8x32xf32>
    %165 = arith.subf %150, %164 : vector<8x32xf32>
    %cst_67 = arith.constant 9.99999974E-6 : f32
    %166 = vector.broadcast %cst_67 : f32 to vector<8x1xf32>
    %167 = arith.addf %163, %166 : vector<8x1xf32>
    %168 = math.rsqrt %167 : vector<8x1xf32>
    %169 = vector.broadcast %168 : vector<8x1xf32> to vector<8x32xf32>
    %170 = arith.mulf %165, %169 : vector<8x32xf32>
    %171 = vector.broadcast %151 : vector<1x32xf32> to vector<8x32xf32>
    %172 = arith.mulf %170, %171 : vector<8x32xf32>
    %173 = vector.broadcast %152 : vector<1x32xf32> to vector<8x32xf32>
    %174 = arith.addf %172, %173 : vector<8x32xf32>
    %c0_68 = arith.constant 0 : index
    %c0_69 = arith.constant 0 : index
    %175 = vector.load %arg19[%c0_68, %c0_69] : memref<32x64xbf16, #tpu.memory_space<vmem>>, vector<32x64xbf16>
    %176 = arith.truncf %174 : vector<8x32xf32> to vector<8x32xbf16>
    %cst_70 = arith.constant dense<0.000000e+00> : vector<8x64xf32>
    %177 = tpu.matmul %176, %175, %cst_70 {dimension_numbers = #tpu.dot_dimension_numbers<[1], [0], [0], [1], [0, 0, 1, 1], [], []>} : vector<8x32xbf16>, vector<32x64xbf16>, vector<8x64xf32> -> vector<8x64xf32>
    %c0_71 = arith.constant 0 : index
    %c0_72 = arith.constant 0 : index
    %178 = vector.load %arg20[%c0_71, %c0_72] : memref<1x64xf32, #tpu.memory_space<vmem>>, vector<1x64xf32>
    %179 = vector.broadcast %178 : vector<1x64xf32> to vector<8x64xf32>
    %180 = arith.addf %177, %179 : vector<8x64xf32>
    %181 = arith.mulf %180, %180 : vector<8x64xf32>
    %182 = arith.mulf %180, %181 : vector<8x64xf32>
    %cst_73 = arith.constant 4.471500e-02 : f32
    %183 = vector.broadcast %cst_73 : f32 to vector<8x64xf32>
    %184 = arith.mulf %183, %182 : vector<8x64xf32>
    %185 = arith.addf %180, %184 : vector<8x64xf32>
    %cst_74 = arith.constant 0.797884583 : f32
    %186 = vector.broadcast %cst_74 : f32 to vector<8x64xf32>
    %187 = arith.mulf %186, %185 : vector<8x64xf32>
    %188 = math.tanh %187 : vector<8x64xf32>
    %cst_75 = arith.constant 1.000000e+00 : f32
    %189 = vector.broadcast %cst_75 : f32 to vector<8x64xf32>
    %190 = arith.addf %189, %188 : vector<8x64xf32>
    %cst_76 = arith.constant 5.000000e-01 : f32
    %191 = vector.broadcast %cst_76 : f32 to vector<8x64xf32>
    %192 = arith.mulf %191, %190 : vector<8x64xf32>
    %193 = arith.mulf %180, %192 : vector<8x64xf32>
    %c0_77 = arith.constant 0 : index
    %c0_78 = arith.constant 0 : index
    %194 = vector.load %arg21[%c0_77, %c0_78] : memref<64x32xbf16, #tpu.memory_space<vmem>>, vector<64x32xbf16>
    %195 = arith.truncf %193 : vector<8x64xf32> to vector<8x64xbf16>
    %cst_79 = arith.constant dense<0.000000e+00> : vector<8x32xf32>
    %196 = tpu.matmul %195, %194, %cst_79 {dimension_numbers = #tpu.dot_dimension_numbers<[1], [0], [0], [1], [0, 0, 1, 1], [], []>} : vector<8x64xbf16>, vector<64x32xbf16>, vector<8x32xf32> -> vector<8x32xf32>
    %c0_80 = arith.constant 0 : index
    %c0_81 = arith.constant 0 : index
    %197 = vector.load %arg22[%c0_80, %c0_81] : memref<1x32xf32, #tpu.memory_space<vmem>>, vector<1x32xf32>
    %198 = vector.broadcast %197 : vector<1x32xf32> to vector<8x32xf32>
    %199 = arith.addf %196, %198 : vector<8x32xf32>
    %200 = arith.addf %174, %199 : vector<8x32xf32>
    %c0_82 = arith.constant 0 : index
    %c0_83 = arith.constant 0 : index
    %201 = vector.load %arg23[%c0_82, %c0_83] : memref<1x32xf32, #tpu.memory_space<vmem>>, vector<1x32xf32>
    %c0_84 = arith.constant 0 : index
    %c0_85 = arith.constant 0 : index
    %202 = vector.load %arg24[%c0_84, %c0_85] : memref<1x32xf32, #tpu.memory_space<vmem>>, vector<1x32xf32>
    %cst_86 = arith.constant dense<0.000000e+00> : vector<8xf32>
    %203 = vector.multi_reduction <add>, %200, %cst_86 [1] : vector<8x32xf32> to vector<8xf32>
    %204 = vector.shape_cast %203 : vector<8xf32> to vector<8x1xf32>
    %cst_87 = arith.constant 3.200000e+01 : f32
    %205 = vector.broadcast %cst_87 : f32 to vector<8x1xf32>
    %206 = arith.divf %204, %205 : vector<8x1xf32>
    %207 = vector.broadcast %206 : vector<8x1xf32> to vector<8x32xf32>
    %208 = arith.subf %200, %207 : vector<8x32xf32>
    %209 = arith.mulf %208, %208 : vector<8x32xf32>
    %cst_88 = arith.constant dense<0.000000e+00> : vector<8xf32>
    %210 = vector.multi_reduction <add>, %209, %cst_88 [1] : vector<8x32xf32> to vector<8xf32>
    %211 = vector.shape_cast %210 : vector<8xf32> to vector<8x1xf32>
    %cst_89 = arith.constant 3.200000e+01 : f32
    %212 = vector.broadcast %cst_89 : f32 to vector<8x1xf32>
    %213 = arith.divf %211, %212 : vector<8x1xf32>
    %214 = vector.broadcast %206 : vector<8x1xf32> to vector<8x32xf32>
    %215 = arith.subf %200, %214 : vector<8x32xf32>
    %cst_90 = arith.constant 9.99999974E-6 : f32
    %216 = vector.broadcast %cst_90 : f32 to vector<8x1xf32>
    %217 = arith.addf %213, %216 : vector<8x1xf32>
    %218 = math.rsqrt %217 : vector<8x1xf32>
    %219 = vector.broadcast %218 : vector<8x1xf32> to vector<8x32xf32>
    %220 = arith.mulf %215, %219 : vector<8x32xf32>
    %221 = vector.broadcast %201 : vector<1x32xf32> to vector<8x32xf32>
    %222 = arith.mulf %220, %221 : vector<8x32xf32>
    %223 = vector.broadcast %202 : vector<1x32xf32> to vector<8x32xf32>
    %224 = arith.addf %222, %223 : vector<8x32xf32>
    %c0_91 = arith.constant 0 : index
    %c0_92 = arith.constant 0 : index
    %c0_93 = arith.constant 0 : index
    %225 = vector.load %arg25[%c0_91, %c0_92, %c0_93] : memref<1x8x32xf32, #tpu.memory_space<vmem>>, vector<1x8x32xf32>
    %226 = vector.shape_cast %225 : vector<1x8x32xf32> to vector<8x32xf32>
    %227 = vector.shape_cast %224 : vector<8x32xf32> to vector<1x8x32xf32>
    tpu.vector_store %arg25[%c0_91, %c0_92, %c0_93], %227 {strides = array<i32>} : memref<1x8x32xf32, #tpu.memory_space<vmem>>, vector<1x8x32xf32>,
    return
  }
  func.func @transform_0(%arg0: i32) -> (i32, i32, i32) {
    %c0_i32 = arith.constant 0 : i32
    %c0_i32_0 = arith.constant 0 : i32
    %c0_i32_1 = arith.constant 0 : i32
    return %arg0, %c0_i32, %c0_i32_0 : i32, i32, i32
  }
  func.func @transform_1(%arg0: i32) -> (i32, i32, i32) {
    %c0_i32 = arith.constant 0 : i32
    %c0_i32_0 = arith.constant 0 : i32
    %c0_i32_1 = arith.constant 0 : i32
    return %arg0, %c0_i32, %c0_i32_0 : i32, i32, i32
  }
  func.func @transform_2(%arg0: i32) -> (i32, i32) {
    %c0_i32 = arith.constant 0 : i32
    %c0_i32_0 = arith.constant 0 : i32
    %c0_i32_1 = arith.constant 0 : i32
    return %c0_i32, %c0_i32_0 : i32, i32
  }
  func.func @transform_3(%arg0: i32) -> (i32, i32, i32) {
    %c0_i32 = arith.constant 0 : i32
    %c0_i32_0 = arith.constant 0 : i32
    %c0_i32_1 = arith.constant 0 : i32
    return %arg0, %c0_i32, %c0_i32_0 : i32, i32, i32
  }
  func.func @transform_4(%arg0: i32) -> (i32, i32) {
    %c0_i32 = arith.constant 0 : i32
    %c0_i32_0 = arith.constant 0 : i32
    %c0_i32_1 = arith.constant 0 : i32
    return %c0_i32, %c0_i32_0 : i32, i32
  }
  func.func @transform_5(%arg0: i32) -> (i32, i32) {
    %c0_i32 = arith.constant 0 : i32
    %c0_i32_0 = arith.constant 0 : i32
    %c0_i32_1 = arith.constant 0 : i32
    return %c0_i32, %c0_i32_0 : i32, i32
  }
  func.func @transform_6(%arg0: i32) -> (i32, i32) {
    %c0_i32 = arith.constant 0 : i32
    %c0_i32_0 = arith.constant 0 : i32
    %c0_i32_1 = arith.constant 0 : i32
    return %c0_i32, %c0_i32_0 : i32, i32
  }
  func.func @transform_7(%arg0: i32) -> (i32, i32) {
    %c0_i32 = arith.constant 0 : i32
    %c0_i32_0 = arith.constant 0 : i32
    %c0_i32_1 = arith.constant 0 : i32
    return %c0_i32, %c0_i32_0 : i32, i32
  }
  func.func @transform_8(%arg0: i32) -> (i32, i32) {
    %c0_i32 = arith.constant 0 : i32
    %c0_i32_0 = arith.constant 0 : i32
    %c0_i32_1 = arith.constant 0 : i32
    return %c0_i32, %c0_i32_0 : i32, i32
  }
  func.func @transform_9(%arg0: i32) -> (i32, i32) {
    %c0_i32 = arith.constant 0 : i32
    %c0_i32_0 = arith.constant 0 : i32
    %c0_i32_1 = arith.constant 0 : i32
    return %c0_i32, %c0_i32_0 : i32, i32
  }
  func.func @transform_10(%arg0: i32) -> (i32, i32) {
    %c0_i32 = arith.constant 0 : i32
    %c0_i32_0 = arith.constant 0 : i32
    %c0_i32_1 = arith.constant 0 : i32
    return %c0_i32, %c0_i32_0 : i32, i32
  }
  func.func @transform_11(%arg0: i32) -> (i32, i32) {
    %c0_i32 = arith.constant 0 : i32
    %c0_i32_0 = arith.constant 0 : i32
    %c0_i32_1 = arith.constant 0 : i32
    return %c0_i32, %c0_i32_0 : i32, i32
  }
  func.func @transform_12(%arg0: i32) -> (i32, i32) {
    %c0_i32 = arith.constant 0 : i32
    %c0_i32_0 = arith.constant 0 : i32
    %c0_i32_1 = arith.constant 0 : i32
    return %c0_i32, %c0_i32_0 : i32, i32
  }
  func.func @transform_13(%arg0: i32) -> (i32, i32) {
    %c0_i32 = arith.constant 0 : i32
    %c0_i32_0 = arith.constant 0 : i32
    %c0_i32_1 = arith.constant 0 : i32
    return %c0_i32, %c0_i32_0 : i32, i32
  }
  func.func @transform_14(%arg0: i32) -> (i32, i32) {
    %c0_i32 = arith.constant 0 : i32
    %c0_i32_0 = arith.constant 0 : i32
    %c0_i32_1 = arith.constant 0 : i32
    return %c0_i32, %c0_i32_0 : i32, i32
  }
  func.func @transform_15(%arg0: i32) -> (i32, i32) {
    %c0_i32 = arith.constant 0 : i32
    %c0_i32_0 = arith.constant 0 : i32
    %c0_i32_1 = arith.constant 0 : i32
    return %c0_i32, %c0_i32_0 : i32, i32
  }
  func.func @transform_16(%arg0: i32) -> (i32, i32) {
    %c0_i32 = arith.constant 0 : i32
    %c0_i32_0 = arith.constant 0 : i32
    %c0_i32_1 = arith.constant 0 : i32
    return %c0_i32, %c0_i32_0 : i32, i32
  }
  func.func @transform_17(%arg0: i32) -> (i32, i32) {
    %c0_i32 = arith.constant 0 : i32
    %c0_i32_0 = arith.constant 0 : i32
    %c0_i32_1 = arith.constant 0 : i32
    return %c0_i32, %c0_i32_0 : i32, i32
  }
  func.func @transform_18(%arg0: i32) -> (i32, i32) {
    %c0_i32 = arith.constant 0 : i32
    %c0_i32_0 = arith.constant 0 : i32
    %c0_i32_1 = arith.constant 0 : i32
    return %c0_i32, %c0_i32_0 : i32, i32
  }
  func.func @transform_19(%arg0: i32) -> (i32, i32) {
    %c0_i32 = arith.constant 0 : i32
    %c0_i32_0 = arith.constant 0 : i32
    %c0_i32_1 = arith.constant 0 : i32
    return %c0_i32, %c0_i32_0 : i32, i32
  }
  func.func @transform_20(%arg0: i32) -> (i32, i32) {
    %c0_i32 = arith.constant 0 : i32
    %c0_i32_0 = arith.constant 0 : i32
    %c0_i32_1 = arith.constant 0 : i32
    return %c0_i32, %c0_i32_0 : i32, i32
  }
  func.func @transform_21(%arg0: i32) -> (i32, i32) {
    %c0_i32 = arith.constant 0 : i32
    %c0_i32_0 = arith.constant 0 : i32
    %c0_i32_1 = arith.constant 0 : i32
    return %c0_i32, %c0_i32_0 : i32, i32
  }
  func.func @transform_22(%arg0: i32) -> (i32, i32) {
    %c0_i32 = arith.constant 0 : i32
    %c0_i32_0 = arith.constant 0 : i32
    %c0_i32_1 = arith.constant 0 : i32
    return %c0_i32, %c0_i32_0 : i32, i32
  }
  func.func @transform_23(%arg0: i32) -> (i32, i32) {
    %c0_i32 = arith.constant 0 : i32
    %c0_i32_0 = arith.constant 0 : i32
    %c0_i32_1 = arith.constant 0 : i32
    return %c0_i32, %c0_i32_0 : i32, i32
  }
  func.func @transform_24(%arg0: i32) -> (i32, i32, i32) {
    %c0_i32 = arith.constant 0 : i32
    %c0_i32_0 = arith.constant 0 : i32
    %c0_i32_1 = arith.constant 0 : i32
    return %arg0, %c0_i32, %c0_i32_0 : i32, i32, i32
  }
}

module attributes {stable_mosaic.version = 11 : i64} {
  func.func @_enc_layer_kernel(%arg0: i32, %arg1: memref<1x8x32xf32, #tpu.memory_space<vmem>>, %arg2: memref<1x8x8xf32, #tpu.memory_space<vmem>>, %arg3: memref<32x96xbf16, #tpu.memory_space<vmem>>, %arg4: memref<1x96xf32, #tpu.memory_space<vmem>>, %arg5: memref<32x32xbf16, #tpu.memory_space<vmem>>, %arg6: memref<1x32xf32, #tpu.memory_space<vmem>>, %arg7: memref<1x32xf32, #tpu.memory_space<vmem>>, %arg8: memref<1x32xf32, #tpu.memory_space<vmem>>, %arg9: memref<32x64xbf16, #tpu.memory_space<vmem>>, %arg10: memref<1x64xf32, #tpu.memory_space<vmem>>, %arg11: memref<64x32xbf16, #tpu.memory_space<vmem>>, %arg12: memref<1x32xf32, #tpu.memory_space<vmem>>, %arg13: memref<1x32xf32, #tpu.memory_space<vmem>>, %arg14: memref<1x32xf32, #tpu.memory_space<vmem>>, %arg15: memref<1x8x32xf32, #tpu.memory_space<vmem>>) attributes {dimension_semantics = [#tpu.dimension_semantics<parallel>], iteration_bounds = array<i64: 2>, scalar_prefetch = 0 : i64, scratch_operands = 0 : i64, tpu.core_type = #tpu.core_type<tc>, window_params = [{transform_indices = @transform_0, window_bounds = array<i64: 1, 8, 32>}, {transform_indices = @transform_1, window_bounds = array<i64: 1, 8, 8>}, {pipeline_mode = #tpu.pipeline_mode<synchronous>, transform_indices = @transform_2, window_bounds = array<i64: 32, 96>}, {pipeline_mode = #tpu.pipeline_mode<synchronous>, transform_indices = @transform_3, window_bounds = array<i64: 1, 96>}, {pipeline_mode = #tpu.pipeline_mode<synchronous>, transform_indices = @transform_4, window_bounds = array<i64: 32, 32>}, {pipeline_mode = #tpu.pipeline_mode<synchronous>, transform_indices = @transform_5, window_bounds = array<i64: 1, 32>}, {pipeline_mode = #tpu.pipeline_mode<synchronous>, transform_indices = @transform_6, window_bounds = array<i64: 1, 32>}, {pipeline_mode = #tpu.pipeline_mode<synchronous>, transform_indices = @transform_7, window_bounds = array<i64: 1, 32>}, {pipeline_mode = #tpu.pipeline_mode<synchronous>, transform_indices = @transform_8, window_bounds = array<i64: 32, 64>}, {pipeline_mode = #tpu.pipeline_mode<synchronous>, transform_indices = @transform_9, window_bounds = array<i64: 1, 64>}, {pipeline_mode = #tpu.pipeline_mode<synchronous>, transform_indices = @transform_10, window_bounds = array<i64: 64, 32>}, {pipeline_mode = #tpu.pipeline_mode<synchronous>, transform_indices = @transform_11, window_bounds = array<i64: 1, 32>}, {pipeline_mode = #tpu.pipeline_mode<synchronous>, transform_indices = @transform_12, window_bounds = array<i64: 1, 32>}, {pipeline_mode = #tpu.pipeline_mode<synchronous>, transform_indices = @transform_13, window_bounds = array<i64: 1, 32>}, {transform_indices = @transform_14, window_bounds = array<i64: 1, 8, 32>}]} {
    %c0 = arith.constant 0 : index
    %c0_0 = arith.constant 0 : index
    %c0_1 = arith.constant 0 : index
    %0 = vector.load %arg1[%c0, %c0_0, %c0_1] : memref<1x8x32xf32, #tpu.memory_space<vmem>>, vector<1x8x32xf32>
    %1 = vector.shape_cast %0 : vector<1x8x32xf32> to vector<8x32xf32>
    %c0_2 = arith.constant 0 : index
    %c0_3 = arith.constant 0 : index
    %c0_4 = arith.constant 0 : index
    %2 = vector.load %arg2[%c0_2, %c0_3, %c0_4] : memref<1x8x8xf32, #tpu.memory_space<vmem>>, vector<1x8x8xf32>
    %3 = vector.shape_cast %2 : vector<1x8x8xf32> to vector<8x8xf32>
    %c0_5 = arith.constant 0 : index
    %c0_6 = arith.constant 0 : index
    %4 = vector.load %arg3[%c0_5, %c0_6] : memref<32x96xbf16, #tpu.memory_space<vmem>>, vector<32x96xbf16>
    %5 = arith.truncf %1 : vector<8x32xf32> to vector<8x32xbf16>
    %cst = arith.constant dense<0.000000e+00> : vector<8x96xf32>
    %6 = tpu.matmul %5, %4, %cst {dimension_numbers = #tpu.dot_dimension_numbers<[1], [0], [0], [1], [0, 0, 1, 1], [], []>} : vector<8x32xbf16>, vector<32x96xbf16>, vector<8x96xf32> -> vector<8x96xf32>
    %c0_7 = arith.constant 0 : index
    %c0_8 = arith.constant 0 : index
    %7 = vector.load %arg4[%c0_7, %c0_8] : memref<1x96xf32, #tpu.memory_space<vmem>>, vector<1x96xf32>
    %8 = vector.broadcast %7 : vector<1x96xf32> to vector<8x96xf32>
    %9 = arith.addf %6, %8 : vector<8x96xf32>
    %10 = vector.extract_strided_slice %9 {offsets = [0, 0], sizes = [8, 32], strides = [1, 1]} : vector<8x96xf32> to vector<8x32xf32>
    %11 = vector.extract_strided_slice %9 {offsets = [0, 32], sizes = [8, 32], strides = [1, 1]} : vector<8x96xf32> to vector<8x32xf32>
    %12 = vector.extract_strided_slice %9 {offsets = [0, 64], sizes = [8, 32], strides = [1, 1]} : vector<8x96xf32> to vector<8x32xf32>
    %13 = vector.extract_strided_slice %10 {offsets = [0, 0], sizes = [8, 16], strides = [1, 1]} : vector<8x32xf32> to vector<8x16xf32>
    %14 = arith.truncf %13 : vector<8x16xf32> to vector<8x16xbf16>
    %15 = vector.extract_strided_slice %11 {offsets = [0, 0], sizes = [8, 16], strides = [1, 1]} : vector<8x32xf32> to vector<8x16xf32>
    %16 = arith.truncf %15 : vector<8x16xf32> to vector<8x16xbf16>
    %17 = vector.extract_strided_slice %12 {offsets = [0, 0], sizes = [8, 16], strides = [1, 1]} : vector<8x32xf32> to vector<8x16xf32>
    %18 = arith.truncf %17 : vector<8x16xf32> to vector<8x16xbf16>
    %cst_9 = arith.constant dense<0.000000e+00> : vector<8x8xf32>
    %19 = tpu.matmul %14, %16, %cst_9 {dimension_numbers = #tpu.dot_dimension_numbers<[1], [1], [0], [0], [0, 0, 1, 0], [], []>} : vector<8x16xbf16>, vector<8x16xbf16>, vector<8x8xf32> -> vector<8x8xf32>
    %20 = arith.addf %19, %3 : vector<8x8xf32>
    %cst_10 = arith.constant dense<0xFF800000> : vector<8xf32>
    %21 = vector.multi_reduction <maximumf>, %20, %cst_10 [1] : vector<8x8xf32> to vector<8xf32>
    %22 = vector.shape_cast %21 : vector<8xf32> to vector<8x1xf32>
    %23 = vector.broadcast %22 : vector<8x1xf32> to vector<8x8xf32>
    %24 = arith.subf %20, %23 : vector<8x8xf32>
    %25 = math.exp %24 : vector<8x8xf32>
    %cst_11 = arith.constant dense<0.000000e+00> : vector<8xf32>
    %26 = vector.multi_reduction <add>, %25, %cst_11 [1] : vector<8x8xf32> to vector<8xf32>
    %27 = vector.shape_cast %26 : vector<8xf32> to vector<8x1xf32>
    %28 = tpu.reciprocal %27 {approx = true} : vector<8x1xf32> -> vector<8x1xf32>
    %29 = vector.broadcast %28 : vector<8x1xf32> to vector<8x8xf32>
    %30 = arith.mulf %25, %29 : vector<8x8xf32>
    %31 = arith.truncf %30 : vector<8x8xf32> to vector<8x8xbf16>
    %cst_12 = arith.constant dense<0.000000e+00> : vector<8x16xf32>
    %32 = tpu.matmul %31, %18, %cst_12 {dimension_numbers = #tpu.dot_dimension_numbers<[1], [0], [0], [1], [0, 0, 1, 1], [], []>} : vector<8x8xbf16>, vector<8x16xbf16>, vector<8x16xf32> -> vector<8x16xf32>
    %33 = vector.extract_strided_slice %10 {offsets = [0, 16], sizes = [8, 16], strides = [1, 1]} : vector<8x32xf32> to vector<8x16xf32>
    %34 = arith.truncf %33 : vector<8x16xf32> to vector<8x16xbf16>
    %35 = vector.extract_strided_slice %11 {offsets = [0, 16], sizes = [8, 16], strides = [1, 1]} : vector<8x32xf32> to vector<8x16xf32>
    %36 = arith.truncf %35 : vector<8x16xf32> to vector<8x16xbf16>
    %37 = vector.extract_strided_slice %12 {offsets = [0, 16], sizes = [8, 16], strides = [1, 1]} : vector<8x32xf32> to vector<8x16xf32>
    %38 = arith.truncf %37 : vector<8x16xf32> to vector<8x16xbf16>
    %cst_13 = arith.constant dense<0.000000e+00> : vector<8x8xf32>
    %39 = tpu.matmul %34, %36, %cst_13 {dimension_numbers = #tpu.dot_dimension_numbers<[1], [1], [0], [0], [0, 0, 1, 0], [], []>} : vector<8x16xbf16>, vector<8x16xbf16>, vector<8x8xf32> -> vector<8x8xf32>
    %40 = arith.addf %39, %3 : vector<8x8xf32>
    %cst_14 = arith.constant dense<0xFF800000> : vector<8xf32>
    %41 = vector.multi_reduction <maximumf>, %40, %cst_14 [1] : vector<8x8xf32> to vector<8xf32>
    %42 = vector.shape_cast %41 : vector<8xf32> to vector<8x1xf32>
    %43 = vector.broadcast %42 : vector<8x1xf32> to vector<8x8xf32>
    %44 = arith.subf %40, %43 : vector<8x8xf32>
    %45 = math.exp %44 : vector<8x8xf32>
    %cst_15 = arith.constant dense<0.000000e+00> : vector<8xf32>
    %46 = vector.multi_reduction <add>, %45, %cst_15 [1] : vector<8x8xf32> to vector<8xf32>
    %47 = vector.shape_cast %46 : vector<8xf32> to vector<8x1xf32>
    %48 = tpu.reciprocal %47 {approx = true} : vector<8x1xf32> -> vector<8x1xf32>
    %49 = vector.broadcast %48 : vector<8x1xf32> to vector<8x8xf32>
    %50 = arith.mulf %45, %49 : vector<8x8xf32>
    %51 = arith.truncf %50 : vector<8x8xf32> to vector<8x8xbf16>
    %cst_16 = arith.constant dense<0.000000e+00> : vector<8x16xf32>
    %52 = tpu.matmul %51, %38, %cst_16 {dimension_numbers = #tpu.dot_dimension_numbers<[1], [0], [0], [1], [0, 0, 1, 1], [], []>} : vector<8x8xbf16>, vector<8x16xbf16>, vector<8x16xf32> -> vector<8x16xf32>
    %53 = tpu.concatenate %32, %52 in 1 : vector<8x16xf32>, vector<8x16xf32> -> vector<8x32xf32>
    %c0_17 = arith.constant 0 : index
    %c0_18 = arith.constant 0 : index
    %54 = vector.load %arg5[%c0_17, %c0_18] : memref<32x32xbf16, #tpu.memory_space<vmem>>, vector<32x32xbf16>
    %55 = arith.truncf %53 : vector<8x32xf32> to vector<8x32xbf16>
    %cst_19 = arith.constant dense<0.000000e+00> : vector<8x32xf32>
    %56 = tpu.matmul %55, %54, %cst_19 {dimension_numbers = #tpu.dot_dimension_numbers<[1], [0], [0], [1], [0, 0, 1, 1], [], []>} : vector<8x32xbf16>, vector<32x32xbf16>, vector<8x32xf32> -> vector<8x32xf32>
    %57 = arith.addf %1, %56 : vector<8x32xf32>
    %c0_20 = arith.constant 0 : index
    %c0_21 = arith.constant 0 : index
    %58 = vector.load %arg6[%c0_20, %c0_21] : memref<1x32xf32, #tpu.memory_space<vmem>>, vector<1x32xf32>
    %59 = vector.broadcast %58 : vector<1x32xf32> to vector<8x32xf32>
    %60 = arith.addf %57, %59 : vector<8x32xf32>
    %c0_22 = arith.constant 0 : index
    %c0_23 = arith.constant 0 : index
    %61 = vector.load %arg7[%c0_22, %c0_23] : memref<1x32xf32, #tpu.memory_space<vmem>>, vector<1x32xf32>
    %c0_24 = arith.constant 0 : index
    %c0_25 = arith.constant 0 : index
    %62 = vector.load %arg8[%c0_24, %c0_25] : memref<1x32xf32, #tpu.memory_space<vmem>>, vector<1x32xf32>
    %cst_26 = arith.constant dense<0.000000e+00> : vector<8xf32>
    %63 = vector.multi_reduction <add>, %60, %cst_26 [1] : vector<8x32xf32> to vector<8xf32>
    %64 = vector.shape_cast %63 : vector<8xf32> to vector<8x1xf32>
    %cst_27 = arith.constant 3.200000e+01 : f32
    %65 = vector.broadcast %cst_27 : f32 to vector<8x1xf32>
    %66 = arith.divf %64, %65 : vector<8x1xf32>
    %67 = vector.broadcast %66 : vector<8x1xf32> to vector<8x32xf32>
    %68 = arith.subf %60, %67 : vector<8x32xf32>
    %69 = arith.mulf %68, %68 : vector<8x32xf32>
    %cst_28 = arith.constant dense<0.000000e+00> : vector<8xf32>
    %70 = vector.multi_reduction <add>, %69, %cst_28 [1] : vector<8x32xf32> to vector<8xf32>
    %71 = vector.shape_cast %70 : vector<8xf32> to vector<8x1xf32>
    %cst_29 = arith.constant 3.200000e+01 : f32
    %72 = vector.broadcast %cst_29 : f32 to vector<8x1xf32>
    %73 = arith.divf %71, %72 : vector<8x1xf32>
    %74 = vector.broadcast %66 : vector<8x1xf32> to vector<8x32xf32>
    %75 = arith.subf %60, %74 : vector<8x32xf32>
    %cst_30 = arith.constant 9.99999974E-6 : f32
    %76 = vector.broadcast %cst_30 : f32 to vector<8x1xf32>
    %77 = arith.addf %73, %76 : vector<8x1xf32>
    %78 = math.rsqrt %77 : vector<8x1xf32>
    %79 = vector.broadcast %78 : vector<8x1xf32> to vector<8x32xf32>
    %80 = arith.mulf %75, %79 : vector<8x32xf32>
    %81 = vector.broadcast %61 : vector<1x32xf32> to vector<8x32xf32>
    %82 = arith.mulf %80, %81 : vector<8x32xf32>
    %83 = vector.broadcast %62 : vector<1x32xf32> to vector<8x32xf32>
    %84 = arith.addf %82, %83 : vector<8x32xf32>
    %c0_31 = arith.constant 0 : index
    %c0_32 = arith.constant 0 : index
    %85 = vector.load %arg9[%c0_31, %c0_32] : memref<32x64xbf16, #tpu.memory_space<vmem>>, vector<32x64xbf16>
    %86 = arith.truncf %84 : vector<8x32xf32> to vector<8x32xbf16>
    %cst_33 = arith.constant dense<0.000000e+00> : vector<8x64xf32>
    %87 = tpu.matmul %86, %85, %cst_33 {dimension_numbers = #tpu.dot_dimension_numbers<[1], [0], [0], [1], [0, 0, 1, 1], [], []>} : vector<8x32xbf16>, vector<32x64xbf16>, vector<8x64xf32> -> vector<8x64xf32>
    %c0_34 = arith.constant 0 : index
    %c0_35 = arith.constant 0 : index
    %88 = vector.load %arg10[%c0_34, %c0_35] : memref<1x64xf32, #tpu.memory_space<vmem>>, vector<1x64xf32>
    %89 = vector.broadcast %88 : vector<1x64xf32> to vector<8x64xf32>
    %90 = arith.addf %87, %89 : vector<8x64xf32>
    %91 = arith.mulf %90, %90 : vector<8x64xf32>
    %92 = arith.mulf %90, %91 : vector<8x64xf32>
    %cst_36 = arith.constant 4.471500e-02 : f32
    %93 = vector.broadcast %cst_36 : f32 to vector<8x64xf32>
    %94 = arith.mulf %93, %92 : vector<8x64xf32>
    %95 = arith.addf %90, %94 : vector<8x64xf32>
    %cst_37 = arith.constant 0.797884583 : f32
    %96 = vector.broadcast %cst_37 : f32 to vector<8x64xf32>
    %97 = arith.mulf %96, %95 : vector<8x64xf32>
    %98 = math.tanh %97 : vector<8x64xf32>
    %cst_38 = arith.constant 1.000000e+00 : f32
    %99 = vector.broadcast %cst_38 : f32 to vector<8x64xf32>
    %100 = arith.addf %99, %98 : vector<8x64xf32>
    %cst_39 = arith.constant 5.000000e-01 : f32
    %101 = vector.broadcast %cst_39 : f32 to vector<8x64xf32>
    %102 = arith.mulf %101, %100 : vector<8x64xf32>
    %103 = arith.mulf %90, %102 : vector<8x64xf32>
    %c0_40 = arith.constant 0 : index
    %c0_41 = arith.constant 0 : index
    %104 = vector.load %arg11[%c0_40, %c0_41] : memref<64x32xbf16, #tpu.memory_space<vmem>>, vector<64x32xbf16>
    %105 = arith.truncf %103 : vector<8x64xf32> to vector<8x64xbf16>
    %cst_42 = arith.constant dense<0.000000e+00> : vector<8x32xf32>
    %106 = tpu.matmul %105, %104, %cst_42 {dimension_numbers = #tpu.dot_dimension_numbers<[1], [0], [0], [1], [0, 0, 1, 1], [], []>} : vector<8x64xbf16>, vector<64x32xbf16>, vector<8x32xf32> -> vector<8x32xf32>
    %c0_43 = arith.constant 0 : index
    %c0_44 = arith.constant 0 : index
    %107 = vector.load %arg12[%c0_43, %c0_44] : memref<1x32xf32, #tpu.memory_space<vmem>>, vector<1x32xf32>
    %108 = vector.broadcast %107 : vector<1x32xf32> to vector<8x32xf32>
    %109 = arith.addf %106, %108 : vector<8x32xf32>
    %110 = arith.addf %84, %109 : vector<8x32xf32>
    %c0_45 = arith.constant 0 : index
    %c0_46 = arith.constant 0 : index
    %111 = vector.load %arg13[%c0_45, %c0_46] : memref<1x32xf32, #tpu.memory_space<vmem>>, vector<1x32xf32>
    %c0_47 = arith.constant 0 : index
    %c0_48 = arith.constant 0 : index
    %112 = vector.load %arg14[%c0_47, %c0_48] : memref<1x32xf32, #tpu.memory_space<vmem>>, vector<1x32xf32>
    %cst_49 = arith.constant dense<0.000000e+00> : vector<8xf32>
    %113 = vector.multi_reduction <add>, %110, %cst_49 [1] : vector<8x32xf32> to vector<8xf32>
    %114 = vector.shape_cast %113 : vector<8xf32> to vector<8x1xf32>
    %cst_50 = arith.constant 3.200000e+01 : f32
    %115 = vector.broadcast %cst_50 : f32 to vector<8x1xf32>
    %116 = arith.divf %114, %115 : vector<8x1xf32>
    %117 = vector.broadcast %116 : vector<8x1xf32> to vector<8x32xf32>
    %118 = arith.subf %110, %117 : vector<8x32xf32>
    %119 = arith.mulf %118, %118 : vector<8x32xf32>
    %cst_51 = arith.constant dense<0.000000e+00> : vector<8xf32>
    %120 = vector.multi_reduction <add>, %119, %cst_51 [1] : vector<8x32xf32> to vector<8xf32>
    %121 = vector.shape_cast %120 : vector<8xf32> to vector<8x1xf32>
    %cst_52 = arith.constant 3.200000e+01 : f32
    %122 = vector.broadcast %cst_52 : f32 to vector<8x1xf32>
    %123 = arith.divf %121, %122 : vector<8x1xf32>
    %124 = vector.broadcast %116 : vector<8x1xf32> to vector<8x32xf32>
    %125 = arith.subf %110, %124 : vector<8x32xf32>
    %cst_53 = arith.constant 9.99999974E-6 : f32
    %126 = vector.broadcast %cst_53 : f32 to vector<8x1xf32>
    %127 = arith.addf %123, %126 : vector<8x1xf32>
    %128 = math.rsqrt %127 : vector<8x1xf32>
    %129 = vector.broadcast %128 : vector<8x1xf32> to vector<8x32xf32>
    %130 = arith.mulf %125, %129 : vector<8x32xf32>
    %131 = vector.broadcast %111 : vector<1x32xf32> to vector<8x32xf32>
    %132 = arith.mulf %130, %131 : vector<8x32xf32>
    %133 = vector.broadcast %112 : vector<1x32xf32> to vector<8x32xf32>
    %134 = arith.addf %132, %133 : vector<8x32xf32>
    %c0_54 = arith.constant 0 : index
    %c0_55 = arith.constant 0 : index
    %c0_56 = arith.constant 0 : index
    %135 = vector.load %arg15[%c0_54, %c0_55, %c0_56] : memref<1x8x32xf32, #tpu.memory_space<vmem>>, vector<1x8x32xf32>
    %136 = vector.shape_cast %135 : vector<1x8x32xf32> to vector<8x32xf32>
    %137 = vector.shape_cast %134 : vector<8x32xf32> to vector<1x8x32xf32>
    tpu.vector_store %arg15[%c0_54, %c0_55, %c0_56], %137 {strides = array<i32>} : memref<1x8x32xf32, #tpu.memory_space<vmem>>, vector<1x8x32xf32>,
    return
  }
  func.func @transform_0(%arg0: i32) -> (i32, i32, i32) {
    %c0_i32 = arith.constant 0 : i32
    %c0_i32_0 = arith.constant 0 : i32
    %c0_i32_1 = arith.constant 0 : i32
    return %arg0, %c0_i32, %c0_i32_0 : i32, i32, i32
  }
  func.func @transform_1(%arg0: i32) -> (i32, i32, i32) {
    %c0_i32 = arith.constant 0 : i32
    %c0_i32_0 = arith.constant 0 : i32
    %c0_i32_1 = arith.constant 0 : i32
    return %arg0, %c0_i32, %c0_i32_0 : i32, i32, i32
  }
  func.func @transform_2(%arg0: i32) -> (i32, i32) {
    %c0_i32 = arith.constant 0 : i32
    %c0_i32_0 = arith.constant 0 : i32
    %c0_i32_1 = arith.constant 0 : i32
    return %c0_i32, %c0_i32_0 : i32, i32
  }
  func.func @transform_3(%arg0: i32) -> (i32, i32) {
    %c0_i32 = arith.constant 0 : i32
    %c0_i32_0 = arith.constant 0 : i32
    %c0_i32_1 = arith.constant 0 : i32
    return %c0_i32, %c0_i32_0 : i32, i32
  }
  func.func @transform_4(%arg0: i32) -> (i32, i32) {
    %c0_i32 = arith.constant 0 : i32
    %c0_i32_0 = arith.constant 0 : i32
    %c0_i32_1 = arith.constant 0 : i32
    return %c0_i32, %c0_i32_0 : i32, i32
  }
  func.func @transform_5(%arg0: i32) -> (i32, i32) {
    %c0_i32 = arith.constant 0 : i32
    %c0_i32_0 = arith.constant 0 : i32
    %c0_i32_1 = arith.constant 0 : i32
    return %c0_i32, %c0_i32_0 : i32, i32
  }
  func.func @transform_6(%arg0: i32) -> (i32, i32) {
    %c0_i32 = arith.constant 0 : i32
    %c0_i32_0 = arith.constant 0 : i32
    %c0_i32_1 = arith.constant 0 : i32
    return %c0_i32, %c0_i32_0 : i32, i32
  }
  func.func @transform_7(%arg0: i32) -> (i32, i32) {
    %c0_i32 = arith.constant 0 : i32
    %c0_i32_0 = arith.constant 0 : i32
    %c0_i32_1 = arith.constant 0 : i32
    return %c0_i32, %c0_i32_0 : i32, i32
  }
  func.func @transform_8(%arg0: i32) -> (i32, i32) {
    %c0_i32 = arith.constant 0 : i32
    %c0_i32_0 = arith.constant 0 : i32
    %c0_i32_1 = arith.constant 0 : i32
    return %c0_i32, %c0_i32_0 : i32, i32
  }
  func.func @transform_9(%arg0: i32) -> (i32, i32) {
    %c0_i32 = arith.constant 0 : i32
    %c0_i32_0 = arith.constant 0 : i32
    %c0_i32_1 = arith.constant 0 : i32
    return %c0_i32, %c0_i32_0 : i32, i32
  }
  func.func @transform_10(%arg0: i32) -> (i32, i32) {
    %c0_i32 = arith.constant 0 : i32
    %c0_i32_0 = arith.constant 0 : i32
    %c0_i32_1 = arith.constant 0 : i32
    return %c0_i32, %c0_i32_0 : i32, i32
  }
  func.func @transform_11(%arg0: i32) -> (i32, i32) {
    %c0_i32 = arith.constant 0 : i32
    %c0_i32_0 = arith.constant 0 : i32
    %c0_i32_1 = arith.constant 0 : i32
    return %c0_i32, %c0_i32_0 : i32, i32
  }
  func.func @transform_12(%arg0: i32) -> (i32, i32) {
    %c0_i32 = arith.constant 0 : i32
    %c0_i32_0 = arith.constant 0 : i32
    %c0_i32_1 = arith.constant 0 : i32
    return %c0_i32, %c0_i32_0 : i32, i32
  }
  func.func @transform_13(%arg0: i32) -> (i32, i32) {
    %c0_i32 = arith.constant 0 : i32
    %c0_i32_0 = arith.constant 0 : i32
    %c0_i32_1 = arith.constant 0 : i32
    return %c0_i32, %c0_i32_0 : i32, i32
  }
  func.func @transform_14(%arg0: i32) -> (i32, i32, i32) {
    %c0_i32 = arith.constant 0 : i32
    %c0_i32_0 = arith.constant 0 : i32
    %c0_i32_1 = arith.constant 0 : i32
    return %arg0, %c0_i32, %c0_i32_0 : i32, i32, i32
  }
}

module attributes {stable_mosaic.version = 11 : i64} {
  func.func @_lm_head_ce_kernel(%arg0: memref<16x32xf32, #tpu.memory_space<vmem>>, %arg1: memref<32x128xbf16, #tpu.memory_space<vmem>>, %arg2: memref<1x128xf32, #tpu.memory_space<vmem>>, %arg3: memref<16x1xi32, #tpu.memory_space<vmem>>, %arg4: memref<16x128xf32, #tpu.memory_space<vmem>>, %arg5: memref<1x1xf32, #tpu.memory_space<vmem>>) attributes {dimension_semantics = [], scalar_prefetch = 0 : i64, scratch_operands = 0 : i64, tpu.core_type = #tpu.core_type<tc>} {
    %c0 = arith.constant 0 : index
    %c0_0 = arith.constant 0 : index
    %0 = vector.load %arg0[%c0, %c0_0] : memref<16x32xf32, #tpu.memory_space<vmem>>, vector<16x32xf32>
    %c0_1 = arith.constant 0 : index
    %c0_2 = arith.constant 0 : index
    %1 = vector.load %arg1[%c0_1, %c0_2] : memref<32x128xbf16, #tpu.memory_space<vmem>>, vector<32x128xbf16>
    %2 = arith.truncf %0 : vector<16x32xf32> to vector<16x32xbf16>
    %cst = arith.constant dense<0.000000e+00> : vector<16x128xf32>
    %3 = tpu.matmul %2, %1, %cst {dimension_numbers = #tpu.dot_dimension_numbers<[1], [0], [0], [1], [0, 0, 1, 1], [], []>} : vector<16x32xbf16>, vector<32x128xbf16>, vector<16x128xf32> -> vector<16x128xf32>
    %c0_3 = arith.constant 0 : index
    %c0_4 = arith.constant 0 : index
    %4 = vector.load %arg2[%c0_3, %c0_4] : memref<1x128xf32, #tpu.memory_space<vmem>>, vector<1x128xf32>
    %5 = vector.broadcast %4 : vector<1x128xf32> to vector<16x128xf32>
    %6 = arith.addf %3, %5 : vector<16x128xf32>
    %c0_5 = arith.constant 0 : index
    %c0_6 = arith.constant 0 : index
    %7 = vector.load %arg4[%c0_5, %c0_6] : memref<16x128xf32, #tpu.memory_space<vmem>>, vector<16x128xf32>
    tpu.vector_store %arg4[%c0_5, %c0_6], %6 {strides = array<i32>} : memref<16x128xf32, #tpu.memory_space<vmem>>, vector<16x128xf32>,
    %c0_7 = arith.constant 0 : index
    %c0_8 = arith.constant 0 : index
    %8 = vector.load %arg3[%c0_7, %c0_8] : memref<16x1xi32, #tpu.memory_space<vmem>>, vector<16x1xi32>
    %cst_9 = arith.constant dense<0xFF800000> : vector<16xf32>
    %9 = vector.multi_reduction <maximumf>, %6, %cst_9 [1] : vector<16x128xf32> to vector<16xf32>
    %10 = vector.shape_cast %9 : vector<16xf32> to vector<16x1xf32>
    %11 = vector.broadcast %10 : vector<16x1xf32> to vector<16x128xf32>
    %12 = arith.subf %6, %11 : vector<16x128xf32>
    %13 = math.exp %12 : vector<16x128xf32>
    %cst_10 = arith.constant dense<0.000000e+00> : vector<16xf32>
    %14 = vector.multi_reduction <add>, %13, %cst_10 [1] : vector<16x128xf32> to vector<16xf32>
    %15 = vector.shape_cast %14 : vector<16xf32> to vector<16x1xf32>
    %16 = math.log %15 : vector<16x1xf32>
    %17 = arith.addf %16, %10 : vector<16x1xf32>
    %18 = tpu.iota {dimensions = array<i32: 1>} : vector<16x128xi32>
    %19 = vector.broadcast %8 : vector<16x1xi32> to vector<16x128xi32>
    %20 = arith.cmpi eq, %18, %19 : vector<16x128xi32>
    %cst_11 = arith.constant 0.000000e+00 : f32
    %21 = vector.broadcast %cst_11 : f32 to vector<16x128xf32>
    %22 = arith.select %20, %6, %21 : vector<16x128xi1>, vector<16x128xf32>
    %cst_12 = arith.constant dense<0.000000e+00> : vector<16xf32>
    %23 = vector.multi_reduction <add>, %22, %cst_12 [1] : vector<16x128xf32> to vector<16xf32>
    %24 = vector.shape_cast %23 : vector<16xf32> to vector<16x1xf32>
    %c-100_i32 = arith.constant -100 : i32
    %25 = vector.broadcast %c-100_i32 : i32 to vector<16x1xi32>
    %26 = arith.cmpi ne, %8, %25 : vector<16x1xi32>
    %27 = arith.extui %26 : vector<16x1xi1> to vector<16x1xi32>
    %28 = arith.sitofp %27 : vector<16x1xi32> to vector<16x1xf32>
    %29 = arith.subf %17, %24 : vector<16x1xf32>
    %30 = arith.mulf %29, %28 : vector<16x1xf32>
    %31 = vector.shape_cast %28 : vector<16x1xf32> to vector<1x16x1xf32>
    %cst_13 = arith.constant dense<0.000000e+00> : vector<1xf32>
    %32 = vector.multi_reduction <add>, %31, %cst_13 [1, 2] : vector<1x16x1xf32> to vector<1xf32>
    %33 = vector.shape_cast %32 : vector<1xf32> to vector<1x1x1xf32>
    %34 = vector.extract %33[0, 0, 0] : f32 from vector<1x1x1xf32>
    %cst_14 = arith.constant 1.000000e+00 : f32
    %35 = arith.maximumf %34, %cst_14 : f32
    %36 = vector.shape_cast %30 : vector<16x1xf32> to vector<1x16x1xf32>
    %cst_15 = arith.constant dense<0.000000e+00> : vector<1xf32>
    %37 = vector.multi_reduction <add>, %36, %cst_15 [1, 2] : vector<1x16x1xf32> to vector<1xf32>
    %38 = vector.shape_cast %37 : vector<1xf32> to vector<1x1x1xf32>
    %39 = vector.extract %38[0, 0, 0] : f32 from vector<1x1x1xf32>
    %40 = arith.divf %39, %35 : f32
    %41 = vector.broadcast %40 : f32 to vector<1x1xf32>
    %c0_16 = arith.constant 0 : index
    %c0_17 = arith.constant 0 : index
    %42 = vector.load %arg5[%c0_16, %c0_17] : memref<1x1xf32, #tpu.memory_space<vmem>>, vector<1x1xf32>
    tpu.vector_store %arg5[%c0_16, %c0_17], %41 {strides = array<i32>} : memref<1x1xf32, #tpu.memory_space<vmem>>, vector<1x1xf32>,
    return
  }
}

</mosaic_0001>

<llo_original>
// kernel: comment_model_forward.7
$region0: #{comment_model_forward.7}
  #allocation0 [shape = 'u32[]', space=smem, size = 0x4, offset = 0x4, fixed_abs, tag = 'smem constant byte address 0x4 - core index']
  #allocation1 [shape = 'u32[144,128]{1,0:T(1,128)}', space=vmem, size = 0x12000, scoped, tag = 'internal scratch']
  %s0 = inlined_call_operand.vmem [shape: f32[16,32], index: 0, kind: input, shape index: {}]
  %s1 = inlined_call_operand.vmem [shape: f32[1,32], index: 1, kind: input, shape index: {}]
  %s2 = inlined_call_operand.vmem [shape: f32[1,32], index: 2, kind: input, shape index: {}]
  %s3 = inlined_call_operand.vmem [shape: f32[16,32], index: 3, kind: output, shape index: {}]
  %s4 = sld [smem:[#allocation0]]
  $region22: #{comment_model_forward.7} parent=0
    _
  %s6 = ssub.s32 1, %s4
  %s7 = scalar_select 0, %s6, %s4
  // Predicated region
  $region2: #{comment_model_forward.7} parent=0 // pred_check
    _
  $region3: #{comment_model_forward.7} parent=0 // pred_check_branch
    %9 = sbr.rel (0) target = $region5
  $region4: #{comment_model_forward.7} parent=0 // pred_region
    _
  $region5: #{comment_model_forward.7} parent=0 // pred_fallthru
    _
  // Predicated region
  $region6: #{comment_model_forward.7} parent=0 // pred_check
    _
  $region7: #{comment_model_forward.7} parent=0 // pred_check_branch
    %11 = sbr.rel (0) target = $region9
  $region8: #{comment_model_forward.7} parent=0 // pred_region
    _
  $region9: #{comment_model_forward.7} parent=0 // pred_fallthru
    _
  // Predicated region
  $region10: #{comment_model_forward.7} parent=0 // pred_check
    _
  $region11: #{comment_model_forward.7} parent=0 // pred_check_branch
    %13 = sbr.rel (0) target = $region13
  $region12: #{comment_model_forward.7} parent=0 // pred_region
    _
  $region13: #{comment_model_forward.7} parent=0 // pred_fallthru
    _
  %v14 = vld [vmem:[%s0] sm:$0xff]
  %v15 = vld [vmem:[%s0 + $0x8] sm:$0xff]
  %v16 = vld [vmem:[%s1] sm:$0x1]
  %v17 = vld [vmem:[%s2] sm:$0x1]
  %vm18 = vcmask 261120
  %v19 = vsel %vm18, %v14, 0.0
  %20 = vadd.xlane.f32.xlu0 %v19
  %v21 = vpop.xlane.xlu0 %20
  %v22 = vsel %vm18, %v15, 0.0
  %23 = vadd.xlane.f32.xlu0 %v22
  %v24 = vpop.xlane.xlu0 %23
  %v25 = vrcp.pop 32.0
  %v26 = vmul.f32 %v21, %v25
  %v27 = vmul.f32 %v24, %v25
  %v28 = vsub.f32 %v14, %v26
  %v29 = vsub.f32 %v15, %v27
  %v30 = vmul.f32 %v28, %v28
  %v31 = vmul.f32 %v29, %v29
  %v32 = vsel %vm18, %v30, 0.0
  %33 = vadd.xlane.f32.xlu0 %v32
  %v34 = vpop.xlane.xlu0 %33
  %v35 = vsel %vm18, %v31, 0.0
  %36 = vadd.xlane.f32.xlu0 %v35
  %v37 = vpop.xlane.xlu0 %36
  %v38 = vmul.f32 %v34, %v25
  %v39 = vmul.f32 %v37, %v25
  %v40 = vadd.f32 %v38, 1e-05
  %v41 = vadd.f32 %v39, 1e-05
  %v42 = vrsqrt.pop %v40
  %v43 = vrsqrt.pop %v41
  %v44 = vmul.f32 %v28, %v42
  %v45 = vmul.f32 %v29, %v43
  %v47 = vlaneseq
  %v48 = vshrl.u32 %v47, 7
  %v49 = vsub.s32 0, %v48
  %v50 = vrot.slane %v16, %v49
  %v52 = vmul.f32 %v44, %v50
  %v53 = vmul.f32 %v45, %v50
  %v55 = vlaneseq
  %v56 = vshrl.u32 %v55, 7
  %v57 = vsub.s32 0, %v56
  %v58 = vrot.slane %v17, %v57
  %v60 = vadd.f32 %v52, %v58
  %v61 = vadd.f32 %v53, %v58
  %62 = vst.msk [vmem:[%s3] sm:$0xff] %vm18, %v60
  %63 = vst.msk [vmem:[%s3 + $0x8] sm:$0xff] %vm18, %v61
  // Predicated region
  $region14: #{comment_model_forward.7} parent=0 // pred_check
    _
  $region15: #{comment_model_forward.7} parent=0 // pred_check_branch
    %65 = sbr.rel (0) target = $region17
  $region16: #{comment_model_forward.7} parent=0 // pred_region
    _
  $region17: #{comment_model_forward.7} parent=0 // pred_fallthru
    _
  // Predicated region
  $region18: #{comment_model_forward.7} parent=0 // pred_check
    _
  $region19: #{comment_model_forward.7} parent=0 // pred_check_branch
    %67 = sbr.rel (0) target = $region21
  $region20: #{comment_model_forward.7} parent=0 // pred_region
    _
  $region21: #{comment_model_forward.7} parent=0 // pred_fallthru
    _

// kernel: comment_model_forward.9
$region0: #{comment_model_forward.9}
  #allocation0 [shape = 'u32[]', space=smem, size = 0x4, offset = 0x4, fixed_abs, tag = 'smem constant byte address 0x4 - core index']
  #allocation1 [shape = 'u32[144,128]{1,0:T(1,128)}', space=vmem, size = 0x12000, scoped, tag = 'internal scratch']
  %s0 = inlined_call_operand.vmem [shape: f32[16,32], index: 0, kind: input, shape index: {}]
  %s1 = inlined_call_operand.vmem [shape: bf16[32,128], index: 1, kind: input, shape index: {}]
  %s2 = inlined_call_operand.vmem [shape: f32[1,128], index: 2, kind: input, shape index: {}]
  %s3 = inlined_call_operand.vmem [shape: s32[16,1], index: 3, kind: input, shape index: {}]
  %s4 = inlined_call_operand.hbm [shape: f32[16,128], index: 4, kind: output, shape index: {0}]
  %s5 = inlined_call_operand.hbm [shape: f32[1,1], index: 5, kind: output, shape index: {1}]
  %6 = xla_tuple %s4, %s5
  %s7 = sld [smem:[#allocation0]]
  $region34: #{comment_model_forward.9} parent=0
    _
  %s9 = ssub.s32 1, %s7
  %s10 = scalar_select 0, %s9, %s7
  $region1: #{comment_model_forward.9} parent=0
    #allocation2 [shape = 'u8[8192]{0}', space=vmem, size = 0x2000, scoped, tag = 'output window, operand 0, single buffered']
    #allocation3 [shape = 's32[1]{0}', space=sflag, size = 0x4, scoped, tag = 'scoped memory for comment_model_forward.9']
    #allocation4 [shape = 'u8[512]{0}', space=vmem, size = 0x400, scoped, tag = 'output window, operand 1, single buffered']
    #allocation5 [shape = 's32[1]{0}', space=sflag, size = 0x4, scoped, tag = 'scoped memory for comment_model_forward.9']
    %11 = vsyncpa [#allocation3], 0
    %12 = vsyncpa [#allocation5], 0
    // Predicated region
    $region2: #{comment_model_forward.9} parent=1 // pred_check
      _
    $region3: #{comment_model_forward.9} parent=1 // pred_check_branch
      %14 = sbr.rel (0) target = $region5
    $region4: #{comment_model_forward.9} parent=1 // pred_region
      _
    $region5: #{comment_model_forward.9} parent=1 // pred_fallthru
      _
    // Predicated region
    $region6: #{comment_model_forward.9} parent=1 // pred_check
      _
    $region7: #{comment_model_forward.9} parent=1 // pred_check_branch
      %16 = sbr.rel (0) target = $region9
    $region8: #{comment_model_forward.9} parent=1 // pred_region
      _
    $region9: #{comment_model_forward.9} parent=1 // pred_fallthru
      _
    // Predicated region
    $region10: #{comment_model_forward.9} parent=1 // pred_check
      _
    $region11: #{comment_model_forward.9} parent=1 // pred_check_branch
      %18 = sbr.rel (0) target = $region13
    $region12: #{comment_model_forward.9} parent=1 // pred_region
      _
    $region13: #{comment_model_forward.9} parent=1 // pred_fallthru
      _
    // Predicated region
    $region14: #{comment_model_forward.9} parent=1 // pred_check
      _
    $region15: #{comment_model_forward.9} parent=1 // pred_check_branch
      %20 = sbr.rel (0) target = $region17
    $region16: #{comment_model_forward.9} parent=1 // pred_region
      _
    $region17: #{comment_model_forward.9} parent=1 // pred_fallthru
      _
    %v22 = vld [vmem:[%s0] sm:$0xff]
    %v23 = vld [vmem:[%s0 + $0x8] sm:$0xff]
    %v24 = vld [vmem:[%s1] sm:$0xf]
    %v25 = vld [vmem:[%s1 + $0x4] sm:$0xf]
    %v26 = vld [vmem:[%s1 + $0x8] sm:$0xf]
    %v27 = vld [vmem:[%s1 + $0xc] sm:$0xf]
    %v28 = vpack.c.bf16 %v23, %v22
    %v29 = vld [vmem:[%s2] sm:$0x1]
    %v31 = vlaneseq
    %v32 = vshrl.u32 %v31, 7
    %v33 = vsub.s32 0, %v32
    %v34 = vrot.slane %v29, %v33
    %v40 = vunpack.c.l.b16 %v24
    %v41 = vunpack.c.l.b16 %v25
    %v42 = vunpack.c.l.b16 %v26
    %v43 = vunpack.c.l.b16 %v27
    %v44 = vpack.c.b16 %v41, %v40
    %v45 = vpack.c.b16 %v43, %v42
    %vm48 = vcmask 261120
    %v50 = vsel %vm48, %v28, 0
    %52 = vmatprep.subr.bf16.mxu0 0
    %53 = vmatpush1.bf16.msra.mxu0 0
    %54 = vmatprep.subr.bf16.mxu0 0
    %55 = vmatpush1.bf16.msra.mxu0 0
    %56 = vmatprep.subr.bf16.mxu0 0
    %57 = vmatpush1.bf16.msra.mxu0 0
    %58 = vmatprep.subr.bf16.mxu0 0
    %59 = vmatpush1.bf16.msra.mxu0 0
    %60 = vmatprep.subr.bf16.mxu0 0
    %61 = vmatpush1.bf16.msra.mxu0 0
    %62 = vmatprep.subr.bf16.mxu0 0
    %63 = vmatpush1.bf16.msra.mxu0 0
    %64 = vmatprep.subr.bf16.mxu0 0
    %65 = vmatpush1.bf16.msra.mxu0 %v45
    %66 = vmatprep.subr.bf16.mxu0 0
    %67 = vmatpush1.bf16.msra.mxu0 %v44
    %68 = vmatprep.subr.bf16.mxu0 0
    %69 = vmatpush2.bf16.msra.mxu0 0
    %70 = vmatprep.subr.bf16.mxu0 0
    %71 = vmatpush2.bf16.msra.mxu0 0
    %72 = vmatprep.subr.bf16.mxu0 0
    %73 = vmatpush2.bf16.msra.mxu0 0
    %74 = vmatprep.subr.bf16.mxu0 0
    %75 = vmatpush2.bf16.msra.mxu0 0
    %76 = vmatprep.subr.bf16.mxu0 0
    %77 = vmatpush2.bf16.msra.mxu0 0
    %78 = vmatprep.subr.bf16.mxu0 0
    %79 = vmatpush2.bf16.msra.mxu0 0
    %80 = vmatprep.subr.bf16.mxu0 0
    %81 = vmatpush2.bf16.msra.mxu0 0
    %82 = vmatprep.subr.bf16.mxu0 0
    %83 = vmatpush2.bf16.msra.mxu0 0
    %84 = vmatprep.mubr.bf16.mxu0 0
    %85 = vmatmul.mubr.bf16.gmra.mxu0 %v50
    %v86 = vpop.f32.mrf.mxu0
    %v87 = vadd.f32 %v34, %v86
    %v88 = vpop.f32.mrf.mxu0
    %v89 = vpop.f32.mrf.mxu0
    %v90 = vadd.f32 %v34, %v89
    %v91 = vpop.f32.mrf.mxu0
    %92 = vdwg.mxu0
    %93 = vst [vmem:[#allocation2] sm:$0xff] %v87
    %94 = vst [vmem:[#allocation2 + $0x8] sm:$0xff] %v90
    %v95 = vld [vmem:[%s3] sm:$0xff]
    %v96 = vld [vmem:[%s3 + $0x8] sm:$0xff]
    %97 = vmax.xlane.f32.xlu0 %v87
    %v98 = vpop.xlane.xlu0 %97
    %99 = vmax.xlane.f32.xlu0 %v90
    %v100 = vpop.xlane.xlu0 %99
    %v101 = vsub.f32 %v87, %v98
    %v102 = vsub.f32 %v90, %v100
    %v103 = vmul.f32 %v101, 1.442695
    %v104 = vpow.pop %v103
    %v105 = vmul.f32 %v102, 1.442695
    %v106 = vpow.pop %v105
    %107 = vadd.xlane.f32.xlu0 %v104
    %v108 = vpop.xlane.xlu0 %107
    %109 = vadd.xlane.f32.xlu0 %v106
    %v110 = vpop.xlane.xlu0 %109
    %v111 = vlog2.pop %v108
    %v112 = vmul.f32 %v111, 0.6931472
    %v113 = vlog2.pop %v110
    %v114 = vmul.f32 %v113, 0.6931472
    %v115 = vadd.f32 %v112, %v98
    %v116 = vadd.f32 %v114, %v100
    %v117 = vlaneseq
    %v118 = vand.u32 %v117, 127
    %119 = vset.pattern.permute.xlu0 0
    %120 = vperm.xlu0 %119, %v95
    %v121 = vpop.permute.xlu0 %120
    %122 = vset.pattern.permute.xlu0 0
    %123 = vperm.xlu0 %122, %v96
    %v124 = vpop.permute.xlu0 %123
    %vm125 = vcmp.eq.s32.totalorder %v118, %v121
    %vm126 = vcmp.eq.s32.totalorder %v118, %v124
    %v127 = vsel %vm125, %v87, 0.0
    %v128 = vsel %vm126, %v90, 0.0
    %129 = vadd.xlane.f32.xlu0 %v127
    %v130 = vpop.xlane.xlu0 %129
    %131 = vadd.xlane.f32.xlu0 %v128
    %v132 = vpop.xlane.xlu0 %131
    %vm133 = vcmp.ne.s32.totalorder %v95, 4294967196
    %vm134 = vcmp.ne.s32.totalorder %v96, 4294967196
    %v135 = vsel %vm133, 1, 0
    %v136 = vsel %vm134, 1, 0
    %v137 = vcvt.s32.f32 %v135
    %v138 = vcvt.s32.f32 %v136
    %v139 = vsub.f32 %v115, %v130
    %v140 = vsub.f32 %v116, %v132
    %v141 = vmul.f32 %v139, %v137
    %v142 = vmul.f32 %v140, %v138
    %vm143 = vcmask 7168
    %v144 = vsel %vm143, %v137, 0.0
    %v145 = vsel %vm143, %v138, 0.0
    %v146 = vadd.f32 %v144, %v145
    %147 = vadd.xlane.f32.xlu0 %v146
    %v148 = vpop.xlane.xlu0 %147
    %v149 = vrot.slane %v148, 4
    %v150 = vadd.f32 %v148, %v149
    %v151 = vrot.slane %v150, 2
    %v152 = vadd.f32 %v150, %v151
    %v153 = vrot.slane %v152, 1
    %v154 = vadd.f32 %v152, %v153
    %s155 = vtos %v154
    %s156 = smax.f32 %s155, 1.0
    %v157 = vsel %vm143, %v141, 0.0
    %v158 = vsel %vm143, %v142, 0.0
    %v159 = vadd.f32 %v157, %v158
    %160 = vadd.xlane.f32.xlu0 %v159
    %v161 = vpop.xlane.xlu0 %160
    %v162 = vrot.slane %v161, 4
    %v163 = vadd.f32 %v161, %v162
    %v164 = vrot.slane %v163, 2
    %v165 = vadd.f32 %v163, %v164
    %v166 = vrot.slane %v165, 1
    %v167 = vadd.f32 %v165, %v166
    %s168 = vtos %v167
    %v169 = vstv %s156
    %v170 = vrcp.pop %v169
    %s171 = vtos %v170
    %s172 = smul.f32 %s168, %s171
    %v173 = vstv %s172
    %vm174 = vcmask 0
    %175 = vst.msk [vmem:[#allocation4] sm:$0x1] %vm174, %v173
    // Predicated region
    $region18: #{comment_model_forward.9} parent=1 // pred_check
      _
    $region19: #{comment_model_forward.9} parent=1 // pred_check_branch
      %177 = sbr.rel (0) target = $region21
    $region20: #{comment_model_forward.9} parent=1 // pred_region
      %s179 = ssub.s32 256, 256
      %180 = vsyncadd [#allocation3], %s179
      %s181 = sshll.u32 [#allocation2], 4
      %s182 = int_to_ptr.vmem [resolvable:$true] %s181
      %187 = dma.vmem_to_hbm [thread:$0]  %s182, 256, %s4, [#allocation3], 128, 128, 8
    $region21: #{comment_model_forward.9} parent=1 // pred_fallthru
      _
    // Predicated region
    $region22: #{comment_model_forward.9} parent=1 // pred_check
      _
    $region23: #{comment_model_forward.9} parent=1 // pred_check_branch
      %189 = sbr.rel (0) target = $region25
    $region24: #{comment_model_forward.9} parent=1 // pred_region
      %s191 = ssub.s32 16, 16
      %192 = vsyncadd [#allocation5], %s191
      %s194 = sshll.u32 [#allocation4], 4
      %s195 = int_to_ptr.vmem [resolvable:$true] %s194
      %197 = dma.vmem_to_hbm [thread:$0]  %s195, 16, %s5, [#allocation5]
    $region25: #{comment_model_forward.9} parent=1 // pred_fallthru
      _
    // Predicated region
    $region26: #{comment_model_forward.9} parent=1 // pred_check
      _
    $region27: #{comment_model_forward.9} parent=1 // pred_check_branch
      %199 = sbr.rel (0) target = $region29
    $region28: #{comment_model_forward.9} parent=1 // pred_region
      %200 = dma.done [#allocation3], 256
    $region29: #{comment_model_forward.9} parent=1 // pred_fallthru
      _
    // Predicated region
    $region30: #{comment_model_forward.9} parent=1 // pred_check
      _
    $region31: #{comment_model_forward.9} parent=1 // pred_check_branch
      %202 = sbr.rel (0) target = $region33
    $region32: #{comment_model_forward.9} parent=1 // pred_region
      %203 = dma.done [#allocation5], 16
    $region33: #{comment_model_forward.9} parent=1 // pred_fallthru
      _
    %204 = vsyncpa [#allocation3], 1
    %205 = vsyncpa [#allocation5], 1

// kernel: comment_model_forward.6
$region0: #{comment_model_forward.6}
  #allocation0 [shape = 'u32[]', space=smem, size = 0x4, offset = 0x4, fixed_abs, tag = 'smem constant byte address 0x4 - core index']
  #allocation1 [shape = 'u32[144,128]{1,0:T(1,128)}', space=vmem, size = 0x12000, scoped, tag = 'internal scratch']
  %s0 = inlined_call_operand.vmem [shape: f32[2,8,32], index: 0, kind: input, shape index: {}]
  %s1 = inlined_call_operand.vmem [shape: f32[2,8,8], index: 1, kind: input, shape index: {}]
  %s2 = inlined_call_operand.vmem [shape: bf16[32,96], index: 2, kind: input, shape index: {}]
  %s3 = inlined_call_operand.vmem [shape: f32[1,96], index: 3, kind: input, shape index: {}]
  %s4 = inlined_call_operand.vmem [shape: bf16[32,32], index: 4, kind: input, shape index: {}]
  %s5 = inlined_call_operand.vmem [shape: f32[1,32], index: 5, kind: input, shape index: {}]
  %s6 = inlined_call_operand.vmem [shape: f32[1,32], index: 6, kind: input, shape index: {}]
  %s7 = inlined_call_operand.vmem [shape: f32[1,32], index: 7, kind: input, shape index: {}]
  %s8 = inlined_call_operand.vmem [shape: bf16[32,64], index: 8, kind: input, shape index: {}]
  %s9 = inlined_call_operand.vmem [shape: f32[1,64], index: 9, kind: input, shape index: {}]
  %s10 = inlined_call_operand.vmem [shape: bf16[64,32], index: 10, kind: input, shape index: {}]
  %s11 = inlined_call_operand.vmem [shape: f32[1,32], index: 11, kind: input, shape index: {}]
  %s12 = inlined_call_operand.vmem [shape: f32[1,32], index: 12, kind: input, shape index: {}]
  %s13 = inlined_call_operand.vmem [shape: f32[1,32], index: 13, kind: input, shape index: {}]
  %s14 = inlined_call_operand.vmem [shape: f32[2,8,32], index: 14, kind: output, shape index: {}]
  %s15 = sld [smem:[#allocation0]]
  $region89: #{comment_model_forward.6} parent=0
    _
  %s17 = ssub.s32 1, %s15
  %s18 = scalar_select 0, %s17, %s15
  loop: start=0, step=1, limit=4
  $region2: #{comment_model_forward.6} parent=0 // loop_pre_header
    _
  $region3: #{comment_model_forward.6} parent=0 // loop_header
    %s20 = sphi 0, %s24
    %p21 = scmp.ge.s32.totalorder %s20, 4
    %s30 = sphi 0, %s32
    %s33 = sphi 0, %s30
    %s34 = sphi 0, %s33
    %s50 = sphi 0, %s34
    %s56 = sphi 0, %s58
    %s59 = sphi 0, %s56
    %s60 = sphi 0, %s59
    %s76 = sphi 0, %s60
    %s80 = sphi 0, %s80
    %s82 = sphi 0, %s80
    %s83 = sphi 0, %s82
    %s97 = sphi 0, %s83
    %s101 = sphi 0, %s101
    %s103 = sphi 0, %s101
    %s104 = sphi 0, %s103
    %s118 = sphi 0, %s104
    %s122 = sphi 0, %s122
    %s124 = sphi 0, %s122
    %s125 = sphi 0, %s124
    %s139 = sphi 0, %s125
    %s143 = sphi 0, %s143
    %s145 = sphi 0, %s143
    %s146 = sphi 0, %s145
    %s160 = sphi 0, %s146
    %s164 = sphi 0, %s164
    %s166 = sphi 0, %s164
    %s167 = sphi 0, %s166
    %s181 = sphi 0, %s167
    %s185 = sphi 0, %s185
    %s187 = sphi 0, %s185
    %s188 = sphi 0, %s187
    %s202 = sphi 0, %s188
    %s206 = sphi 0, %s206
    %s208 = sphi 0, %s206
    %s209 = sphi 0, %s208
    %s223 = sphi 0, %s209
    %s227 = sphi 0, %s227
    %s229 = sphi 0, %s227
    %s230 = sphi 0, %s229
    %s244 = sphi 0, %s230
    %s248 = sphi 0, %s248
    %s250 = sphi 0, %s248
    %s251 = sphi 0, %s250
    %s265 = sphi 0, %s251
    %s269 = sphi 0, %s269
    %s271 = sphi 0, %s269
    %s272 = sphi 0, %s271
    %s286 = sphi 0, %s272
    %s290 = sphi 0, %s290
    %s292 = sphi 0, %s290
    %s293 = sphi 0, %s292
    %s307 = sphi 0, %s293
    %s311 = sphi 0, %s311
    %s313 = sphi 0, %s311
    %s314 = sphi 0, %s313
    %s328 = sphi 0, %s314
    %s334 = sphi 0, %s336
    %s337 = sphi 0, %s334
    %s338 = sphi 0, %s337
    %s354 = sphi 0, %s338
  $region4: #{comment_model_forward.6} parent=0 // loop_header_branch
    %23 = sbr.rel (%p21) target = $region8
  $region5: #{comment_model_forward.6} parent=0 // loop_body
    %s25 = ssub.s32 %s20, 1
    %s26 = ssub.s32 %s20, 2
    %s27 = sadd.s32 %s20, 1
    %s28 = ssub.s32 %s20, %s27
    %p29 = scmp.eq.s32.totalorder %s28, 0
    %s31 = sadd.s32 %s30, 1
    %s32 = scalar_select %p29, %s30, %s31
    %p35 = pneg %p29
    %p36 = scmp.eq.s32.totalorder %s20, 1
    %p37 = por %p35, %p36
    %p38 = scmp.ne.s32.totalorder %s30, %s33
    %p39 = scmp.eq.s32.totalorder %s20, 0
    %p40 = por %p38, %p39
    %p41 = scmp.ne.s32.totalorder %s30, %s33
    %p42 = scmp.eq.s32.totalorder %s25, 1
    %p43 = por %p41, %p42
    %p44 = scmp.ne.s32.totalorder %s33, %s34
    %p45 = scmp.eq.s32.totalorder %s25, 0
    %p46 = por %p44, %p45
    %p47 = scmp.ne.s32.totalorder %s33, %s34
    %p48 = scmp.eq.s32.totalorder %s26, 1
    %p49 = por %p47, %p48
    %p51 = scmp.ne.s32.totalorder %s34, %s50
    %p52 = scmp.eq.s32.totalorder %s26, 0
    %p53 = por %p51, %p52
    %s54 = ssub.s32 %s20, %s27
    %p55 = scmp.eq.s32.totalorder %s54, 0
    %s57 = sadd.s32 %s56, 1
    %s58 = scalar_select %p55, %s56, %s57
    %p61 = pneg %p55
    %p62 = scmp.eq.s32.totalorder %s20, 1
    %p63 = por %p61, %p62
    %p64 = scmp.ne.s32.totalorder %s56, %s59
    %p65 = scmp.eq.s32.totalorder %s20, 0
    %p66 = por %p64, %p65
    %p67 = scmp.ne.s32.totalorder %s56, %s59
    %p68 = scmp.eq.s32.totalorder %s25, 1
    %p69 = por %p67, %p68
    %p70 = scmp.ne.s32.totalorder %s59, %s60
    %p71 = scmp.eq.s32.totalorder %s25, 0
    %p72 = por %p70, %p71
    %p73 = scmp.ne.s32.totalorder %s59, %s60
    %p74 = scmp.eq.s32.totalorder %s26, 1
    %p75 = por %p73, %p74
    %p77 = scmp.ne.s32.totalorder %s60, %s76
    %p78 = scmp.eq.s32.totalorder %s26, 0
    %p79 = por %p77, %p78
    %s81 = sadd.s32 %s80, 1
    %p84 = scmp.eq.s32.totalorder %s20, 1
    %p85 = scmp.ne.s32.totalorder %s80, %s82
    %p86 = scmp.eq.s32.totalorder %s20, 0
    %p87 = por %p85, %p86
    %p88 = scmp.ne.s32.totalorder %s80, %s82
    %p89 = scmp.eq.s32.totalorder %s25, 1
    %p90 = por %p88, %p89
    %p91 = scmp.ne.s32.totalorder %s82, %s83
    %p92 = scmp.eq.s32.totalorder %s25, 0
    %p93 = por %p91, %p92
    %p94 = scmp.ne.s32.totalorder %s82, %s83
    %p95 = scmp.eq.s32.totalorder %s26, 1
    %p96 = por %p94, %p95
    %p98 = scmp.ne.s32.totalorder %s83, %s97
    %p99 = scmp.eq.s32.totalorder %s26, 0
    %p100 = por %p98, %p99
    %s102 = sadd.s32 %s101, 1
    %p105 = scmp.eq.s32.totalorder %s20, 1
    %p106 = scmp.ne.s32.totalorder %s101, %s103
    %p107 = scmp.eq.s32.totalorder %s20, 0
    %p108 = por %p106, %p107
    %p109 = scmp.ne.s32.totalorder %s101, %s103
    %p110 = scmp.eq.s32.totalorder %s25, 1
    %p111 = por %p109, %p110
    %p112 = scmp.ne.s32.totalorder %s103, %s104
    %p113 = scmp.eq.s32.totalorder %s25, 0
    %p114 = por %p112, %p113
    %p115 = scmp.ne.s32.totalorder %s103, %s104
    %p116 = scmp.eq.s32.totalorder %s26, 1
    %p117 = por %p115, %p116
    %p119 = scmp.ne.s32.totalorder %s104, %s118
    %p120 = scmp.eq.s32.totalorder %s26, 0
    %p121 = por %p119, %p120
    %s123 = sadd.s32 %s122, 1
    %p126 = scmp.eq.s32.totalorder %s20, 1
    %p127 = scmp.ne.s32.totalorder %s122, %s124
    %p128 = scmp.eq.s32.totalorder %s20, 0
    %p129 = por %p127, %p128
    %p130 = scmp.ne.s32.totalorder %s122, %s124
    %p131 = scmp.eq.s32.totalorder %s25, 1
    %p132 = por %p130, %p131
    %p133 = scmp.ne.s32.totalorder %s124, %s125
    %p134 = scmp.eq.s32.totalorder %s25, 0
    %p135 = por %p133, %p134
    %p136 = scmp.ne.s32.totalorder %s124, %s125
    %p137 = scmp.eq.s32.totalorder %s26, 1
    %p138 = por %p136, %p137
    %p140 = scmp.ne.s32.totalorder %s125, %s139
    %p141 = scmp.eq.s32.totalorder %s26, 0
    %p142 = por %p140, %p141
    %s144 = sadd.s32 %s143, 1
    %p147 = scmp.eq.s32.totalorder %s20, 1
    %p148 = scmp.ne.s32.totalorder %s143, %s145
    %p149 = scmp.eq.s32.totalorder %s20, 0
    %p150 = por %p148, %p149
    %p151 = scmp.ne.s32.totalorder %s143, %s145
    %p152 = scmp.eq.s32.totalorder %s25, 1
    %p153 = por %p151, %p152
    %p154 = scmp.ne.s32.totalorder %s145, %s146
    %p155 = scmp.eq.s32.totalorder %s25, 0
    %p156 = por %p154, %p155
    %p157 = scmp.ne.s32.totalorder %s145, %s146
    %p158 = scmp.eq.s32.totalorder %s26, 1
    %p159 = por %p157, %p158
    %p161 = scmp.ne.s32.totalorder %s146, %s160
    %p162 = scmp.eq.s32.totalorder %s26, 0
    %p163 = por %p161, %p162
    %s165 = sadd.s32 %s164, 1
    %p168 = scmp.eq.s32.totalorder %s20, 1
    %p169 = scmp.ne.s32.totalorder %s164, %s166
    %p170 = scmp.eq.s32.totalorder %s20, 0
    %p171 = por %p169, %p170
    %p172 = scmp.ne.s32.totalorder %s164, %s166
    %p173 = scmp.eq.s32.totalorder %s25, 1
    %p174 = por %p172, %p173
    %p175 = scmp.ne.s32.totalorder %s166, %s167
    %p176 = scmp.eq.s32.totalorder %s25, 0
    %p177 = por %p175, %p176
    %p178 = scmp.ne.s32.totalorder %s166, %s167
    %p179 = scmp.eq.s32.totalorder %s26, 1
    %p180 = por %p178, %p179
    %p182 = scmp.ne.s32.totalorder %s167, %s181
    %p183 = scmp.eq.s32.totalorder %s26, 0
    %p184 = por %p182, %p183
    %s186 = sadd.s32 %s185, 1
    %p189 = scmp.eq.s32.totalorder %s20, 1
    %p190 = scmp.ne.s32.totalorder %s185, %s187
    %p191 = scmp.eq.s32.totalorder %s20, 0
    %p192 = por %p190, %p191
    %p193 = scmp.ne.s32.totalorder %s185, %s187
    %p194 = scmp.eq.s32.totalorder %s25, 1
    %p195 = por %p193, %p194
    %p196 = scmp.ne.s32.totalorder %s187, %s188
    %p197 = scmp.eq.s32.totalorder %s25, 0
    %p198 = por %p196, %p197
    %p199 = scmp.ne.s32.totalorder %s187, %s188
    %p200 = scmp.eq.s32.totalorder %s26, 1
    %p201 = por %p199, %p200
    %p203 = scmp.ne.s32.totalorder %s188, %s202
    %p204 = scmp.eq.s32.totalorder %s26, 0
    %p205 = por %p203, %p204
    %s207 = sadd.s32 %s206, 1
    %p210 = scmp.eq.s32.totalorder %s20, 1
    %p211 = scmp.ne.s32.totalorder %s206, %s208
    %p212 = scmp.eq.s32.totalorder %s20, 0
    %p213 = por %p211, %p212
    %p214 = scmp.ne.s32.totalorder %s206, %s208
    %p215 = scmp.eq.s32.totalorder %s25, 1
    %p216 = por %p214, %p215
    %p217 = scmp.ne.s32.totalorder %s208, %s209
    %p218 = scmp.eq.s32.totalorder %s25, 0
    %p219 = por %p217, %p218
    %p220 = scmp.ne.s32.totalorder %s208, %s209
    %p221 = scmp.eq.s32.totalorder %s26, 1
    %p222 = por %p220, %p221
    %p224 = scmp.ne.s32.totalorder %s209, %s223
    %p225 = scmp.eq.s32.totalorder %s26, 0
    %p226 = por %p224, %p225
    %s228 = sadd.s32 %s227, 1
    %p231 = scmp.eq.s32.totalorder %s20, 1
    %p232 = scmp.ne.s32.totalorder %s227, %s229
    %p233 = scmp.eq.s32.totalorder %s20, 0
    %p234 = por %p232, %p233
    %p235 = scmp.ne.s32.totalorder %s227, %s229
    %p236 = scmp.eq.s32.totalorder %s25, 1
    %p237 = por %p235, %p236
    %p238 = scmp.ne.s32.totalorder %s229, %s230
    %p239 = scmp.eq.s32.totalorder %s25, 0
    %p240 = por %p238, %p239
    %p241 = scmp.ne.s32.totalorder %s229, %s230
    %p242 = scmp.eq.s32.totalorder %s26, 1
    %p243 = por %p241, %p242
    %p245 = scmp.ne.s32.totalorder %s230, %s244
    %p246 = scmp.eq.s32.totalorder %s26, 0
    %p247 = por %p245, %p246
    %s249 = sadd.s32 %s248, 1
    %p252 = scmp.eq.s32.totalorder %s20, 1
    %p253 = scmp.ne.s32.totalorder %s248, %s250
    %p254 = scmp.eq.s32.totalorder %s20, 0
    %p255 = por %p253, %p254
    %p256 = scmp.ne.s32.totalorder %s248, %s250
    %p257 = scmp.eq.s32.totalorder %s25, 1
    %p258 = por %p256, %p257
    %p259 = scmp.ne.s32.totalorder %s250, %s251
    %p260 = scmp.eq.s32.totalorder %s25, 0
    %p261 = por %p259, %p260
    %p262 = scmp.ne.s32.totalorder %s250, %s251
    %p263 = scmp.eq.s32.totalorder %s26, 1
    %p264 = por %p262, %p263
    %p266 = scmp.ne.s32.totalorder %s251, %s265
    %p267 = scmp.eq.s32.totalorder %s26, 0
    %p268 = por %p266, %p267
    %s270 = sadd.s32 %s269, 1
    %p273 = scmp.eq.s32.totalorder %s20, 1
    %p274 = scmp.ne.s32.totalorder %s269, %s271
    %p275 = scmp.eq.s32.totalorder %s20, 0
    %p276 = por %p274, %p275
    %p277 = scmp.ne.s32.totalorder %s269, %s271
    %p278 = scmp.eq.s32.totalorder %s25, 1
    %p279 = por %p277, %p278
    %p280 = scmp.ne.s32.totalorder %s271, %s272
    %p281 = scmp.eq.s32.totalorder %s25, 0
    %p282 = por %p280, %p281
    %p283 = scmp.ne.s32.totalorder %s271, %s272
    %p284 = scmp.eq.s32.totalorder %s26, 1
    %p285 = por %p283, %p284
    %p287 = scmp.ne.s32.totalorder %s272, %s286
    %p288 = scmp.eq.s32.totalorder %s26, 0
    %p289 = por %p287, %p288
    %s291 = sadd.s32 %s290, 1
    %p294 = scmp.eq.s32.totalorder %s20, 1
    %p295 = scmp.ne.s32.totalorder %s290, %s292
    %p296 = scmp.eq.s32.totalorder %s20, 0
    %p297 = por %p295, %p296
    %p298 = scmp.ne.s32.totalorder %s290, %s292
    %p299 = scmp.eq.s32.totalorder %s25, 1
    %p300 = por %p298, %p299
    %p301 = scmp.ne.s32.totalorder %s292, %s293
    %p302 = scmp.eq.s32.totalorder %s25, 0
    %p303 = por %p301, %p302
    %p304 = scmp.ne.s32.totalorder %s292, %s293
    %p305 = scmp.eq.s32.totalorder %s26, 1
    %p306 = por %p304, %p305
    %p308 = scmp.ne.s32.totalorder %s293, %s307
    %p309 = scmp.eq.s32.totalorder %s26, 0
    %p310 = por %p308, %p309
    %s312 = sadd.s32 %s311, 1
    %p315 = scmp.eq.s32.totalorder %s20, 1
    %p316 = scmp.ne.s32.totalorder %s311, %s313
    %p317 = scmp.eq.s32.totalorder %s20, 0
    %p318 = por %p316, %p317
    %p319 = scmp.ne.s32.totalorder %s311, %s313
    %p320 = scmp.eq.s32.totalorder %s25, 1
    %p321 = por %p319, %p320
    %p322 = scmp.ne.s32.totalorder %s313, %s314
    %p323 = scmp.eq.s32.totalorder %s25, 0
    %p324 = por %p322, %p323
    %p325 = scmp.ne.s32.totalorder %s313, %s314
    %p326 = scmp.eq.s32.totalorder %s26, 1
    %p327 = por %p325, %p326
    %p329 = scmp.ne.s32.totalorder %s314, %s328
    %p330 = scmp.eq.s32.totalorder %s26, 0
    %p331 = por %p329, %p330
    %s332 = ssub.s32 %s20, %s27
    %p333 = scmp.eq.s32.totalorder %s332, 0
    %s335 = sadd.s32 %s334, 1
    %s336 = scalar_select %p333, %s334, %s335
    %p339 = pneg %p333
    %p340 = scmp.eq.s32.totalorder %s20, 1
    %p341 = por %p339, %p340
    %p342 = scmp.ne.s32.totalorder %s334, %s337
    %p343 = scmp.eq.s32.totalorder %s20, 0
    %p344 = por %p342, %p343
    %p345 = scmp.ne.s32.totalorder %s334, %s337
    %p346 = scmp.eq.s32.totalorder %s25, 1
    %p347 = por %p345, %p346
    %p348 = scmp.ne.s32.totalorder %s337, %s338
    %p349 = scmp.eq.s32.totalorder %s25, 0
    %p350 = por %p348, %p349
    %p351 = scmp.ne.s32.totalorder %s337, %s338
    %p352 = scmp.eq.s32.totalorder %s26, 1
    %p353 = por %p351, %p352
    %p355 = scmp.ne.s32.totalorder %s338, %s354
    %p356 = scmp.eq.s32.totalorder %s26, 0
    %p357 = por %p355, %p356
    %p358 = scmp.le.s32.totalorder 1, %s20
    %p359 = scmp.lt.s32.totalorder %s20, 3
    %p360 = pnand %p358, %p359
    %p361 = pneg %p360
    // Predicated region
    $region9: #{comment_model_forward.6} parent=5 // pred_check
      _
    $region10: #{comment_model_forward.6} parent=5 // pred_check_branch
      %363 = sbr.rel (%p360) target = $region12
    $region11: #{comment_model_forward.6} parent=5 // pred_region
      %s364 = ssub.s32 %s20, 1
      // Predicated region
      $region13: #{comment_model_forward.6} parent=11 // pred_check
        %p365 = pneg %p93
      $region14: #{comment_model_forward.6} parent=11 // pred_check_branch
        %367 = sbr.rel (%p365) target = $region16
      $region15: #{comment_model_forward.6} parent=11 // pred_region
        _
      $region16: #{comment_model_forward.6} parent=11 // pred_fallthru
        _
      // Predicated region
      $region17: #{comment_model_forward.6} parent=11 // pred_check
        %p368 = pneg %p114
      $region18: #{comment_model_forward.6} parent=11 // pred_check_branch
        %370 = sbr.rel (%p368) target = $region20
      $region19: #{comment_model_forward.6} parent=11 // pred_region
        _
      $region20: #{comment_model_forward.6} parent=11 // pred_fallthru
        _
      // Predicated region
      $region21: #{comment_model_forward.6} parent=11 // pred_check
        %p371 = pneg %p135
      $region22: #{comment_model_forward.6} parent=11 // pred_check_branch
        %373 = sbr.rel (%p371) target = $region24
      $region23: #{comment_model_forward.6} parent=11 // pred_region
        _
      $region24: #{comment_model_forward.6} parent=11 // pred_fallthru
        _
      // Predicated region
      $region25: #{comment_model_forward.6} parent=11 // pred_check
        %p374 = pneg %p156
      $region26: #{comment_model_forward.6} parent=11 // pred_check_branch
        %376 = sbr.rel (%p374) target = $region28
      $region27: #{comment_model_forward.6} parent=11 // pred_region
        _
      $region28: #{comment_model_forward.6} parent=11 // pred_fallthru
        _
      // Predicated region
      $region29: #{comment_model_forward.6} parent=11 // pred_check
        %p377 = pneg %p177
      $region30: #{comment_model_forward.6} parent=11 // pred_check_branch
        %379 = sbr.rel (%p377) target = $region32
      $region31: #{comment_model_forward.6} parent=11 // pred_region
        _
      $region32: #{comment_model_forward.6} parent=11 // pred_fallthru
        _
      // Predicated region
      $region33: #{comment_model_forward.6} parent=11 // pred_check
        %p380 = pneg %p198
      $region34: #{comment_model_forward.6} parent=11 // pred_check_branch
        %382 = sbr.rel (%p380) target = $region36
      $region35: #{comment_model_forward.6} parent=11 // pred_region
        _
      $region36: #{comment_model_forward.6} parent=11 // pred_fallthru
        _
      // Predicated region
      $region37: #{comment_model_forward.6} parent=11 // pred_check
        %p383 = pneg %p219
      $region38: #{comment_model_forward.6} parent=11 // pred_check_branch
        %385 = sbr.rel (%p383) target = $region40
      $region39: #{comment_model_forward.6} parent=11 // pred_region
        _
      $region40: #{comment_model_forward.6} parent=11 // pred_fallthru
        _
      // Predicated region
      $region41: #{comment_model_forward.6} parent=11 // pred_check
        %p386 = pneg %p240
      $region42: #{comment_model_forward.6} parent=11 // pred_check_branch
        %388 = sbr.rel (%p386) target = $region44
      $region43: #{comment_model_forward.6} parent=11 // pred_region
        _
      $region44: #{comment_model_forward.6} parent=11 // pred_fallthru
        _
      // Predicated region
      $region45: #{comment_model_forward.6} parent=11 // pred_check
        %p389 = pneg %p261
      $region46: #{comment_model_forward.6} parent=11 // pred_check_branch
        %391 = sbr.rel (%p389) target = $region48
      $region47: #{comment_model_forward.6} parent=11 // pred_region
        _
      $region48: #{comment_model_forward.6} parent=11 // pred_fallthru
        _
      // Predicated region
      $region49: #{comment_model_forward.6} parent=11 // pred_check
        %p392 = pneg %p282
      $region50: #{comment_model_forward.6} parent=11 // pred_check_branch
        %394 = sbr.rel (%p392) target = $region52
      $region51: #{comment_model_forward.6} parent=11 // pred_region
        _
      $region52: #{comment_model_forward.6} parent=11 // pred_fallthru
        _
      // Predicated region
      $region53: #{comment_model_forward.6} parent=11 // pred_check
        %p395 = pneg %p303
      $region54: #{comment_model_forward.6} parent=11 // pred_check_branch
        %397 = sbr.rel (%p395) target = $region56
      $region55: #{comment_model_forward.6} parent=11 // pred_region
        _
      $region56: #{comment_model_forward.6} parent=11 // pred_fallthru
        _
      // Predicated region
      $region57: #{comment_model_forward.6} parent=11 // pred_check
        %p398 = pneg %p324
      $region58: #{comment_model_forward.6} parent=11 // pred_check_branch
        %400 = sbr.rel (%p398) target = $region60
      $region59: #{comment_model_forward.6} parent=11 // pred_region
        _
      $region60: #{comment_model_forward.6} parent=11 // pred_fallthru
        _
    $region12: #{comment_model_forward.6} parent=5 // pred_fallthru
      _
    %p401 = scmp.lt.s32.totalorder %s20, 2
    // Predicated region
    $region61: #{comment_model_forward.6} parent=5 // pred_check
      %p402 = pneg %p401
    $region62: #{comment_model_forward.6} parent=5 // pred_check_branch
      %404 = sbr.rel (%p402) target = $region64
    $region63: #{comment_model_forward.6} parent=5 // pred_region
      // Predicated region
      $region65: #{comment_model_forward.6} parent=63 // pred_check
        %p405 = pneg %p40
      $region66: #{comment_model_forward.6} parent=63 // pred_check_branch
        %407 = sbr.rel (%p405) target = $region68
      $region67: #{comment_model_forward.6} parent=63 // pred_region
        %p408 = scmp.lt.s32.totalorder %s20, 1
        %s409 = scalar_select %p408, %s20, 1
        %s410 = smul.addr %s409, 8
        %s411 = scalar_lea.vmem %s0, %s410
      $region68: #{comment_model_forward.6} parent=63 // pred_fallthru
        _
      // Predicated region
      $region69: #{comment_model_forward.6} parent=63 // pred_check
        %p412 = pneg %p66
      $region70: #{comment_model_forward.6} parent=63 // pred_check_branch
        %414 = sbr.rel (%p412) target = $region72
      $region71: #{comment_model_forward.6} parent=63 // pred_region
        %p415 = scmp.lt.s32.totalorder %s20, 1
        %s416 = scalar_select %p415, %s20, 1
        %s417 = smul.addr %s416, 8
        %s418 = scalar_lea.vmem %s1, %s417
      $region72: #{comment_model_forward.6} parent=63 // pred_fallthru
        _
    $region64: #{comment_model_forward.6} parent=5 // pred_fallthru
      _
    %p419 = scmp.le.s32.totalorder 1, %s20
    %p420 = scmp.lt.s32.totalorder %s20, 3
    %p421 = pnand %p419, %p420
    %p422 = pneg %p421
    // Predicated region
    $region73: #{comment_model_forward.6} parent=5 // pred_check
      _
    $region74: #{comment_model_forward.6} parent=5 // pred_check_branch
      %424 = sbr.rel (%p421) target = $region76
    $region75: #{comment_model_forward.6} parent=5 // pred_region
      %s425 = ssub.s32 %s20, 1
      %p426 = scmp.lt.s32.totalorder %s25, 1
      %s427 = scalar_select %p426, %s25, 1
      %s428 = smul.addr %s427, 8
      %s429 = scalar_lea.vmem %s0, %s428
      %p430 = pneg %p46
      %p431 = pneg %p43
      %p432 = scmp.lt.s32.totalorder %s25, 1
      %s433 = scalar_select %p432, %s25, 1
      %s434 = smul.addr %s433, 8
      %s435 = scalar_lea.vmem %s1, %s434
      %p436 = pneg %p72
      %p437 = pneg %p69
      %p438 = pneg %p93
      %p439 = pneg %p90
      %p440 = pneg %p114
      %p441 = pneg %p111
      %p442 = pneg %p135
      %p443 = pneg %p132
      %p444 = pneg %p156
      %p445 = pneg %p153
      %p446 = pneg %p177
      %p447 = pneg %p174
      %p448 = pneg %p198
      %p449 = pneg %p195
      %p450 = pneg %p219
      %p451 = pneg %p216
      %p452 = pneg %p240
      %p453 = pneg %p237
      %p454 = pneg %p261
      %p455 = pneg %p258
      %p456 = pneg %p282
      %p457 = pneg %p279
      %p458 = pneg %p303
      %p459 = pneg %p300
      %p460 = pneg %p324
      %p461 = pneg %p321
      %p462 = pneg %p350
      %p463 = pneg %p347
      %p464 = scmp.lt.s32.totalorder %s25, 1
      %s465 = scalar_select %p464, %s25, 1
      %s466 = smul.addr %s465, 8
      %s467 = scalar_lea.vmem %s14, %s466
      %p468 = scmp.lt.s32.totalorder %s25, 1
      %s469 = scalar_select %p468, %s25, 1
      %s470 = smul.addr %s469, 8
      %s471 = scalar_lea.vmem %s0, %s470
      %p472 = scmp.lt.s32.totalorder %s25, 1
      %s473 = scalar_select %p472, %s25, 1
      %s474 = smul.addr %s473, 8
      %s475 = scalar_lea.vmem %s1, %s474
      %p476 = scmp.lt.s32.totalorder %s25, 1
      %s477 = scalar_select %p476, %s25, 1
      %s478 = smul.addr %s477, 8
      %s479 = scalar_lea.vmem %s14, %s478
      %v481 = vld [vmem:[%s471] sm:$0xff]
      %v482 = vld [vmem:[%s475] sm:$0xff]
      %v483 = vld [vmem:[%s2] sm:$0xf]
      %v484 = vld [vmem:[%s2 + $0x4] sm:$0xf]
      %v485 = vld [vmem:[%s2 + $0x8] sm:$0xf]
      %v486 = vld [vmem:[%s2 + $0xc] sm:$0xf]
      %v487 = vpack.c.bf16 %v481, %v481
      %v488 = vld [vmem:[%s3] sm:$0x1]
      %v490 = vlaneseq
      %v491 = vshrl.u32 %v490, 7
      %v492 = vsub.s32 0, %v491
      %v493 = vrot.slane %v488, %v492
      %v499 = vunpack.c.l.b16 %v483
      %v500 = vunpack.c.l.b16 %v484
      %v501 = vunpack.c.l.b16 %v485
      %v502 = vunpack.c.l.b16 %v486
      %v503 = vpack.c.b16 %v500, %v499
      %v504 = vpack.c.b16 %v502, %v501
      %vm507 = vcmask 261120
      %v509 = vsel %vm507, %v487, 0
      %511 = vmatprep.subr.bf16.mxu0 0
      %512 = vmatpush1.bf16.msra.mxu0 0
      %513 = vmatprep.subr.bf16.mxu0 0
      %514 = vmatpush1.bf16.msra.mxu0 0
      %515 = vmatprep.subr.bf16.mxu0 0
      %516 = vmatpush1.bf16.msra.mxu0 0
      %517 = vmatprep.subr.bf16.mxu0 0
      %518 = vmatpush1.bf16.msra.mxu0 0
      %519 = vmatprep.subr.bf16.mxu0 0
      %520 = vmatpush1.bf16.msra.mxu0 0
      %521 = vmatprep.subr.bf16.mxu0 0
      %522 = vmatpush1.bf16.msra.mxu0 0
      %523 = vmatprep.subr.bf16.mxu0 0
      %524 = vmatpush1.bf16.msra.mxu0 %v504
      %525 = vmatprep.subr.bf16.mxu0 0
      %526 = vmatpush1.bf16.msra.mxu0 %v503
      %527 = vmatprep.subr.bf16.mxu0 0
      %528 = vmatpush2.bf16.msra.mxu0 0
      %529 = vmatprep.subr.bf16.mxu0 0
      %530 = vmatpush2.bf16.msra.mxu0 0
      %531 = vmatprep.subr.bf16.mxu0 0
      %532 = vmatpush2.bf16.msra.mxu0 0
      %533 = vmatprep.subr.bf16.mxu0 0
      %534 = vmatpush2.bf16.msra.mxu0 0
      %535 = vmatprep.subr.bf16.mxu0 0
      %536 = vmatpush2.bf16.msra.mxu0 0
      %537 = vmatprep.subr.bf16.mxu0 0
      %538 = vmatpush2.bf16.msra.mxu0 0
      %539 = vmatprep.subr.bf16.mxu0 0
      %540 = vmatpush2.bf16.msra.mxu0 0
      %541 = vmatprep.subr.bf16.mxu0 0
      %542 = vmatpush2.bf16.msra.mxu0 0
      %543 = vmatprep.mubr.bf16.mxu0 0
      %544 = vmatmul.mubr.bf16.gmra.mxu0 %v509
      %v545 = vpop.f32.mrf.mxu0
      %v546 = vadd.f32 %v493, %v545
      %v547 = vpop.f32.mrf.mxu0
      %v548 = vpop.f32.mrf.mxu0
      %v549 = vpop.f32.mrf.mxu0
      %550 = vdwg.mxu0
      %v551 = vpack.c.bf16 %v546, %v546
      %553 = vrot.lane.b32.xlu0 %v551, 96
      %v554 = vpop.permute.xlu0 %553
      %vm555 = vcmask 130048
      %v557 = vsel %vm555, %v551, 0
      %v560 = vsel %vm555, %v554, 0
      %562 = vmatprep.subr.bf16.mxu0 0
      %563 = vmatpush1.bf16.xpose.msra.mxu0 0
      %564 = vmatprep.subr.bf16.mxu0 0
      %565 = vmatpush1.bf16.xpose.msra.mxu0 0
      %566 = vmatprep.subr.bf16.mxu0 0
      %567 = vmatpush1.bf16.xpose.msra.mxu0 0
      %568 = vmatprep.subr.bf16.mxu0 0
      %569 = vmatpush1.bf16.xpose.msra.mxu0 0
      %570 = vmatprep.subr.bf16.mxu0 0
      %571 = vmatpush1.bf16.xpose.msra.mxu0 0
      %572 = vmatprep.subr.bf16.mxu0 0
      %573 = vmatpush1.bf16.xpose.msra.mxu0 0
      %574 = vmatprep.subr.bf16.mxu0 0
      %575 = vmatpush1.bf16.xpose.msra.mxu0 0
      %576 = vmatprep.subr.bf16.mxu0 0
      %577 = vmatpush1.bf16.xpose.msra.mxu0 %v560
      %578 = vmatprep.subr.bf16.mxu0 0
      %579 = vmatpush2.bf16.xpose.msra.mxu0 0
      %580 = vmatprep.subr.bf16.mxu0 0
      %581 = vmatpush2.bf16.xpose.msra.mxu0 0
      %582 = vmatprep.subr.bf16.mxu0 0
      %583 = vmatpush2.bf16.xpose.msra.mxu0 0
      %584 = vmatprep.subr.bf16.mxu0 0
      %585 = vmatpush2.bf16.xpose.msra.mxu0 0
      %586 = vmatprep.subr.bf16.mxu0 0
      %587 = vmatpush2.bf16.xpose.msra.mxu0 0
      %588 = vmatprep.subr.bf16.mxu0 0
      %589 = vmatpush2.bf16.xpose.msra.mxu0 0
      %590 = vmatprep.subr.bf16.mxu0 0
      %591 = vmatpush2.bf16.xpose.msra.mxu0 0
      %592 = vmatprep.subr.bf16.mxu0 0
      %593 = vmatpush2.bf16.xpose.msra.mxu0 0
      %594 = vmatprep.mubr.bf16.mxu0 0
      %595 = vmatmul.mubr.bf16.gmra.mxu0 %v557
      %v596 = vpop.f32.mrf.mxu0
      %v597 = vadd.f32 %v482, %v596
      %v598 = vpop.f32.mrf.mxu0
      %v599 = vpop.f32.mrf.mxu0
      %v600 = vpop.f32.mrf.mxu0
      %601 = vdwg.mxu0
      %vm602 = vcmask 64512
      %v603 = vsel %vm602, %v597, -inf
      %604 = vmax.xlane.f32.xlu0 %v603
      %v605 = vpop.xlane.xlu0 %604
      %v606 = vsub.f32 %v597, %v605
      %v607 = vmul.f32 %v606, 1.442695
      %v608 = vpow.pop %v607
      %v609 = vsel %vm602, %v608, 0.0
      %610 = vadd.xlane.f32.xlu0 %v609
      %v611 = vpop.xlane.xlu0 %610
      %v612 = vrcp.pop %v611
      %v613 = vmul.f32 %v608, %v612
      %v614 = vpack.c.bf16 %v613, %v613
      %615 = vrot.lane.b32.xlu0 %v551, 64
      %v616 = vpop.permute.xlu0 %615
      %v618 = vsel %vm602, %v614, 0
      %vm620 = vcmask 1043456
      %v622 = vsel %vm620, %v616, 0
      %624 = vmatprep.subr.bf16.mxu0 0
      %625 = vmatpush1.bf16.msra.mxu0 0
      %626 = vmatprep.subr.bf16.mxu0 0
      %627 = vmatpush1.bf16.msra.mxu0 0
      %628 = vmatprep.subr.bf16.mxu0 0
      %629 = vmatpush1.bf16.msra.mxu0 0
      %630 = vmatprep.subr.bf16.mxu0 0
      %631 = vmatpush1.bf16.msra.mxu0 0
      %632 = vmatprep.subr.bf16.mxu0 0
      %633 = vmatpush1.bf16.msra.mxu0 0
      %634 = vmatprep.subr.bf16.mxu0 0
      %635 = vmatpush1.bf16.msra.mxu0 0
      %636 = vmatprep.subr.bf16.mxu0 0
      %637 = vmatpush1.bf16.msra.mxu0 0
      %638 = vmatprep.subr.bf16.mxu0 0
      %639 = vmatpush1.bf16.msra.mxu0 %v622
      %640 = vmatprep.subr.bf16.mxu0 0
      %641 = vmatpush2.bf16.msra.mxu0 0
      %642 = vmatprep.subr.bf16.mxu0 0
      %643 = vmatpush2.bf16.msra.mxu0 0
      %644 = vmatprep.subr.bf16.mxu0 0
      %645 = vmatpush2.bf16.msra.mxu0 0
      %646 = vmatprep.subr.bf16.mxu0 0
      %647 = vmatpush2.bf16.msra.mxu0 0
      %648 = vmatprep.subr.bf16.mxu0 0
      %649 = vmatpush2.bf16.msra.mxu0 0
      %650 = vmatprep.subr.bf16.mxu0 0
      %651 = vmatpush2.bf16.msra.mxu0 0
      %652 = vmatprep.subr.bf16.mxu0 0
      %653 = vmatpush2.bf16.msra.mxu0 0
      %654 = vmatprep.subr.bf16.mxu0 0
      %655 = vmatpush2.bf16.msra.mxu0 0
      %656 = vmatprep.mubr.bf16.mxu0 0
      %657 = vmatmul.mubr.bf16.gmra.mxu0 %v618
      %v658 = vpop.f32.mrf.mxu0
      %v659 = vadd.f32 0.0, %v658
      %v660 = vpop.f32.mrf.mxu0
      %v661 = vpop.f32.mrf.mxu0
      %v662 = vpop.f32.mrf.mxu0
      %663 = vdwg.mxu0
      %664 = vrot.lane.b32.xlu0 %v551, 112
      %v665 = vpop.permute.xlu0 %664
      %666 = vrot.lane.b32.xlu0 %v551, 80
      %v667 = vpop.permute.xlu0 %666
      %v669 = vsel %vm555, %v665, 0
      %v672 = vsel %vm555, %v667, 0
      %674 = vmatprep.subr.bf16.mxu0 0
      %675 = vmatpush1.bf16.xpose.msra.mxu0 0
      %676 = vmatprep.subr.bf16.mxu0 0
      %677 = vmatpush1.bf16.xpose.msra.mxu0 0
      %678 = vmatprep.subr.bf16.mxu0 0
      %679 = vmatpush1.bf16.xpose.msra.mxu0 0
      %680 = vmatprep.subr.bf16.mxu0 0
      %681 = vmatpush1.bf16.xpose.msra.mxu0 0
      %682 = vmatprep.subr.bf16.mxu0 0
      %683 = vmatpush1.bf16.xpose.msra.mxu0 0
      %684 = vmatprep.subr.bf16.mxu0 0
      %685 = vmatpush1.bf16.xpose.msra.mxu0 0
      %686 = vmatprep.subr.bf16.mxu0 0
      %687 = vmatpush1.bf16.xpose.msra.mxu0 0
      %688 = vmatprep.subr.bf16.mxu0 0
      %689 = vmatpush1.bf16.xpose.msra.mxu0 %v672
      %690 = vmatprep.subr.bf16.mxu0 0
      %691 = vmatpush2.bf16.xpose.msra.mxu0 0
      %692 = vmatprep.subr.bf16.mxu0 0
      %693 = vmatpush2.bf16.xpose.msra.mxu0 0
      %694 = vmatprep.subr.bf16.mxu0 0
      %695 = vmatpush2.bf16.xpose.msra.mxu0 0
      %696 = vmatprep.subr.bf16.mxu0 0
      %697 = vmatpush2.bf16.xpose.msra.mxu0 0
      %698 = vmatprep.subr.bf16.mxu0 0
      %699 = vmatpush2.bf16.xpose.msra.mxu0 0
      %700 = vmatprep.subr.bf16.mxu0 0
      %701 = vmatpush2.bf16.xpose.msra.mxu0 0
      %702 = vmatprep.subr.bf16.mxu0 0
      %703 = vmatpush2.bf16.xpose.msra.mxu0 0
      %704 = vmatprep.subr.bf16.mxu0 0
      %705 = vmatpush2.bf16.xpose.msra.mxu0 0
      %706 = vmatprep.mubr.bf16.mxu0 0
      %707 = vmatmul.mubr.bf16.gmra.mxu0 %v669
      %v708 = vpop.f32.mrf.mxu0
      %v709 = vadd.f32 %v482, %v708
      %v710 = vpop.f32.mrf.mxu0
      %v711 = vpop.f32.mrf.mxu0
      %v712 = vpop.f32.mrf.mxu0
      %713 = vdwg.mxu0
      %v714 = vsel %vm602, %v709, -inf
      %715 = vmax.xlane.f32.xlu0 %v714
      %v716 = vpop.xlane.xlu0 %715
      %v717 = vsub.f32 %v709, %v716
      %v718 = vmul.f32 %v717, 1.442695
      %v719 = vpow.pop %v718
      %v720 = vsel %vm602, %v719, 0.0
      %721 = vadd.xlane.f32.xlu0 %v720
      %v722 = vpop.xlane.xlu0 %721
      %v723 = vrcp.pop %v722
      %v724 = vmul.f32 %v719, %v723
      %v725 = vpack.c.bf16 %v724, %v724
      %726 = vrot.lane.b32.xlu0 %v551, 48
      %v727 = vpop.permute.xlu0 %726
      %v729 = vsel %vm602, %v725, 0
      %v732 = vsel %vm620, %v727, 0
      %734 = vmatprep.subr.bf16.mxu0 0
      %735 = vmatpush1.bf16.msra.mxu0 0
      %736 = vmatprep.subr.bf16.mxu0 0
      %737 = vmatpush1.bf16.msra.mxu0 0
      %738 = vmatprep.subr.bf16.mxu0 0
      %739 = vmatpush1.bf16.msra.mxu0 0
      %740 = vmatprep.subr.bf16.mxu0 0
      %741 = vmatpush1.bf16.msra.mxu0 0
      %742 = vmatprep.subr.bf16.mxu0 0
      %743 = vmatpush1.bf16.msra.mxu0 0
      %744 = vmatprep.subr.bf16.mxu0 0
      %745 = vmatpush1.bf16.msra.mxu0 0
      %746 = vmatprep.subr.bf16.mxu0 0
      %747 = vmatpush1.bf16.msra.mxu0 0
      %748 = vmatprep.subr.bf16.mxu0 0
      %749 = vmatpush1.bf16.msra.mxu0 %v732
      %750 = vmatprep.subr.bf16.mxu0 0
      %751 = vmatpush2.bf16.msra.mxu0 0
      %752 = vmatprep.subr.bf16.mxu0 0
      %753 = vmatpush2.bf16.msra.mxu0 0
      %754 = vmatprep.subr.bf16.mxu0 0
      %755 = vmatpush2.bf16.msra.mxu0 0
      %756 = vmatprep.subr.bf16.mxu0 0
      %757 = vmatpush2.bf16.msra.mxu0 0
      %758 = vmatprep.subr.bf16.mxu0 0
      %759 = vmatpush2.bf16.msra.mxu0 0
      %760 = vmatprep.subr.bf16.mxu0 0
      %761 = vmatpush2.bf16.msra.mxu0 0
      %762 = vmatprep.subr.bf16.mxu0 0
      %763 = vmatpush2.bf16.msra.mxu0 0
      %764 = vmatprep.subr.bf16.mxu0 0
      %765 = vmatpush2.bf16.msra.mxu0 0
      %766 = vmatprep.mubr.bf16.mxu0 0
      %767 = vmatmul.mubr.bf16.gmra.mxu0 %v729
      %v768 = vpop.f32.mrf.mxu0
      %v769 = vadd.f32 0.0, %v768
      %v770 = vpop.f32.mrf.mxu0
      %v771 = vpop.f32.mrf.mxu0
      %v772 = vpop.f32.mrf.mxu0
      %773 = vdwg.mxu0
      %775 = vrot.lane.b32.xlu0 %v769, 16
      %v776 = vpop.permute.xlu0 %775
      %v778 = vsel %vm555, %v659, %v776
      %v779 = vld [vmem:[%s4] sm:$0xf]
      %v780 = vld [vmem:[%s4 + $0x4] sm:$0xf]
      %v781 = vld [vmem:[%s4 + $0x8] sm:$0xf]
      %v782 = vld [vmem:[%s4 + $0xc] sm:$0xf]
      %v783 = vpack.c.bf16 %v778, %v778
      %v788 = vunpack.c.l.b16 %v779
      %v789 = vunpack.c.l.b16 %v780
      %v790 = vunpack.c.l.b16 %v781
      %v791 = vunpack.c.l.b16 %v782
      %v792 = vpack.c.b16 %v789, %v788
      %v793 = vpack.c.b16 %v791, %v790
      %v797 = vsel %vm507, %v783, 0
      %799 = vmatprep.subr.bf16.mxu0 0
      %800 = vmatpush1.bf16.msra.mxu0 0
      %801 = vmatprep.subr.bf16.mxu0 0
      %802 = vmatpush1.bf16.msra.mxu0 0
      %803 = vmatprep.subr.bf16.mxu0 0
      %804 = vmatpush1.bf16.msra.mxu0 0
      %805 = vmatprep.subr.bf16.mxu0 0
      %806 = vmatpush1.bf16.msra.mxu0 0
      %807 = vmatprep.subr.bf16.mxu0 0
      %808 = vmatpush1.bf16.msra.mxu0 0
      %809 = vmatprep.subr.bf16.mxu0 0
      %810 = vmatpush1.bf16.msra.mxu0 0
      %811 = vmatprep.subr.bf16.mxu0 0
      %812 = vmatpush1.bf16.msra.mxu0 %v793
      %813 = vmatprep.subr.bf16.mxu0 0
      %814 = vmatpush1.bf16.msra.mxu0 %v792
      %815 = vmatprep.subr.bf16.mxu0 0
      %816 = vmatpush2.bf16.msra.mxu0 0
      %817 = vmatprep.subr.bf16.mxu0 0
      %818 = vmatpush2.bf16.msra.mxu0 0
      %819 = vmatprep.subr.bf16.mxu0 0
      %820 = vmatpush2.bf16.msra.mxu0 0
      %821 = vmatprep.subr.bf16.mxu0 0
      %822 = vmatpush2.bf16.msra.mxu0 0
      %823 = vmatprep.subr.bf16.mxu0 0
      %824 = vmatpush2.bf16.msra.mxu0 0
      %825 = vmatprep.subr.bf16.mxu0 0
      %826 = vmatpush2.bf16.msra.mxu0 0
      %827 = vmatprep.subr.bf16.mxu0 0
      %828 = vmatpush2.bf16.msra.mxu0 0
      %829 = vmatprep.subr.bf16.mxu0 0
      %830 = vmatpush2.bf16.msra.mxu0 0
      %831 = vmatprep.mubr.bf16.mxu0 0
      %832 = vmatmul.mubr.bf16.gmra.mxu0 %v797
      %v833 = vpop.f32.mrf.mxu0
      %v834 = vadd.f32 0.0, %v833
      %v835 = vpop.f32.mrf.mxu0
      %v836 = vpop.f32.mrf.mxu0
      %v837 = vpop.f32.mrf.mxu0
      %838 = vdwg.mxu0
      %v839 = vadd.f32 %v481, %v834
      %v840 = vld [vmem:[%s5] sm:$0x1]
      %v842 = vlaneseq
      %v843 = vshrl.u32 %v842, 7
      %v844 = vsub.s32 0, %v843
      %v845 = vrot.slane %v840, %v844
      %v847 = vadd.f32 %v839, %v845
      %v848 = vld [vmem:[%s6] sm:$0x1]
      %v849 = vld [vmem:[%s7] sm:$0x1]
      %v850 = vsel %vm507, %v847, 0.0
      %851 = vadd.xlane.f32.xlu0 %v850
      %v852 = vpop.xlane.xlu0 %851
      %v853 = vrcp.pop 32.0
      %v854 = vmul.f32 %v852, %v853
      %v855 = vsub.f32 %v847, %v854
      %v856 = vmul.f32 %v855, %v855
      %v857 = vsel %vm507, %v856, 0.0
      %858 = vadd.xlane.f32.xlu0 %v857
      %v859 = vpop.xlane.xlu0 %858
      %v860 = vmul.f32 %v859, %v853
      %v861 = vadd.f32 %v860, 1e-05
      %v862 = vrsqrt.pop %v861
      %v863 = vmul.f32 %v855, %v862
      %v865 = vlaneseq
      %v866 = vshrl.u32 %v865, 7
      %v867 = vsub.s32 0, %v866
      %v868 = vrot.slane %v848, %v867
      %v870 = vmul.f32 %v863, %v868
      %v872 = vlaneseq
      %v873 = vshrl.u32 %v872, 7
      %v874 = vsub.s32 0, %v873
      %v875 = vrot.slane %v849, %v874
      %v877 = vadd.f32 %v870, %v875
      %v878 = vld [vmem:[%s8] sm:$0xf]
      %v879 = vld [vmem:[%s8 + $0x4] sm:$0xf]
      %v880 = vld [vmem:[%s8 + $0x8] sm:$0xf]
      %v881 = vld [vmem:[%s8 + $0xc] sm:$0xf]
      %v882 = vpack.c.bf16 %v877, %v877
      %v883 = vld [vmem:[%s9] sm:$0x1]
      %v885 = vlaneseq
      %v886 = vshrl.u32 %v885, 7
      %v887 = vsub.s32 0, %v886
      %v888 = vrot.slane %v883, %v887
      %v894 = vunpack.c.l.b16 %v878
      %v895 = vunpack.c.l.b16 %v879
      %v896 = vunpack.c.l.b16 %v880
      %v897 = vunpack.c.l.b16 %v881
      %v898 = vpack.c.b16 %v895, %v894
      %v899 = vpack.c.b16 %v897, %v896
      %v903 = vsel %vm507, %v882, 0
      %905 = vmatprep.subr.bf16.mxu0 0
      %906 = vmatpush1.bf16.msra.mxu0 0
      %907 = vmatprep.subr.bf16.mxu0 0
      %908 = vmatpush1.bf16.msra.mxu0 0
      %909 = vmatprep.subr.bf16.mxu0 0
      %910 = vmatpush1.bf16.msra.mxu0 0
      %911 = vmatprep.subr.bf16.mxu0 0
      %912 = vmatpush1.bf16.msra.mxu0 0
      %913 = vmatprep.subr.bf16.mxu0 0
      %914 = vmatpush1.bf16.msra.mxu0 0
      %915 = vmatprep.subr.bf16.mxu0 0
      %916 = vmatpush1.bf16.msra.mxu0 0
      %917 = vmatprep.subr.bf16.mxu0 0
      %918 = vmatpush1.bf16.msra.mxu0 %v899
      %919 = vmatprep.subr.bf16.mxu0 0
      %920 = vmatpush1.bf16.msra.mxu0 %v898
      %921 = vmatprep.subr.bf16.mxu0 0
      %922 = vmatpush2.bf16.msra.mxu0 0
      %923 = vmatprep.subr.bf16.mxu0 0
      %924 = vmatpush2.bf16.msra.mxu0 0
      %925 = vmatprep.subr.bf16.mxu0 0
      %926 = vmatpush2.bf16.msra.mxu0 0
      %927 = vmatprep.subr.bf16.mxu0 0
      %928 = vmatpush2.bf16.msra.mxu0 0
      %929 = vmatprep.subr.bf16.mxu0 0
      %930 = vmatpush2.bf16.msra.mxu0 0
      %931 = vmatprep.subr.bf16.mxu0 0
      %932 = vmatpush2.bf16.msra.mxu0 0
      %933 = vmatprep.subr.bf16.mxu0 0
      %934 = vmatpush2.bf16.msra.mxu0 0
      %935 = vmatprep.subr.bf16.mxu0 0
      %936 = vmatpush2.bf16.msra.mxu0 0
      %937 = vmatprep.mubr.bf16.mxu0 0
      %938 = vmatmul.mubr.bf16.gmra.mxu0 %v903
      %v939 = vpop.f32.mrf.mxu0
      %v940 = vadd.f32 %v888, %v939
      %v941 = vpop.f32.mrf.mxu0
      %v942 = vpop.f32.mrf.mxu0
      %v943 = vpop.f32.mrf.mxu0
      %944 = vdwg.mxu0
      %v945 = vmul.f32 %v940, %v940
      %v946 = vmul.f32 %v940, %v945
      %v947 = vmul.f32 %v946, 0.044715
      %v948 = vadd.f32 %v940, %v947
      %v949 = vmul.f32 %v948, 0.7978846
      %v950 = vtanh.pop %v949
      %v951 = vadd.f32 %v950, 1.0
      %v952 = vmul.f32 %v951, 0.5
      %v953 = vmul.f32 %v940, %v952
      %v954 = vld [vmem:[%s10] sm:$0xf]
      %v955 = vld [vmem:[%s10 + $0x4] sm:$0xf]
      %v956 = vld [vmem:[%s10 + $0x8] sm:$0xf]
      %v957 = vld [vmem:[%s10 + $0xc] sm:$0xf]
      %v958 = vld [vmem:[%s10 + $0x10] sm:$0xf]
      %v959 = vld [vmem:[%s10 + $0x14] sm:$0xf]
      %v960 = vld [vmem:[%s10 + $0x18] sm:$0xf]
      %v961 = vld [vmem:[%s10 + $0x1c] sm:$0xf]
      %v962 = vpack.c.bf16 %v953, %v953
      %v963 = vld [vmem:[%s11] sm:$0x1]
      %v965 = vlaneseq
      %v966 = vshrl.u32 %v965, 7
      %v967 = vsub.s32 0, %v966
      %v968 = vrot.slane %v963, %v967
      %v978 = vunpack.c.l.b16 %v954
      %v979 = vunpack.c.l.b16 %v955
      %v980 = vunpack.c.l.b16 %v956
      %v981 = vunpack.c.l.b16 %v957
      %v982 = vunpack.c.l.b16 %v958
      %v983 = vunpack.c.l.b16 %v959
      %v984 = vunpack.c.l.b16 %v960
      %v985 = vunpack.c.l.b16 %v961
      %v986 = vpack.c.b16 %v979, %v978
      %v987 = vpack.c.b16 %v981, %v980
      %v988 = vpack.c.b16 %v983, %v982
      %v989 = vpack.c.b16 %v985, %v984
      %vm994 = vcmask 523264
      %v996 = vsel %vm994, %v962, 0
      %998 = vmatprep.subr.bf16.mxu0 0
      %999 = vmatpush1.bf16.msra.mxu0 0
      %1000 = vmatprep.subr.bf16.mxu0 0
      %1001 = vmatpush1.bf16.msra.mxu0 0
      %1002 = vmatprep.subr.bf16.mxu0 0
      %1003 = vmatpush1.bf16.msra.mxu0 0
      %1004 = vmatprep.subr.bf16.mxu0 0
      %1005 = vmatpush1.bf16.msra.mxu0 0
      %1006 = vmatprep.subr.bf16.mxu0 0
      %1007 = vmatpush1.bf16.msra.mxu0 %v989
      %1008 = vmatprep.subr.bf16.mxu0 0
      %1009 = vmatpush1.bf16.msra.mxu0 %v988
      %1010 = vmatprep.subr.bf16.mxu0 0
      %1011 = vmatpush1.bf16.msra.mxu0 %v987
      %1012 = vmatprep.subr.bf16.mxu0 0
      %1013 = vmatpush1.bf16.msra.mxu0 %v986
      %1014 = vmatprep.subr.bf16.mxu0 0
      %1015 = vmatpush2.bf16.msra.mxu0 0
      %1016 = vmatprep.subr.bf16.mxu0 0
      %1017 = vmatpush2.bf16.msra.mxu0 0
      %1018 = vmatprep.subr.bf16.mxu0 0
      %1019 = vmatpush2.bf16.msra.mxu0 0
      %1020 = vmatprep.subr.bf16.mxu0 0
      %1021 = vmatpush2.bf16.msra.mxu0 0
      %1022 = vmatprep.subr.bf16.mxu0 0
      %1023 = vmatpush2.bf16.msra.mxu0 0
      %1024 = vmatprep.subr.bf16.mxu0 0
      %1025 = vmatpush2.bf16.msra.mxu0 0
      %1026 = vmatprep.subr.bf16.mxu0 0
      %1027 = vmatpush2.bf16.msra.mxu0 0
      %1028 = vmatprep.subr.bf16.mxu0 0
      %1029 = vmatpush2.bf16.msra.mxu0 0
      %1030 = vmatprep.mubr.bf16.mxu0 0
      %1031 = vmatmul.mubr.bf16.gmra.mxu0 %v996
      %v1032 = vpop.f32.mrf.mxu0
      %v1033 = vadd.f32 %v968, %v1032
      %v1034 = vpop.f32.mrf.mxu0
      %v1035 = vpop.f32.mrf.mxu0
      %v1036 = vpop.f32.mrf.mxu0
      %1037 = vdwg.mxu0
      %v1038 = vadd.f32 %v877, %v1033
      %v1039 = vld [vmem:[%s12] sm:$0x1]
      %v1040 = vld [vmem:[%s13] sm:$0x1]
      %v1041 = vsel %vm507, %v1038, 0.0
      %1042 = vadd.xlane.f32.xlu0 %v1041
      %v1043 = vpop.xlane.xlu0 %1042
      %v1044 = vmul.f32 %v1043, %v853
      %v1045 = vsub.f32 %v1038, %v1044
      %v1046 = vmul.f32 %v1045, %v1045
      %v1047 = vsel %vm507, %v1046, 0.0
      %1048 = vadd.xlane.f32.xlu0 %v1047
      %v1049 = vpop.xlane.xlu0 %1048
      %v1050 = vmul.f32 %v1049, %v853
      %v1051 = vadd.f32 %v1050, 1e-05
      %v1052 = vrsqrt.pop %v1051
      %v1053 = vmul.f32 %v1045, %v1052
      %v1055 = vlaneseq
      %v1056 = vshrl.u32 %v1055, 7
      %v1057 = vsub.s32 0, %v1056
      %v1058 = vrot.slane %v1039, %v1057
      %v1060 = vmul.f32 %v1053, %v1058
      %v1062 = vlaneseq
      %v1063 = vshrl.u32 %v1062, 7
      %v1064 = vsub.s32 0, %v1063
      %v1065 = vrot.slane %v1040, %v1064
      %v1067 = vadd.f32 %v1060, %v1065
      %1068 = vst.msk [vmem:[%s479] sm:$0xff] %vm507, %v1067
      %p1069 = scmp.lt.s32.totalorder %s25, 1
      %s1070 = scalar_select %p1069, %s25, 1
      %s1071 = smul.addr %s1070, 8
      %s1072 = scalar_lea.vmem %s14, %s1071
      // Predicated region
      $region77: #{comment_model_forward.6} parent=75 // pred_check
        %p1073 = pneg %p347
      $region78: #{comment_model_forward.6} parent=75 // pred_check_branch
        %1075 = sbr.rel (%p1073) target = $region80
      $region79: #{comment_model_forward.6} parent=75 // pred_region
        _
      $region80: #{comment_model_forward.6} parent=75 // pred_fallthru
        _
    $region76: #{comment_model_forward.6} parent=5 // pred_fallthru
      _
    %p1076 = scmp.le.s32.totalorder 2, %s20
    // Predicated region
    $region81: #{comment_model_forward.6} parent=5 // pred_check
      %p1077 = pneg %p1076
    $region82: #{comment_model_forward.6} parent=5 // pred_check_branch
      %1079 = sbr.rel (%p1077) target = $region84
    $region83: #{comment_model_forward.6} parent=5 // pred_region
      %s1080 = ssub.s32 %s20, 2
      // Predicated region
      $region85: #{comment_model_forward.6} parent=83 // pred_check
        %p1081 = pneg %p353
      $region86: #{comment_model_forward.6} parent=83 // pred_check_branch
        %1083 = sbr.rel (%p1081) target = $region88
      $region87: #{comment_model_forward.6} parent=83 // pred_region
        %p1084 = scmp.lt.s32.totalorder %s26, 1
        %s1085 = scalar_select %p1084, %s26, 1
        %s1086 = smul.addr %s1085, 8
        %s1087 = scalar_lea.vmem %s14, %s1086
      $region88: #{comment_model_forward.6} parent=83 // pred_fallthru
        _
    $region84: #{comment_model_forward.6} parent=5 // pred_fallthru
      _
  $region6: #{comment_model_forward.6} parent=0 // loop_footer
    %s24 = sadd.s32 1, %s20
  $region7: #{comment_model_forward.6} parent=0 // loop_footer_branch
    %19 = sbr.rel target = $region3
  $region8: #{comment_model_forward.6} parent=0 // loop_exit
    _

// kernel: comment_model_forward.8
$region0: #{comment_model_forward.8}
  #allocation0 [shape = 'u32[]', space=smem, size = 0x4, offset = 0x4, fixed_abs, tag = 'smem constant byte address 0x4 - core index']
  #allocation1 [shape = 'u32[144,128]{1,0:T(1,128)}', space=vmem, size = 0x12000, scoped, tag = 'internal scratch']
  %s0 = inlined_call_operand.vmem [shape: f32[2,8,32], index: 0, kind: input, shape index: {}]
  %s1 = inlined_call_operand.vmem [shape: f32[2,8,32], index: 1, kind: input, shape index: {}]
  %s2 = inlined_call_operand.vmem [shape: f32[8,8], index: 2, kind: input, shape index: {}]
  %s3 = inlined_call_operand.vmem [shape: f32[2,8,8], index: 3, kind: input, shape index: {}]
  %s4 = inlined_call_operand.vmem [shape: bf16[32,96], index: 4, kind: input, shape index: {}]
  %s5 = inlined_call_operand.vmem [shape: f32[1,96], index: 5, kind: input, shape index: {}]
  %s6 = inlined_call_operand.vmem [shape: bf16[32,32], index: 6, kind: input, shape index: {}]
  %s7 = inlined_call_operand.vmem [shape: f32[1,32], index: 7, kind: input, shape index: {}]
  %s8 = inlined_call_operand.vmem [shape: f32[1,32], index: 8, kind: input, shape index: {}]
  %s9 = inlined_call_operand.vmem [shape: f32[1,32], index: 9, kind: input, shape index: {}]
  %s10 = inlined_call_operand.vmem [shape: bf16[32,32], index: 10, kind: input, shape index: {}]
  %s11 = inlined_call_operand.vmem [shape: f32[1,32], index: 11, kind: input, shape index: {}]
  %s12 = inlined_call_operand.vmem [shape: bf16[32,64], index: 12, kind: input, shape index: {}]
  %s13 = inlined_call_operand.vmem [shape: f32[1,64], index: 13, kind: input, shape index: {}]
  %s14 = inlined_call_operand.vmem [shape: bf16[32,32], index: 14, kind: input, shape index: {}]
  %s15 = inlined_call_operand.vmem [shape: f32[1,32], index: 15, kind: input, shape index: {}]
  %s16 = inlined_call_operand.vmem [shape: f32[1,32], index: 16, kind: input, shape index: {}]
  %s17 = inlined_call_operand.vmem [shape: f32[1,32], index: 17, kind: input, shape index: {}]
  %s18 = inlined_call_operand.vmem [shape: bf16[32,64], index: 18, kind: input, shape index: {}]
  %s19 = inlined_call_operand.vmem [shape: f32[1,64], index: 19, kind: input, shape index: {}]
  %s20 = inlined_call_operand.vmem [shape: bf16[64,32], index: 20, kind: input, shape index: {}]
  %s21 = inlined_call_operand.vmem [shape: f32[1,32], index: 21, kind: input, shape index: {}]
  %s22 = inlined_call_operand.vmem [shape: f32[1,32], index: 22, kind: input, shape index: {}]
  %s23 = inlined_call_operand.vmem [shape: f32[1,32], index: 23, kind: input, shape index: {}]
  %s24 = inlined_call_operand.vmem [shape: f32[2,8,32], index: 24, kind: output, shape index: {}]
  %s25 = sld [smem:[#allocation0]]
  $region129: #{comment_model_forward.8} parent=0
    _
  %s27 = ssub.s32 1, %s25
  %s28 = scalar_select 0, %s27, %s25
  loop: start=0, step=1, limit=4
  $region2: #{comment_model_forward.8} parent=0 // loop_pre_header
    _
  $region3: #{comment_model_forward.8} parent=0 // loop_header
    %s30 = sphi 0, %s34
    %p31 = scmp.ge.s32.totalorder %s30, 4
    %s40 = sphi 0, %s42
    %s43 = sphi 0, %s40
    %s44 = sphi 0, %s43
    %s60 = sphi 0, %s44
    %s66 = sphi 0, %s68
    %s69 = sphi 0, %s66
    %s70 = sphi 0, %s69
    %s86 = sphi 0, %s70
    %s90 = sphi 0, %s90
    %s92 = sphi 0, %s90
    %s93 = sphi 0, %s92
    %s107 = sphi 0, %s93
    %s113 = sphi 0, %s115
    %s116 = sphi 0, %s113
    %s117 = sphi 0, %s116
    %s133 = sphi 0, %s117
    %s137 = sphi 0, %s137
    %s139 = sphi 0, %s137
    %s140 = sphi 0, %s139
    %s154 = sphi 0, %s140
    %s158 = sphi 0, %s158
    %s160 = sphi 0, %s158
    %s161 = sphi 0, %s160
    %s175 = sphi 0, %s161
    %s179 = sphi 0, %s179
    %s181 = sphi 0, %s179
    %s182 = sphi 0, %s181
    %s196 = sphi 0, %s182
    %s200 = sphi 0, %s200
    %s202 = sphi 0, %s200
    %s203 = sphi 0, %s202
    %s217 = sphi 0, %s203
    %s221 = sphi 0, %s221
    %s223 = sphi 0, %s221
    %s224 = sphi 0, %s223
    %s238 = sphi 0, %s224
    %s242 = sphi 0, %s242
    %s244 = sphi 0, %s242
    %s245 = sphi 0, %s244
    %s259 = sphi 0, %s245
    %s263 = sphi 0, %s263
    %s265 = sphi 0, %s263
    %s266 = sphi 0, %s265
    %s280 = sphi 0, %s266
    %s284 = sphi 0, %s284
    %s286 = sphi 0, %s284
    %s287 = sphi 0, %s286
    %s301 = sphi 0, %s287
    %s305 = sphi 0, %s305
    %s307 = sphi 0, %s305
    %s308 = sphi 0, %s307
    %s322 = sphi 0, %s308
    %s326 = sphi 0, %s326
    %s328 = sphi 0, %s326
    %s329 = sphi 0, %s328
    %s343 = sphi 0, %s329
    %s347 = sphi 0, %s347
    %s349 = sphi 0, %s347
    %s350 = sphi 0, %s349
    %s364 = sphi 0, %s350
    %s368 = sphi 0, %s368
    %s370 = sphi 0, %s368
    %s371 = sphi 0, %s370
    %s385 = sphi 0, %s371
    %s389 = sphi 0, %s389
    %s391 = sphi 0, %s389
    %s392 = sphi 0, %s391
    %s406 = sphi 0, %s392
    %s410 = sphi 0, %s410
    %s412 = sphi 0, %s410
    %s413 = sphi 0, %s412
    %s427 = sphi 0, %s413
    %s431 = sphi 0, %s431
    %s433 = sphi 0, %s431
    %s434 = sphi 0, %s433
    %s448 = sphi 0, %s434
    %s452 = sphi 0, %s452
    %s454 = sphi 0, %s452
    %s455 = sphi 0, %s454
    %s469 = sphi 0, %s455
    %s473 = sphi 0, %s473
    %s475 = sphi 0, %s473
    %s476 = sphi 0, %s475
    %s490 = sphi 0, %s476
    %s494 = sphi 0, %s494
    %s496 = sphi 0, %s494
    %s497 = sphi 0, %s496
    %s511 = sphi 0, %s497
    %s515 = sphi 0, %s515
    %s517 = sphi 0, %s515
    %s518 = sphi 0, %s517
    %s532 = sphi 0, %s518
    %s536 = sphi 0, %s536
    %s538 = sphi 0, %s536
    %s539 = sphi 0, %s538
    %s553 = sphi 0, %s539
    %s559 = sphi 0, %s561
    %s562 = sphi 0, %s559
    %s563 = sphi 0, %s562
    %s579 = sphi 0, %s563
  $region4: #{comment_model_forward.8} parent=0 // loop_header_branch
    %33 = sbr.rel (%p31) target = $region8
  $region5: #{comment_model_forward.8} parent=0 // loop_body
    %s35 = ssub.s32 %s30, 1
    %s36 = ssub.s32 %s30, 2
    %s37 = sadd.s32 %s30, 1
    %s38 = ssub.s32 %s30, %s37
    %p39 = scmp.eq.s32.totalorder %s38, 0
    %s41 = sadd.s32 %s40, 1
    %s42 = scalar_select %p39, %s40, %s41
    %p45 = pneg %p39
    %p46 = scmp.eq.s32.totalorder %s30, 1
    %p47 = por %p45, %p46
    %p48 = scmp.ne.s32.totalorder %s40, %s43
    %p49 = scmp.eq.s32.totalorder %s30, 0
    %p50 = por %p48, %p49
    %p51 = scmp.ne.s32.totalorder %s40, %s43
    %p52 = scmp.eq.s32.totalorder %s35, 1
    %p53 = por %p51, %p52
    %p54 = scmp.ne.s32.totalorder %s43, %s44
    %p55 = scmp.eq.s32.totalorder %s35, 0
    %p56 = por %p54, %p55
    %p57 = scmp.ne.s32.totalorder %s43, %s44
    %p58 = scmp.eq.s32.totalorder %s36, 1
    %p59 = por %p57, %p58
    %p61 = scmp.ne.s32.totalorder %s44, %s60
    %p62 = scmp.eq.s32.totalorder %s36, 0
    %p63 = por %p61, %p62
    %s64 = ssub.s32 %s30, %s37
    %p65 = scmp.eq.s32.totalorder %s64, 0
    %s67 = sadd.s32 %s66, 1
    %s68 = scalar_select %p65, %s66, %s67
    %p71 = pneg %p65
    %p72 = scmp.eq.s32.totalorder %s30, 1
    %p73 = por %p71, %p72
    %p74 = scmp.ne.s32.totalorder %s66, %s69
    %p75 = scmp.eq.s32.totalorder %s30, 0
    %p76 = por %p74, %p75
    %p77 = scmp.ne.s32.totalorder %s66, %s69
    %p78 = scmp.eq.s32.totalorder %s35, 1
    %p79 = por %p77, %p78
    %p80 = scmp.ne.s32.totalorder %s69, %s70
    %p81 = scmp.eq.s32.totalorder %s35, 0
    %p82 = por %p80, %p81
    %p83 = scmp.ne.s32.totalorder %s69, %s70
    %p84 = scmp.eq.s32.totalorder %s36, 1
    %p85 = por %p83, %p84
    %p87 = scmp.ne.s32.totalorder %s70, %s86
    %p88 = scmp.eq.s32.totalorder %s36, 0
    %p89 = por %p87, %p88
    %s91 = sadd.s32 %s90, 1
    %p94 = scmp.eq.s32.totalorder %s30, 1
    %p95 = scmp.ne.s32.totalorder %s90, %s92
    %p96 = scmp.eq.s32.totalorder %s30, 0
    %p97 = por %p95, %p96
    %p98 = scmp.ne.s32.totalorder %s90, %s92
    %p99 = scmp.eq.s32.totalorder %s35, 1
    %p100 = por %p98, %p99
    %p101 = scmp.ne.s32.totalorder %s92, %s93
    %p102 = scmp.eq.s32.totalorder %s35, 0
    %p103 = por %p101, %p102
    %p104 = scmp.ne.s32.totalorder %s92, %s93
    %p105 = scmp.eq.s32.totalorder %s36, 1
    %p106 = por %p104, %p105
    %p108 = scmp.ne.s32.totalorder %s93, %s107
    %p109 = scmp.eq.s32.totalorder %s36, 0
    %p110 = por %p108, %p109
    %s111 = ssub.s32 %s30, %s37
    %p112 = scmp.eq.s32.totalorder %s111, 0
    %s114 = sadd.s32 %s113, 1
    %s115 = scalar_select %p112, %s113, %s114
    %p118 = pneg %p112
    %p119 = scmp.eq.s32.totalorder %s30, 1
    %p120 = por %p118, %p119
    %p121 = scmp.ne.s32.totalorder %s113, %s116
    %p122 = scmp.eq.s32.totalorder %s30, 0
    %p123 = por %p121, %p122
    %p124 = scmp.ne.s32.totalorder %s113, %s116
    %p125 = scmp.eq.s32.totalorder %s35, 1
    %p126 = por %p124, %p125
    %p127 = scmp.ne.s32.totalorder %s116, %s117
    %p128 = scmp.eq.s32.totalorder %s35, 0
    %p129 = por %p127, %p128
    %p130 = scmp.ne.s32.totalorder %s116, %s117
    %p131 = scmp.eq.s32.totalorder %s36, 1
    %p132 = por %p130, %p131
    %p134 = scmp.ne.s32.totalorder %s117, %s133
    %p135 = scmp.eq.s32.totalorder %s36, 0
    %p136 = por %p134, %p135
    %s138 = sadd.s32 %s137, 1
    %p141 = scmp.eq.s32.totalorder %s30, 1
    %p142 = scmp.ne.s32.totalorder %s137, %s139
    %p143 = scmp.eq.s32.totalorder %s30, 0
    %p144 = por %p142, %p143
    %p145 = scmp.ne.s32.totalorder %s137, %s139
    %p146 = scmp.eq.s32.totalorder %s35, 1
    %p147 = por %p145, %p146
    %p148 = scmp.ne.s32.totalorder %s139, %s140
    %p149 = scmp.eq.s32.totalorder %s35, 0
    %p150 = por %p148, %p149
    %p151 = scmp.ne.s32.totalorder %s139, %s140
    %p152 = scmp.eq.s32.totalorder %s36, 1
    %p153 = por %p151, %p152
    %p155 = scmp.ne.s32.totalorder %s140, %s154
    %p156 = scmp.eq.s32.totalorder %s36, 0
    %p157 = por %p155, %p156
    %s159 = sadd.s32 %s158, 1
    %p162 = scmp.eq.s32.totalorder %s30, 1
    %p163 = scmp.ne.s32.totalorder %s158, %s160
    %p164 = scmp.eq.s32.totalorder %s30, 0
    %p165 = por %p163, %p164
    %p166 = scmp.ne.s32.totalorder %s158, %s160
    %p167 = scmp.eq.s32.totalorder %s35, 1
    %p168 = por %p166, %p167
    %p169 = scmp.ne.s32.totalorder %s160, %s161
    %p170 = scmp.eq.s32.totalorder %s35, 0
    %p171 = por %p169, %p170
    %p172 = scmp.ne.s32.totalorder %s160, %s161
    %p173 = scmp.eq.s32.totalorder %s36, 1
    %p174 = por %p172, %p173
    %p176 = scmp.ne.s32.totalorder %s161, %s175
    %p177 = scmp.eq.s32.totalorder %s36, 0
    %p178 = por %p176, %p177
    %s180 = sadd.s32 %s179, 1
    %p183 = scmp.eq.s32.totalorder %s30, 1
    %p184 = scmp.ne.s32.totalorder %s179, %s181
    %p185 = scmp.eq.s32.totalorder %s30, 0
    %p186 = por %p184, %p185
    %p187 = scmp.ne.s32.totalorder %s179, %s181
    %p188 = scmp.eq.s32.totalorder %s35, 1
    %p189 = por %p187, %p188
    %p190 = scmp.ne.s32.totalorder %s181, %s182
    %p191 = scmp.eq.s32.totalorder %s35, 0
    %p192 = por %p190, %p191
    %p193 = scmp.ne.s32.totalorder %s181, %s182
    %p194 = scmp.eq.s32.totalorder %s36, 1
    %p195 = por %p193, %p194
    %p197 = scmp.ne.s32.totalorder %s182, %s196
    %p198 = scmp.eq.s32.totalorder %s36, 0
    %p199 = por %p197, %p198
    %s201 = sadd.s32 %s200, 1
    %p204 = scmp.eq.s32.totalorder %s30, 1
    %p205 = scmp.ne.s32.totalorder %s200, %s202
    %p206 = scmp.eq.s32.totalorder %s30, 0
    %p207 = por %p205, %p206
    %p208 = scmp.ne.s32.totalorder %s200, %s202
    %p209 = scmp.eq.s32.totalorder %s35, 1
    %p210 = por %p208, %p209
    %p211 = scmp.ne.s32.totalorder %s202, %s203
    %p212 = scmp.eq.s32.totalorder %s35, 0
    %p213 = por %p211, %p212
    %p214 = scmp.ne.s32.totalorder %s202, %s203
    %p215 = scmp.eq.s32.totalorder %s36, 1
    %p216 = por %p214, %p215
    %p218 = scmp.ne.s32.totalorder %s203, %s217
    %p219 = scmp.eq.s32.totalorder %s36, 0
    %p220 = por %p218, %p219
    %s222 = sadd.s32 %s221, 1
    %p225 = scmp.eq.s32.totalorder %s30, 1
    %p226 = scmp.ne.s32.totalorder %s221, %s223
    %p227 = scmp.eq.s32.totalorder %s30, 0
    %p228 = por %p226, %p227
    %p229 = scmp.ne.s32.totalorder %s221, %s223
    %p230 = scmp.eq.s32.totalorder %s35, 1
    %p231 = por %p229, %p230
    %p232 = scmp.ne.s32.totalorder %s223, %s224
    %p233 = scmp.eq.s32.totalorder %s35, 0
    %p234 = por %p232, %p233
    %p235 = scmp.ne.s32.totalorder %s223, %s224
    %p236 = scmp.eq.s32.totalorder %s36, 1
    %p237 = por %p235, %p236
    %p239 = scmp.ne.s32.totalorder %s224, %s238
    %p240 = scmp.eq.s32.totalorder %s36, 0
    %p241 = por %p239, %p240
    %s243 = sadd.s32 %s242, 1
    %p246 = scmp.eq.s32.totalorder %s30, 1
    %p247 = scmp.ne.s32.totalorder %s242, %s244
    %p248 = scmp.eq.s32.totalorder %s30, 0
    %p249 = por %p247, %p248
    %p250 = scmp.ne.s32.totalorder %s242, %s244
    %p251 = scmp.eq.s32.totalorder %s35, 1
    %p252 = por %p250, %p251
    %p253 = scmp.ne.s32.totalorder %s244, %s245
    %p254 = scmp.eq.s32.totalorder %s35, 0
    %p255 = por %p253, %p254
    %p256 = scmp.ne.s32.totalorder %s244, %s245
    %p257 = scmp.eq.s32.totalorder %s36, 1
    %p258 = por %p256, %p257
    %p260 = scmp.ne.s32.totalorder %s245, %s259
    %p261 = scmp.eq.s32.totalorder %s36, 0
    %p262 = por %p260, %p261
    %s264 = sadd.s32 %s263, 1
    %p267 = scmp.eq.s32.totalorder %s30, 1
    %p268 = scmp.ne.s32.totalorder %s263, %s265
    %p269 = scmp.eq.s32.totalorder %s30, 0
    %p270 = por %p268, %p269
    %p271 = scmp.ne.s32.totalorder %s263, %s265
    %p272 = scmp.eq.s32.totalorder %s35, 1
    %p273 = por %p271, %p272
    %p274 = scmp.ne.s32.totalorder %s265, %s266
    %p275 = scmp.eq.s32.totalorder %s35, 0
    %p276 = por %p274, %p275
    %p277 = scmp.ne.s32.totalorder %s265, %s266
    %p278 = scmp.eq.s32.totalorder %s36, 1
    %p279 = por %p277, %p278
    %p281 = scmp.ne.s32.totalorder %s266, %s280
    %p282 = scmp.eq.s32.totalorder %s36, 0
    %p283 = por %p281, %p282
    %s285 = sadd.s32 %s284, 1
    %p288 = scmp.eq.s32.totalorder %s30, 1
    %p289 = scmp.ne.s32.totalorder %s284, %s286
    %p290 = scmp.eq.s32.totalorder %s30, 0
    %p291 = por %p289, %p290
    %p292 = scmp.ne.s32.totalorder %s284, %s286
    %p293 = scmp.eq.s32.totalorder %s35, 1
    %p294 = por %p292, %p293
    %p295 = scmp.ne.s32.totalorder %s286, %s287
    %p296 = scmp.eq.s32.totalorder %s35, 0
    %p297 = por %p295, %p296
    %p298 = scmp.ne.s32.totalorder %s286, %s287
    %p299 = scmp.eq.s32.totalorder %s36, 1
    %p300 = por %p298, %p299
    %p302 = scmp.ne.s32.totalorder %s287, %s301
    %p303 = scmp.eq.s32.totalorder %s36, 0
    %p304 = por %p302, %p303
    %s306 = sadd.s32 %s305, 1
    %p309 = scmp.eq.s32.totalorder %s30, 1
    %p310 = scmp.ne.s32.totalorder %s305, %s307
    %p311 = scmp.eq.s32.totalorder %s30, 0
    %p312 = por %p310, %p311
    %p313 = scmp.ne.s32.totalorder %s305, %s307
    %p314 = scmp.eq.s32.totalorder %s35, 1
    %p315 = por %p313, %p314
    %p316 = scmp.ne.s32.totalorder %s307, %s308
    %p317 = scmp.eq.s32.totalorder %s35, 0
    %p318 = por %p316, %p317
    %p319 = scmp.ne.s32.totalorder %s307, %s308
    %p320 = scmp.eq.s32.totalorder %s36, 1
    %p321 = por %p319, %p320
    %p323 = scmp.ne.s32.totalorder %s308, %s322
    %p324 = scmp.eq.s32.totalorder %s36, 0
    %p325 = por %p323, %p324
    %s327 = sadd.s32 %s326, 1
    %p330 = scmp.eq.s32.totalorder %s30, 1
    %p331 = scmp.ne.s32.totalorder %s326, %s328
    %p332 = scmp.eq.s32.totalorder %s30, 0
    %p333 = por %p331, %p332
    %p334 = scmp.ne.s32.totalorder %s326, %s328
    %p335 = scmp.eq.s32.totalorder %s35, 1
    %p336 = por %p334, %p335
    %p337 = scmp.ne.s32.totalorder %s328, %s329
    %p338 = scmp.eq.s32.totalorder %s35, 0
    %p339 = por %p337, %p338
    %p340 = scmp.ne.s32.totalorder %s328, %s329
    %p341 = scmp.eq.s32.totalorder %s36, 1
    %p342 = por %p340, %p341
    %p344 = scmp.ne.s32.totalorder %s329, %s343
    %p345 = scmp.eq.s32.totalorder %s36, 0
    %p346 = por %p344, %p345
    %s348 = sadd.s32 %s347, 1
    %p351 = scmp.eq.s32.totalorder %s30, 1
    %p352 = scmp.ne.s32.totalorder %s347, %s349
    %p353 = scmp.eq.s32.totalorder %s30, 0
    %p354 = por %p352, %p353
    %p355 = scmp.ne.s32.totalorder %s347, %s349
    %p356 = scmp.eq.s32.totalorder %s35, 1
    %p357 = por %p355, %p356
    %p358 = scmp.ne.s32.totalorder %s349, %s350
    %p359 = scmp.eq.s32.totalorder %s35, 0
    %p360 = por %p358, %p359
    %p361 = scmp.ne.s32.totalorder %s349, %s350
    %p362 = scmp.eq.s32.totalorder %s36, 1
    %p363 = por %p361, %p362
    %p365 = scmp.ne.s32.totalorder %s350, %s364
    %p366 = scmp.eq.s32.totalorder %s36, 0
    %p367 = por %p365, %p366
    %s369 = sadd.s32 %s368, 1
    %p372 = scmp.eq.s32.totalorder %s30, 1
    %p373 = scmp.ne.s32.totalorder %s368, %s370
    %p374 = scmp.eq.s32.totalorder %s30, 0
    %p375 = por %p373, %p374
    %p376 = scmp.ne.s32.totalorder %s368, %s370
    %p377 = scmp.eq.s32.totalorder %s35, 1
    %p378 = por %p376, %p377
    %p379 = scmp.ne.s32.totalorder %s370, %s371
    %p380 = scmp.eq.s32.totalorder %s35, 0
    %p381 = por %p379, %p380
    %p382 = scmp.ne.s32.totalorder %s370, %s371
    %p383 = scmp.eq.s32.totalorder %s36, 1
    %p384 = por %p382, %p383
    %p386 = scmp.ne.s32.totalorder %s371, %s385
    %p387 = scmp.eq.s32.totalorder %s36, 0
    %p388 = por %p386, %p387
    %s390 = sadd.s32 %s389, 1
    %p393 = scmp.eq.s32.totalorder %s30, 1
    %p394 = scmp.ne.s32.totalorder %s389, %s391
    %p395 = scmp.eq.s32.totalorder %s30, 0
    %p396 = por %p394, %p395
    %p397 = scmp.ne.s32.totalorder %s389, %s391
    %p398 = scmp.eq.s32.totalorder %s35, 1
    %p399 = por %p397, %p398
    %p400 = scmp.ne.s32.totalorder %s391, %s392
    %p401 = scmp.eq.s32.totalorder %s35, 0
    %p402 = por %p400, %p401
    %p403 = scmp.ne.s32.totalorder %s391, %s392
    %p404 = scmp.eq.s32.totalorder %s36, 1
    %p405 = por %p403, %p404
    %p407 = scmp.ne.s32.totalorder %s392, %s406
    %p408 = scmp.eq.s32.totalorder %s36, 0
    %p409 = por %p407, %p408
    %s411 = sadd.s32 %s410, 1
    %p414 = scmp.eq.s32.totalorder %s30, 1
    %p415 = scmp.ne.s32.totalorder %s410, %s412
    %p416 = scmp.eq.s32.totalorder %s30, 0
    %p417 = por %p415, %p416
    %p418 = scmp.ne.s32.totalorder %s410, %s412
    %p419 = scmp.eq.s32.totalorder %s35, 1
    %p420 = por %p418, %p419
    %p421 = scmp.ne.s32.totalorder %s412, %s413
    %p422 = scmp.eq.s32.totalorder %s35, 0
    %p423 = por %p421, %p422
    %p424 = scmp.ne.s32.totalorder %s412, %s413
    %p425 = scmp.eq.s32.totalorder %s36, 1
    %p426 = por %p424, %p425
    %p428 = scmp.ne.s32.totalorder %s413, %s427
    %p429 = scmp.eq.s32.totalorder %s36, 0
    %p430 = por %p428, %p429
    %s432 = sadd.s32 %s431, 1
    %p435 = scmp.eq.s32.totalorder %s30, 1
    %p436 = scmp.ne.s32.totalorder %s431, %s433
    %p437 = scmp.eq.s32.totalorder %s30, 0
    %p438 = por %p436, %p437
    %p439 = scmp.ne.s32.totalorder %s431, %s433
    %p440 = scmp.eq.s32.totalorder %s35, 1
    %p441 = por %p439, %p440
    %p442 = scmp.ne.s32.totalorder %s433, %s434
    %p443 = scmp.eq.s32.totalorder %s35, 0
    %p444 = por %p442, %p443
    %p445 = scmp.ne.s32.totalorder %s433, %s434
    %p446 = scmp.eq.s32.totalorder %s36, 1
    %p447 = por %p445, %p446
    %p449 = scmp.ne.s32.totalorder %s434, %s448
    %p450 = scmp.eq.s32.totalorder %s36, 0
    %p451 = por %p449, %p450
    %s453 = sadd.s32 %s452, 1
    %p456 = scmp.eq.s32.totalorder %s30, 1
    %p457 = scmp.ne.s32.totalorder %s452, %s454
    %p458 = scmp.eq.s32.totalorder %s30, 0
    %p459 = por %p457, %p458
    %p460 = scmp.ne.s32.totalorder %s452, %s454
    %p461 = scmp.eq.s32.totalorder %s35, 1
    %p462 = por %p460, %p461
    %p463 = scmp.ne.s32.totalorder %s454, %s455
    %p464 = scmp.eq.s32.totalorder %s35, 0
    %p465 = por %p463, %p464
    %p466 = scmp.ne.s32.totalorder %s454, %s455
    %p467 = scmp.eq.s32.totalorder %s36, 1
    %p468 = por %p466, %p467
    %p470 = scmp.ne.s32.totalorder %s455, %s469
    %p471 = scmp.eq.s32.totalorder %s36, 0
    %p472 = por %p470, %p471
    %s474 = sadd.s32 %s473, 1
    %p477 = scmp.eq.s32.totalorder %s30, 1
    %p478 = scmp.ne.s32.totalorder %s473, %s475
    %p479 = scmp.eq.s32.totalorder %s30, 0
    %p480 = por %p478, %p479
    %p481 = scmp.ne.s32.totalorder %s473, %s475
    %p482 = scmp.eq.s32.totalorder %s35, 1
    %p483 = por %p481, %p482
    %p484 = scmp.ne.s32.totalorder %s475, %s476
    %p485 = scmp.eq.s32.totalorder %s35, 0
    %p486 = por %p484, %p485
    %p487 = scmp.ne.s32.totalorder %s475, %s476
    %p488 = scmp.eq.s32.totalorder %s36, 1
    %p489 = por %p487, %p488
    %p491 = scmp.ne.s32.totalorder %s476, %s490
    %p492 = scmp.eq.s32.totalorder %s36, 0
    %p493 = por %p491, %p492
    %s495 = sadd.s32 %s494, 1
    %p498 = scmp.eq.s32.totalorder %s30, 1
    %p499 = scmp.ne.s32.totalorder %s494, %s496
    %p500 = scmp.eq.s32.totalorder %s30, 0
    %p501 = por %p499, %p500
    %p502 = scmp.ne.s32.totalorder %s494, %s496
    %p503 = scmp.eq.s32.totalorder %s35, 1
    %p504 = por %p502, %p503
    %p505 = scmp.ne.s32.totalorder %s496, %s497
    %p506 = scmp.eq.s32.totalorder %s35, 0
    %p507 = por %p505, %p506
    %p508 = scmp.ne.s32.totalorder %s496, %s497
    %p509 = scmp.eq.s32.totalorder %s36, 1
    %p510 = por %p508, %p509
    %p512 = scmp.ne.s32.totalorder %s497, %s511
    %p513 = scmp.eq.s32.totalorder %s36, 0
    %p514 = por %p512, %p513
    %s516 = sadd.s32 %s515, 1
    %p519 = scmp.eq.s32.totalorder %s30, 1
    %p520 = scmp.ne.s32.totalorder %s515, %s517
    %p521 = scmp.eq.s32.totalorder %s30, 0
    %p522 = por %p520, %p521
    %p523 = scmp.ne.s32.totalorder %s515, %s517
    %p524 = scmp.eq.s32.totalorder %s35, 1
    %p525 = por %p523, %p524
    %p526 = scmp.ne.s32.totalorder %s517, %s518
    %p527 = scmp.eq.s32.totalorder %s35, 0
    %p528 = por %p526, %p527
    %p529 = scmp.ne.s32.totalorder %s517, %s518
    %p530 = scmp.eq.s32.totalorder %s36, 1
    %p531 = por %p529, %p530
    %p533 = scmp.ne.s32.totalorder %s518, %s532
    %p534 = scmp.eq.s32.totalorder %s36, 0
    %p535 = por %p533, %p534
    %s537 = sadd.s32 %s536, 1
    %p540 = scmp.eq.s32.totalorder %s30, 1
    %p541 = scmp.ne.s32.totalorder %s536, %s538
    %p542 = scmp.eq.s32.totalorder %s30, 0
    %p543 = por %p541, %p542
    %p544 = scmp.ne.s32.totalorder %s536, %s538
    %p545 = scmp.eq.s32.totalorder %s35, 1
    %p546 = por %p544, %p545
    %p547 = scmp.ne.s32.totalorder %s538, %s539
    %p548 = scmp.eq.s32.totalorder %s35, 0
    %p549 = por %p547, %p548
    %p550 = scmp.ne.s32.totalorder %s538, %s539
    %p551 = scmp.eq.s32.totalorder %s36, 1
    %p552 = por %p550, %p551
    %p554 = scmp.ne.s32.totalorder %s539, %s553
    %p555 = scmp.eq.s32.totalorder %s36, 0
    %p556 = por %p554, %p555
    %s557 = ssub.s32 %s30, %s37
    %p558 = scmp.eq.s32.totalorder %s557, 0
    %s560 = sadd.s32 %s559, 1
    %s561 = scalar_select %p558, %s559, %s560
    %p564 = pneg %p558
    %p565 = scmp.eq.s32.totalorder %s30, 1
    %p566 = por %p564, %p565
    %p567 = scmp.ne.s32.totalorder %s559, %s562
    %p568 = scmp.eq.s32.totalorder %s30, 0
    %p569 = por %p567, %p568
    %p570 = scmp.ne.s32.totalorder %s559, %s562
    %p571 = scmp.eq.s32.totalorder %s35, 1
    %p572 = por %p570, %p571
    %p573 = scmp.ne.s32.totalorder %s562, %s563
    %p574 = scmp.eq.s32.totalorder %s35, 0
    %p575 = por %p573, %p574
    %p576 = scmp.ne.s32.totalorder %s562, %s563
    %p577 = scmp.eq.s32.totalorder %s36, 1
    %p578 = por %p576, %p577
    %p580 = scmp.ne.s32.totalorder %s563, %s579
    %p581 = scmp.eq.s32.totalorder %s36, 0
    %p582 = por %p580, %p581
    %p583 = scmp.le.s32.totalorder 1, %s30
    %p584 = scmp.lt.s32.totalorder %s30, 3
    %p585 = pnand %p583, %p584
    %p586 = pneg %p585
    // Predicated region
    $region9: #{comment_model_forward.8} parent=5 // pred_check
      _
    $region10: #{comment_model_forward.8} parent=5 // pred_check_branch
      %588 = sbr.rel (%p585) target = $region12
    $region11: #{comment_model_forward.8} parent=5 // pred_region
      %s589 = ssub.s32 %s30, 1
      // Predicated region
      $region13: #{comment_model_forward.8} parent=11 // pred_check
        %p590 = pneg %p103
      $region14: #{comment_model_forward.8} parent=11 // pred_check_branch
        %592 = sbr.rel (%p590) target = $region16
      $region15: #{comment_model_forward.8} parent=11 // pred_region
        _
      $region16: #{comment_model_forward.8} parent=11 // pred_fallthru
        _
      // Predicated region
      $region17: #{comment_model_forward.8} parent=11 // pred_check
        %p593 = pneg %p150
      $region18: #{comment_model_forward.8} parent=11 // pred_check_branch
        %595 = sbr.rel (%p593) target = $region20
      $region19: #{comment_model_forward.8} parent=11 // pred_region
        _
      $region20: #{comment_model_forward.8} parent=11 // pred_fallthru
        _
      // Predicated region
      $region21: #{comment_model_forward.8} parent=11 // pred_check
        %p596 = pneg %p171
      $region22: #{comment_model_forward.8} parent=11 // pred_check_branch
        %598 = sbr.rel (%p596) target = $region24
      $region23: #{comment_model_forward.8} parent=11 // pred_region
        _
      $region24: #{comment_model_forward.8} parent=11 // pred_fallthru
        _
      // Predicated region
      $region25: #{comment_model_forward.8} parent=11 // pred_check
        %p599 = pneg %p192
      $region26: #{comment_model_forward.8} parent=11 // pred_check_branch
        %601 = sbr.rel (%p599) target = $region28
      $region27: #{comment_model_forward.8} parent=11 // pred_region
        _
      $region28: #{comment_model_forward.8} parent=11 // pred_fallthru
        _
      // Predicated region
      $region29: #{comment_model_forward.8} parent=11 // pred_check
        %p602 = pneg %p213
      $region30: #{comment_model_forward.8} parent=11 // pred_check_branch
        %604 = sbr.rel (%p602) target = $region32
      $region31: #{comment_model_forward.8} parent=11 // pred_region
        _
      $region32: #{comment_model_forward.8} parent=11 // pred_fallthru
        _
      // Predicated region
      $region33: #{comment_model_forward.8} parent=11 // pred_check
        %p605 = pneg %p234
      $region34: #{comment_model_forward.8} parent=11 // pred_check_branch
        %607 = sbr.rel (%p605) target = $region36
      $region35: #{comment_model_forward.8} parent=11 // pred_region
        _
      $region36: #{comment_model_forward.8} parent=11 // pred_fallthru
        _
      // Predicated region
      $region37: #{comment_model_forward.8} parent=11 // pred_check
        %p608 = pneg %p255
      $region38: #{comment_model_forward.8} parent=11 // pred_check_branch
        %610 = sbr.rel (%p608) target = $region40
      $region39: #{comment_model_forward.8} parent=11 // pred_region
        _
      $region40: #{comment_model_forward.8} parent=11 // pred_fallthru
        _
      // Predicated region
      $region41: #{comment_model_forward.8} parent=11 // pred_check
        %p611 = pneg %p276
      $region42: #{comment_model_forward.8} parent=11 // pred_check_branch
        %613 = sbr.rel (%p611) target = $region44
      $region43: #{comment_model_forward.8} parent=11 // pred_region
        _
      $region44: #{comment_model_forward.8} parent=11 // pred_fallthru
        _
      // Predicated region
      $region45: #{comment_model_forward.8} parent=11 // pred_check
        %p614 = pneg %p297
      $region46: #{comment_model_forward.8} parent=11 // pred_check_branch
        %616 = sbr.rel (%p614) target = $region48
      $region47: #{comment_model_forward.8} parent=11 // pred_region
        _
      $region48: #{comment_model_forward.8} parent=11 // pred_fallthru
        _
      // Predicated region
      $region49: #{comment_model_forward.8} parent=11 // pred_check
        %p617 = pneg %p318
      $region50: #{comment_model_forward.8} parent=11 // pred_check_branch
        %619 = sbr.rel (%p617) target = $region52
      $region51: #{comment_model_forward.8} parent=11 // pred_region
        _
      $region52: #{comment_model_forward.8} parent=11 // pred_fallthru
        _
      // Predicated region
      $region53: #{comment_model_forward.8} parent=11 // pred_check
        %p620 = pneg %p339
      $region54: #{comment_model_forward.8} parent=11 // pred_check_branch
        %622 = sbr.rel (%p620) target = $region56
      $region55: #{comment_model_forward.8} parent=11 // pred_region
        _
      $region56: #{comment_model_forward.8} parent=11 // pred_fallthru
        _
      // Predicated region
      $region57: #{comment_model_forward.8} parent=11 // pred_check
        %p623 = pneg %p360
      $region58: #{comment_model_forward.8} parent=11 // pred_check_branch
        %625 = sbr.rel (%p623) target = $region60
      $region59: #{comment_model_forward.8} parent=11 // pred_region
        _
      $region60: #{comment_model_forward.8} parent=11 // pred_fallthru
        _
      // Predicated region
      $region61: #{comment_model_forward.8} parent=11 // pred_check
        %p626 = pneg %p381
      $region62: #{comment_model_forward.8} parent=11 // pred_check_branch
        %628 = sbr.rel (%p626) target = $region64
      $region63: #{comment_model_forward.8} parent=11 // pred_region
        _
      $region64: #{comment_model_forward.8} parent=11 // pred_fallthru
        _
      // Predicated region
      $region65: #{comment_model_forward.8} parent=11 // pred_check
        %p629 = pneg %p402
      $region66: #{comment_model_forward.8} parent=11 // pred_check_branch
        %631 = sbr.rel (%p629) target = $region68
      $region67: #{comment_model_forward.8} parent=11 // pred_region
        _
      $region68: #{comment_model_forward.8} parent=11 // pred_fallthru
        _
      // Predicated region
      $region69: #{comment_model_forward.8} parent=11 // pred_check
        %p632 = pneg %p423
      $region70: #{comment_model_forward.8} parent=11 // pred_check_branch
        %634 = sbr.rel (%p632) target = $region72
      $region71: #{comment_model_forward.8} parent=11 // pred_region
        _
      $region72: #{comment_model_forward.8} parent=11 // pred_fallthru
        _
      // Predicated region
      $region73: #{comment_model_forward.8} parent=11 // pred_check
        %p635 = pneg %p444
      $region74: #{comment_model_forward.8} parent=11 // pred_check_branch
        %637 = sbr.rel (%p635) target = $region76
      $region75: #{comment_model_forward.8} parent=11 // pred_region
        _
      $region76: #{comment_model_forward.8} parent=11 // pred_fallthru
        _
      // Predicated region
      $region77: #{comment_model_forward.8} parent=11 // pred_check
        %p638 = pneg %p465
      $region78: #{comment_model_forward.8} parent=11 // pred_check_branch
        %640 = sbr.rel (%p638) target = $region80
      $region79: #{comment_model_forward.8} parent=11 // pred_region
        _
      $region80: #{comment_model_forward.8} parent=11 // pred_fallthru
        _
      // Predicated region
      $region81: #{comment_model_forward.8} parent=11 // pred_check
        %p641 = pneg %p486
      $region82: #{comment_model_forward.8} parent=11 // pred_check_branch
        %643 = sbr.rel (%p641) target = $region84
      $region83: #{comment_model_forward.8} parent=11 // pred_region
        _
      $region84: #{comment_model_forward.8} parent=11 // pred_fallthru
        _
      // Predicated region
      $region85: #{comment_model_forward.8} parent=11 // pred_check
        %p644 = pneg %p507
      $region86: #{comment_model_forward.8} parent=11 // pred_check_branch
        %646 = sbr.rel (%p644) target = $region88
      $region87: #{comment_model_forward.8} parent=11 // pred_region
        _
      $region88: #{comment_model_forward.8} parent=11 // pred_fallthru
        _
      // Predicated region
      $region89: #{comment_model_forward.8} parent=11 // pred_check
        %p647 = pneg %p528
      $region90: #{comment_model_forward.8} parent=11 // pred_check_branch
        %649 = sbr.rel (%p647) target = $region92
      $region91: #{comment_model_forward.8} parent=11 // pred_region
        _
      $region92: #{comment_model_forward.8} parent=11 // pred_fallthru
        _
      // Predicated region
      $region93: #{comment_model_forward.8} parent=11 // pred_check
        %p650 = pneg %p549
      $region94: #{comment_model_forward.8} parent=11 // pred_check_branch
        %652 = sbr.rel (%p650) target = $region96
      $region95: #{comment_model_forward.8} parent=11 // pred_region
        _
      $region96: #{comment_model_forward.8} parent=11 // pred_fallthru
        _
    $region12: #{comment_model_forward.8} parent=5 // pred_fallthru
      _
    %p653 = scmp.lt.s32.totalorder %s30, 2
    // Predicated region
    $region97: #{comment_model_forward.8} parent=5 // pred_check
      %p654 = pneg %p653
    $region98: #{comment_model_forward.8} parent=5 // pred_check_branch
      %656 = sbr.rel (%p654) target = $region100
    $region99: #{comment_model_forward.8} parent=5 // pred_region
      // Predicated region
      $region101: #{comment_model_forward.8} parent=99 // pred_check
        %p657 = pneg %p50
      $region102: #{comment_model_forward.8} parent=99 // pred_check_branch
        %659 = sbr.rel (%p657) target = $region104
      $region103: #{comment_model_forward.8} parent=99 // pred_region
        %p660 = scmp.lt.s32.totalorder %s30, 1
        %s661 = scalar_select %p660, %s30, 1
        %s662 = smul.addr %s661, 8
        %s663 = scalar_lea.vmem %s0, %s662
      $region104: #{comment_model_forward.8} parent=99 // pred_fallthru
        _
      // Predicated region
      $region105: #{comment_model_forward.8} parent=99 // pred_check
        %p664 = pneg %p76
      $region106: #{comment_model_forward.8} parent=99 // pred_check_branch
        %666 = sbr.rel (%p664) target = $region108
      $region107: #{comment_model_forward.8} parent=99 // pred_region
        %p667 = scmp.lt.s32.totalorder %s30, 1
        %s668 = scalar_select %p667, %s30, 1
        %s669 = smul.addr %s668, 8
        %s670 = scalar_lea.vmem %s1, %s669
      $region108: #{comment_model_forward.8} parent=99 // pred_fallthru
        _
      // Predicated region
      $region109: #{comment_model_forward.8} parent=99 // pred_check
        %p671 = pneg %p123
      $region110: #{comment_model_forward.8} parent=99 // pred_check_branch
        %673 = sbr.rel (%p671) target = $region112
      $region111: #{comment_model_forward.8} parent=99 // pred_region
        %p674 = scmp.lt.s32.totalorder %s30, 1
        %s675 = scalar_select %p674, %s30, 1
        %s676 = smul.addr %s675, 8
        %s677 = scalar_lea.vmem %s3, %s676
      $region112: #{comment_model_forward.8} parent=99 // pred_fallthru
        _
    $region100: #{comment_model_forward.8} parent=5 // pred_fallthru
      _
    %p678 = scmp.le.s32.totalorder 1, %s30
    %p679 = scmp.lt.s32.totalorder %s30, 3
    %p680 = pnand %p678, %p679
    %p681 = pneg %p680
    // Predicated region
    $region113: #{comment_model_forward.8} parent=5 // pred_check
      _
    $region114: #{comment_model_forward.8} parent=5 // pred_check_branch
      %683 = sbr.rel (%p680) target = $region116
    $region115: #{comment_model_forward.8} parent=5 // pred_region
      %s684 = ssub.s32 %s30, 1
      %p685 = scmp.lt.s32.totalorder %s35, 1
      %s686 = scalar_select %p685, %s35, 1
      %s687 = smul.addr %s686, 8
      %s688 = scalar_lea.vmem %s0, %s687
      %p689 = pneg %p56
      %p690 = pneg %p53
      %p691 = scmp.lt.s32.totalorder %s35, 1
      %s692 = scalar_select %p691, %s35, 1
      %s693 = smul.addr %s692, 8
      %s694 = scalar_lea.vmem %s1, %s693
      %p695 = pneg %p82
      %p696 = pneg %p79
      %p697 = pneg %p103
      %p698 = pneg %p100
      %p699 = scmp.lt.s32.totalorder %s35, 1
      %s700 = scalar_select %p699, %s35, 1
      %s701 = smul.addr %s700, 8
      %s702 = scalar_lea.vmem %s3, %s701
      %p703 = pneg %p129
      %p704 = pneg %p126
      %p705 = pneg %p150
      %p706 = pneg %p147
      %p707 = pneg %p171
      %p708 = pneg %p168
      %p709 = pneg %p192
      %p710 = pneg %p189
      %p711 = pneg %p213
      %p712 = pneg %p210
      %p713 = pneg %p234
      %p714 = pneg %p231
      %p715 = pneg %p255
      %p716 = pneg %p252
      %p717 = pneg %p276
      %p718 = pneg %p273
      %p719 = pneg %p297
      %p720 = pneg %p294
      %p721 = pneg %p318
      %p722 = pneg %p315
      %p723 = pneg %p339
      %p724 = pneg %p336
      %p725 = pneg %p360
      %p726 = pneg %p357
      %p727 = pneg %p381
      %p728 = pneg %p378
      %p729 = pneg %p402
      %p730 = pneg %p399
      %p731 = pneg %p423
      %p732 = pneg %p420
      %p733 = pneg %p444
      %p734 = pneg %p441
      %p735 = pneg %p465
      %p736 = pneg %p462
      %p737 = pneg %p486
      %p738 = pneg %p483
      %p739 = pneg %p507
      %p740 = pneg %p504
      %p741 = pneg %p528
      %p742 = pneg %p525
      %p743 = pneg %p549
      %p744 = pneg %p546
      %p745 = pneg %p575
      %p746 = pneg %p572
      %p747 = scmp.lt.s32.totalorder %s35, 1
      %s748 = scalar_select %p747, %s35, 1
      %s749 = smul.addr %s748, 8
      %s750 = scalar_lea.vmem %s24, %s749
      %p751 = scmp.lt.s32.totalorder %s35, 1
      %s752 = scalar_select %p751, %s35, 1
      %s753 = smul.addr %s752, 8
      %s754 = scalar_lea.vmem %s0, %s753
      %p755 = scmp.lt.s32.totalorder %s35, 1
      %s756 = scalar_select %p755, %s35, 1
      %s757 = smul.addr %s756, 8
      %s758 = scalar_lea.vmem %s1, %s757
      %p759 = scmp.lt.s32.totalorder %s35, 1
      %s760 = scalar_select %p759, %s35, 1
      %s761 = smul.addr %s760, 8
      %s762 = scalar_lea.vmem %s3, %s761
      %p763 = scmp.lt.s32.totalorder %s35, 1
      %s764 = scalar_select %p763, %s35, 1
      %s765 = smul.addr %s764, 8
      %s766 = scalar_lea.vmem %s24, %s765
      %v768 = vld [vmem:[%s754] sm:$0xff]
      %v769 = vld [vmem:[%s758] sm:$0xff]
      %v770 = vld [vmem:[%s4] sm:$0xf]
      %v771 = vld [vmem:[%s4 + $0x4] sm:$0xf]
      %v772 = vld [vmem:[%s4 + $0x8] sm:$0xf]
      %v773 = vld [vmem:[%s4 + $0xc] sm:$0xf]
      %v774 = vpack.c.bf16 %v768, %v768
      %v775 = vld [vmem:[%s5] sm:$0x1]
      %v777 = vlaneseq
      %v778 = vshrl.u32 %v777, 7
      %v779 = vsub.s32 0, %v778
      %v780 = vrot.slane %v775, %v779
      %v786 = vunpack.c.l.b16 %v770
      %v787 = vunpack.c.l.b16 %v771
      %v788 = vunpack.c.l.b16 %v772
      %v789 = vunpack.c.l.b16 %v773
      %v790 = vpack.c.b16 %v787, %v786
      %v791 = vpack.c.b16 %v789, %v788
      %vm794 = vcmask 261120
      %v796 = vsel %vm794, %v774, 0
      %798 = vmatprep.subr.bf16.mxu0 0
      %799 = vmatpush1.bf16.msra.mxu0 0
      %800 = vmatprep.subr.bf16.mxu0 0
      %801 = vmatpush1.bf16.msra.mxu0 0
      %802 = vmatprep.subr.bf16.mxu0 0
      %803 = vmatpush1.bf16.msra.mxu0 0
      %804 = vmatprep.subr.bf16.mxu0 0
      %805 = vmatpush1.bf16.msra.mxu0 0
      %806 = vmatprep.subr.bf16.mxu0 0
      %807 = vmatpush1.bf16.msra.mxu0 0
      %808 = vmatprep.subr.bf16.mxu0 0
      %809 = vmatpush1.bf16.msra.mxu0 0
      %810 = vmatprep.subr.bf16.mxu0 0
      %811 = vmatpush1.bf16.msra.mxu0 %v791
      %812 = vmatprep.subr.bf16.mxu0 0
      %813 = vmatpush1.bf16.msra.mxu0 %v790
      %814 = vmatprep.subr.bf16.mxu0 0
      %815 = vmatpush2.bf16.msra.mxu0 0
      %816 = vmatprep.subr.bf16.mxu0 0
      %817 = vmatpush2.bf16.msra.mxu0 0
      %818 = vmatprep.subr.bf16.mxu0 0
      %819 = vmatpush2.bf16.msra.mxu0 0
      %820 = vmatprep.subr.bf16.mxu0 0
      %821 = vmatpush2.bf16.msra.mxu0 0
      %822 = vmatprep.subr.bf16.mxu0 0
      %823 = vmatpush2.bf16.msra.mxu0 0
      %824 = vmatprep.subr.bf16.mxu0 0
      %825 = vmatpush2.bf16.msra.mxu0 0
      %826 = vmatprep.subr.bf16.mxu0 0
      %827 = vmatpush2.bf16.msra.mxu0 0
      %828 = vmatprep.subr.bf16.mxu0 0
      %829 = vmatpush2.bf16.msra.mxu0 0
      %830 = vmatprep.mubr.bf16.mxu0 0
      %831 = vmatmul.mubr.bf16.gmra.mxu0 %v796
      %v832 = vpop.f32.mrf.mxu0
      %v833 = vadd.f32 %v780, %v832
      %v834 = vpop.f32.mrf.mxu0
      %v835 = vpop.f32.mrf.mxu0
      %v836 = vpop.f32.mrf.mxu0
      %837 = vdwg.mxu0
      %v838 = vld [vmem:[%s2] sm:$0xff]
      %v839 = vpack.c.bf16 %v833, %v833
      %841 = vrot.lane.b32.xlu0 %v839, 96
      %v842 = vpop.permute.xlu0 %841
      %vm843 = vcmask 130048
      %v845 = vsel %vm843, %v839, 0
      %v848 = vsel %vm843, %v842, 0
      %850 = vmatprep.subr.bf16.mxu0 0
      %851 = vmatpush1.bf16.xpose.msra.mxu0 0
      %852 = vmatprep.subr.bf16.mxu0 0
      %853 = vmatpush1.bf16.xpose.msra.mxu0 0
      %854 = vmatprep.subr.bf16.mxu0 0
      %855 = vmatpush1.bf16.xpose.msra.mxu0 0
      %856 = vmatprep.subr.bf16.mxu0 0
      %857 = vmatpush1.bf16.xpose.msra.mxu0 0
      %858 = vmatprep.subr.bf16.mxu0 0
      %859 = vmatpush1.bf16.xpose.msra.mxu0 0
      %860 = vmatprep.subr.bf16.mxu0 0
      %861 = vmatpush1.bf16.xpose.msra.mxu0 0
      %862 = vmatprep.subr.bf16.mxu0 0
      %863 = vmatpush1.bf16.xpose.msra.mxu0 0
      %864 = vmatprep.subr.bf16.mxu0 0
      %865 = vmatpush1.bf16.xpose.msra.mxu0 %v848
      %866 = vmatprep.subr.bf16.mxu0 0
      %867 = vmatpush2.bf16.xpose.msra.mxu0 0
      %868 = vmatprep.subr.bf16.mxu0 0
      %869 = vmatpush2.bf16.xpose.msra.mxu0 0
      %870 = vmatprep.subr.bf16.mxu0 0
      %871 = vmatpush2.bf16.xpose.msra.mxu0 0
      %872 = vmatprep.subr.bf16.mxu0 0
      %873 = vmatpush2.bf16.xpose.msra.mxu0 0
      %874 = vmatprep.subr.bf16.mxu0 0
      %875 = vmatpush2.bf16.xpose.msra.mxu0 0
      %876 = vmatprep.subr.bf16.mxu0 0
      %877 = vmatpush2.bf16.xpose.msra.mxu0 0
      %878 = vmatprep.subr.bf16.mxu0 0
      %879 = vmatpush2.bf16.xpose.msra.mxu0 0
      %880 = vmatprep.subr.bf16.mxu0 0
      %881 = vmatpush2.bf16.xpose.msra.mxu0 0
      %882 = vmatprep.mubr.bf16.mxu0 0
      %883 = vmatmul.mubr.bf16.gmra.mxu0 %v845
      %v884 = vpop.f32.mrf.mxu0
      %v885 = vadd.f32 %v838, %v884
      %v886 = vpop.f32.mrf.mxu0
      %v887 = vpop.f32.mrf.mxu0
      %v888 = vpop.f32.mrf.mxu0
      %889 = vdwg.mxu0
      %vm890 = vcmask 64512
      %v891 = vsel %vm890, %v885, -inf
      %892 = vmax.xlane.f32.xlu0 %v891
      %v893 = vpop.xlane.xlu0 %892
      %v894 = vsub.f32 %v885, %v893
      %v895 = vmul.f32 %v894, 1.442695
      %v896 = vpow.pop %v895
      %v897 = vsel %vm890, %v896, 0.0
      %898 = vadd.xlane.f32.xlu0 %v897
      %v899 = vpop.xlane.xlu0 %898
      %v900 = vrcp.pop %v899
      %v901 = vmul.f32 %v896, %v900
      %v902 = vpack.c.bf16 %v901, %v901
      %903 = vrot.lane.b32.xlu0 %v839, 64
      %v904 = vpop.permute.xlu0 %903
      %v906 = vsel %vm890, %v902, 0
      %vm908 = vcmask 1043456
      %v910 = vsel %vm908, %v904, 0
      %912 = vmatprep.subr.bf16.mxu0 0
      %913 = vmatpush1.bf16.msra.mxu0 0
      %914 = vmatprep.subr.bf16.mxu0 0
      %915 = vmatpush1.bf16.msra.mxu0 0
      %916 = vmatprep.subr.bf16.mxu0 0
      %917 = vmatpush1.bf16.msra.mxu0 0
      %918 = vmatprep.subr.bf16.mxu0 0
      %919 = vmatpush1.bf16.msra.mxu0 0
      %920 = vmatprep.subr.bf16.mxu0 0
      %921 = vmatpush1.bf16.msra.mxu0 0
      %922 = vmatprep.subr.bf16.mxu0 0
      %923 = vmatpush1.bf16.msra.mxu0 0
      %924 = vmatprep.subr.bf16.mxu0 0
      %925 = vmatpush1.bf16.msra.mxu0 0
      %926 = vmatprep.subr.bf16.mxu0 0
      %927 = vmatpush1.bf16.msra.mxu0 %v910
      %928 = vmatprep.subr.bf16.mxu0 0
      %929 = vmatpush2.bf16.msra.mxu0 0
      %930 = vmatprep.subr.bf16.mxu0 0
      %931 = vmatpush2.bf16.msra.mxu0 0
      %932 = vmatprep.subr.bf16.mxu0 0
      %933 = vmatpush2.bf16.msra.mxu0 0
      %934 = vmatprep.subr.bf16.mxu0 0
      %935 = vmatpush2.bf16.msra.mxu0 0
      %936 = vmatprep.subr.bf16.mxu0 0
      %937 = vmatpush2.bf16.msra.mxu0 0
      %938 = vmatprep.subr.bf16.mxu0 0
      %939 = vmatpush2.bf16.msra.mxu0 0
      %940 = vmatprep.subr.bf16.mxu0 0
      %941 = vmatpush2.bf16.msra.mxu0 0
      %942 = vmatprep.subr.bf16.mxu0 0
      %943 = vmatpush2.bf16.msra.mxu0 0
      %944 = vmatprep.mubr.bf16.mxu0 0
      %945 = vmatmul.mubr.bf16.gmra.mxu0 %v906
      %v946 = vpop.f32.mrf.mxu0
      %v947 = vadd.f32 0.0, %v946
      %v948 = vpop.f32.mrf.mxu0
      %v949 = vpop.f32.mrf.mxu0
      %v950 = vpop.f32.mrf.mxu0
      %951 = vdwg.mxu0
      %952 = vrot.lane.b32.xlu0 %v839, 112
      %v953 = vpop.permute.xlu0 %952
      %954 = vrot.lane.b32.xlu0 %v839, 80
      %v955 = vpop.permute.xlu0 %954
      %v957 = vsel %vm843, %v953, 0
      %v960 = vsel %vm843, %v955, 0
      %962 = vmatprep.subr.bf16.mxu0 0
      %963 = vmatpush1.bf16.xpose.msra.mxu0 0
      %964 = vmatprep.subr.bf16.mxu0 0
      %965 = vmatpush1.bf16.xpose.msra.mxu0 0
      %966 = vmatprep.subr.bf16.mxu0 0
      %967 = vmatpush1.bf16.xpose.msra.mxu0 0
      %968 = vmatprep.subr.bf16.mxu0 0
      %969 = vmatpush1.bf16.xpose.msra.mxu0 0
      %970 = vmatprep.subr.bf16.mxu0 0
      %971 = vmatpush1.bf16.xpose.msra.mxu0 0
      %972 = vmatprep.subr.bf16.mxu0 0
      %973 = vmatpush1.bf16.xpose.msra.mxu0 0
      %974 = vmatprep.subr.bf16.mxu0 0
      %975 = vmatpush1.bf16.xpose.msra.mxu0 0
      %976 = vmatprep.subr.bf16.mxu0 0
      %977 = vmatpush1.bf16.xpose.msra.mxu0 %v960
      %978 = vmatprep.subr.bf16.mxu0 0
      %979 = vmatpush2.bf16.xpose.msra.mxu0 0
      %980 = vmatprep.subr.bf16.mxu0 0
      %981 = vmatpush2.bf16.xpose.msra.mxu0 0
      %982 = vmatprep.subr.bf16.mxu0 0
      %983 = vmatpush2.bf16.xpose.msra.mxu0 0
      %984 = vmatprep.subr.bf16.mxu0 0
      %985 = vmatpush2.bf16.xpose.msra.mxu0 0
      %986 = vmatprep.subr.bf16.mxu0 0
      %987 = vmatpush2.bf16.xpose.msra.mxu0 0
      %988 = vmatprep.subr.bf16.mxu0 0
      %989 = vmatpush2.bf16.xpose.msra.mxu0 0
      %990 = vmatprep.subr.bf16.mxu0 0
      %991 = vmatpush2.bf16.xpose.msra.mxu0 0
      %992 = vmatprep.subr.bf16.mxu0 0
      %993 = vmatpush2.bf16.xpose.msra.mxu0 0
      %994 = vmatprep.mubr.bf16.mxu0 0
      %995 = vmatmul.mubr.bf16.gmra.mxu0 %v957
      %v996 = vpop.f32.mrf.mxu0
      %v997 = vadd.f32 %v838, %v996
      %v998 = vpop.f32.mrf.mxu0
      %v999 = vpop.f32.mrf.mxu0
      %v1000 = vpop.f32.mrf.mxu0
      %1001 = vdwg.mxu0
      %v1002 = vsel %vm890, %v997, -inf
      %1003 = vmax.xlane.f32.xlu0 %v1002
      %v1004 = vpop.xlane.xlu0 %1003
      %v1005 = vsub.f32 %v997, %v1004
      %v1006 = vmul.f32 %v1005, 1.442695
      %v1007 = vpow.pop %v1006
      %v1008 = vsel %vm890, %v1007, 0.0
      %1009 = vadd.xlane.f32.xlu0 %v1008
      %v1010 = vpop.xlane.xlu0 %1009
      %v1011 = vrcp.pop %v1010
      %v1012 = vmul.f32 %v1007, %v1011
      %v1013 = vpack.c.bf16 %v1012, %v1012
      %1014 = vrot.lane.b32.xlu0 %v839, 48
      %v1015 = vpop.permute.xlu0 %1014
      %v1017 = vsel %vm890, %v1013, 0
      %v1020 = vsel %vm908, %v1015, 0
      %1022 = vmatprep.subr.bf16.mxu0 0
      %1023 = vmatpush1.bf16.msra.mxu0 0
      %1024 = vmatprep.subr.bf16.mxu0 0
      %1025 = vmatpush1.bf16.msra.mxu0 0
      %1026 = vmatprep.subr.bf16.mxu0 0
      %1027 = vmatpush1.bf16.msra.mxu0 0
      %1028 = vmatprep.subr.bf16.mxu0 0
      %1029 = vmatpush1.bf16.msra.mxu0 0
      %1030 = vmatprep.subr.bf16.mxu0 0
      %1031 = vmatpush1.bf16.msra.mxu0 0
      %1032 = vmatprep.subr.bf16.mxu0 0
      %1033 = vmatpush1.bf16.msra.mxu0 0
      %1034 = vmatprep.subr.bf16.mxu0 0
      %1035 = vmatpush1.bf16.msra.mxu0 0
      %1036 = vmatprep.subr.bf16.mxu0 0
      %1037 = vmatpush1.bf16.msra.mxu0 %v1020
      %1038 = vmatprep.subr.bf16.mxu0 0
      %1039 = vmatpush2.bf16.msra.mxu0 0
      %1040 = vmatprep.subr.bf16.mxu0 0
      %1041 = vmatpush2.bf16.msra.mxu0 0
      %1042 = vmatprep.subr.bf16.mxu0 0
      %1043 = vmatpush2.bf16.msra.mxu0 0
      %1044 = vmatprep.subr.bf16.mxu0 0
      %1045 = vmatpush2.bf16.msra.mxu0 0
      %1046 = vmatprep.subr.bf16.mxu0 0
      %1047 = vmatpush2.bf16.msra.mxu0 0
      %1048 = vmatprep.subr.bf16.mxu0 0
      %1049 = vmatpush2.bf16.msra.mxu0 0
      %1050 = vmatprep.subr.bf16.mxu0 0
      %1051 = vmatpush2.bf16.msra.mxu0 0
      %1052 = vmatprep.subr.bf16.mxu0 0
      %1053 = vmatpush2.bf16.msra.mxu0 0
      %1054 = vmatprep.mubr.bf16.mxu0 0
      %1055 = vmatmul.mubr.bf16.gmra.mxu0 %v1017
      %v1056 = vpop.f32.mrf.mxu0
      %v1057 = vadd.f32 0.0, %v1056
      %v1058 = vpop.f32.mrf.mxu0
      %v1059 = vpop.f32.mrf.mxu0
      %v1060 = vpop.f32.mrf.mxu0
      %1061 = vdwg.mxu0
      %1063 = vrot.lane.b32.xlu0 %v1057, 16
      %v1064 = vpop.permute.xlu0 %1063
      %v1066 = vsel %vm843, %v947, %v1064
      %v1067 = vld [vmem:[%s6] sm:$0xf]
      %v1068 = vld [vmem:[%s6 + $0x4] sm:$0xf]
      %v1069 = vld [vmem:[%s6 + $0x8] sm:$0xf]
      %v1070 = vld [vmem:[%s6 + $0xc] sm:$0xf]
      %v1071 = vpack.c.bf16 %v1066, %v1066
      %v1076 = vunpack.c.l.b16 %v1067
      %v1077 = vunpack.c.l.b16 %v1068
      %v1078 = vunpack.c.l.b16 %v1069
      %v1079 = vunpack.c.l.b16 %v1070
      %v1080 = vpack.c.b16 %v1077, %v1076
      %v1081 = vpack.c.b16 %v1079, %v1078
      %v1085 = vsel %vm794, %v1071, 0
      %1087 = vmatprep.subr.bf16.mxu0 0
      %1088 = vmatpush1.bf16.msra.mxu0 0
      %1089 = vmatprep.subr.bf16.mxu0 0
      %1090 = vmatpush1.bf16.msra.mxu0 0
      %1091 = vmatprep.subr.bf16.mxu0 0
      %1092 = vmatpush1.bf16.msra.mxu0 0
      %1093 = vmatprep.subr.bf16.mxu0 0
      %1094 = vmatpush1.bf16.msra.mxu0 0
      %1095 = vmatprep.subr.bf16.mxu0 0
      %1096 = vmatpush1.bf16.msra.mxu0 0
      %1097 = vmatprep.subr.bf16.mxu0 0
      %1098 = vmatpush1.bf16.msra.mxu0 0
      %1099 = vmatprep.subr.bf16.mxu0 0
      %1100 = vmatpush1.bf16.msra.mxu0 %v1081
      %1101 = vmatprep.subr.bf16.mxu0 0
      %1102 = vmatpush1.bf16.msra.mxu0 %v1080
      %1103 = vmatprep.subr.bf16.mxu0 0
      %1104 = vmatpush2.bf16.msra.mxu0 0
      %1105 = vmatprep.subr.bf16.mxu0 0
      %1106 = vmatpush2.bf16.msra.mxu0 0
      %1107 = vmatprep.subr.bf16.mxu0 0
      %1108 = vmatpush2.bf16.msra.mxu0 0
      %1109 = vmatprep.subr.bf16.mxu0 0
      %1110 = vmatpush2.bf16.msra.mxu0 0
      %1111 = vmatprep.subr.bf16.mxu0 0
      %1112 = vmatpush2.bf16.msra.mxu0 0
      %1113 = vmatprep.subr.bf16.mxu0 0
      %1114 = vmatpush2.bf16.msra.mxu0 0
      %1115 = vmatprep.subr.bf16.mxu0 0
      %1116 = vmatpush2.bf16.msra.mxu0 0
      %1117 = vmatprep.subr.bf16.mxu0 0
      %1118 = vmatpush2.bf16.msra.mxu0 0
      %1119 = vmatprep.mubr.bf16.mxu0 0
      %1120 = vmatmul.mubr.bf16.gmra.mxu0 %v1085
      %v1121 = vpop.f32.mrf.mxu0
      %v1122 = vadd.f32 0.0, %v1121
      %v1123 = vpop.f32.mrf.mxu0
      %v1124 = vpop.f32.mrf.mxu0
      %v1125 = vpop.f32.mrf.mxu0
      %1126 = vdwg.mxu0
      %v1127 = vadd.f32 %v768, %v1122
      %v1128 = vld [vmem:[%s7] sm:$0x1]
      %v1130 = vlaneseq
      %v1131 = vshrl.u32 %v1130, 7
      %v1132 = vsub.s32 0, %v1131
      %v1133 = vrot.slane %v1128, %v1132
      %v1135 = vadd.f32 %v1127, %v1133
      %v1136 = vld [vmem:[%s8] sm:$0x1]
      %v1137 = vld [vmem:[%s9] sm:$0x1]
      %v1138 = vsel %vm794, %v1135, 0.0
      %1139 = vadd.xlane.f32.xlu0 %v1138
      %v1140 = vpop.xlane.xlu0 %1139
      %v1141 = vrcp.pop 32.0
      %v1142 = vmul.f32 %v1140, %v1141
      %v1143 = vsub.f32 %v1135, %v1142
      %v1144 = vmul.f32 %v1143, %v1143
      %v1145 = vsel %vm794, %v1144, 0.0
      %1146 = vadd.xlane.f32.xlu0 %v1145
      %v1147 = vpop.xlane.xlu0 %1146
      %v1148 = vmul.f32 %v1147, %v1141
      %v1149 = vadd.f32 %v1148, 1e-05
      %v1150 = vrsqrt.pop %v1149
      %v1151 = vmul.f32 %v1143, %v1150
      %v1153 = vlaneseq
      %v1154 = vshrl.u32 %v1153, 7
      %v1155 = vsub.s32 0, %v1154
      %v1156 = vrot.slane %v1136, %v1155
      %v1158 = vmul.f32 %v1151, %v1156
      %v1160 = vlaneseq
      %v1161 = vshrl.u32 %v1160, 7
      %v1162 = vsub.s32 0, %v1161
      %v1163 = vrot.slane %v1137, %v1162
      %v1165 = vadd.f32 %v1158, %v1163
      %v1166 = vld [vmem:[%s10] sm:$0xf]
      %v1167 = vld [vmem:[%s10 + $0x4] sm:$0xf]
      %v1168 = vld [vmem:[%s10 + $0x8] sm:$0xf]
      %v1169 = vld [vmem:[%s10 + $0xc] sm:$0xf]
      %v1170 = vpack.c.bf16 %v1165, %v1165
      %v1171 = vld [vmem:[%s11] sm:$0x1]
      %v1173 = vlaneseq
      %v1174 = vshrl.u32 %v1173, 7
      %v1175 = vsub.s32 0, %v1174
      %v1176 = vrot.slane %v1171, %v1175
      %v1182 = vunpack.c.l.b16 %v1166
      %v1183 = vunpack.c.l.b16 %v1167
      %v1184 = vunpack.c.l.b16 %v1168
      %v1185 = vunpack.c.l.b16 %v1169
      %v1186 = vpack.c.b16 %v1183, %v1182
      %v1187 = vpack.c.b16 %v1185, %v1184
      %v1191 = vsel %vm794, %v1170, 0
      %1193 = vmatprep.subr.bf16.mxu0 0
      %1194 = vmatpush1.bf16.msra.mxu0 0
      %1195 = vmatprep.subr.bf16.mxu0 0
      %1196 = vmatpush1.bf16.msra.mxu0 0
      %1197 = vmatprep.subr.bf16.mxu0 0
      %1198 = vmatpush1.bf16.msra.mxu0 0
      %1199 = vmatprep.subr.bf16.mxu0 0
      %1200 = vmatpush1.bf16.msra.mxu0 0
      %1201 = vmatprep.subr.bf16.mxu0 0
      %1202 = vmatpush1.bf16.msra.mxu0 0
      %1203 = vmatprep.subr.bf16.mxu0 0
      %1204 = vmatpush1.bf16.msra.mxu0 0
      %1205 = vmatprep.subr.bf16.mxu0 0
      %1206 = vmatpush1.bf16.msra.mxu0 %v1187
      %1207 = vmatprep.subr.bf16.mxu0 0
      %1208 = vmatpush1.bf16.msra.mxu0 %v1186
      %1209 = vmatprep.subr.bf16.mxu0 0
      %1210 = vmatpush2.bf16.msra.mxu0 0
      %1211 = vmatprep.subr.bf16.mxu0 0
      %1212 = vmatpush2.bf16.msra.mxu0 0
      %1213 = vmatprep.subr.bf16.mxu0 0
      %1214 = vmatpush2.bf16.msra.mxu0 0
      %1215 = vmatprep.subr.bf16.mxu0 0
      %1216 = vmatpush2.bf16.msra.mxu0 0
      %1217 = vmatprep.subr.bf16.mxu0 0
      %1218 = vmatpush2.bf16.msra.mxu0 0
      %1219 = vmatprep.subr.bf16.mxu0 0
      %1220 = vmatpush2.bf16.msra.mxu0 0
      %1221 = vmatprep.subr.bf16.mxu0 0
      %1222 = vmatpush2.bf16.msra.mxu0 0
      %1223 = vmatprep.subr.bf16.mxu0 0
      %1224 = vmatpush2.bf16.msra.mxu0 0
      %1225 = vmatprep.mubr.bf16.mxu0 0
      %1226 = vmatmul.mubr.bf16.gmra.mxu0 %v1191
      %v1227 = vpop.f32.mrf.mxu0
      %v1228 = vadd.f32 %v1176, %v1227
      %v1229 = vpop.f32.mrf.mxu0
      %v1230 = vpop.f32.mrf.mxu0
      %v1231 = vpop.f32.mrf.mxu0
      %1232 = vdwg.mxu0
      %v1233 = vld [vmem:[%s12] sm:$0xf]
      %v1234 = vld [vmem:[%s12 + $0x4] sm:$0xf]
      %v1235 = vld [vmem:[%s12 + $0x8] sm:$0xf]
      %v1236 = vld [vmem:[%s12 + $0xc] sm:$0xf]
      %v1237 = vpack.c.bf16 %v769, %v769
      %v1238 = vld [vmem:[%s13] sm:$0x1]
      %v1240 = vlaneseq
      %v1241 = vshrl.u32 %v1240, 7
      %v1242 = vsub.s32 0, %v1241
      %v1243 = vrot.slane %v1238, %v1242
      %v1249 = vunpack.c.l.b16 %v1233
      %v1250 = vunpack.c.l.b16 %v1234
      %v1251 = vunpack.c.l.b16 %v1235
      %v1252 = vunpack.c.l.b16 %v1236
      %v1253 = vpack.c.b16 %v1250, %v1249
      %v1254 = vpack.c.b16 %v1252, %v1251
      %v1258 = vsel %vm794, %v1237, 0
      %1260 = vmatprep.subr.bf16.mxu0 0
      %1261 = vmatpush1.bf16.msra.mxu0 0
      %1262 = vmatprep.subr.bf16.mxu0 0
      %1263 = vmatpush1.bf16.msra.mxu0 0
      %1264 = vmatprep.subr.bf16.mxu0 0
      %1265 = vmatpush1.bf16.msra.mxu0 0
      %1266 = vmatprep.subr.bf16.mxu0 0
      %1267 = vmatpush1.bf16.msra.mxu0 0
      %1268 = vmatprep.subr.bf16.mxu0 0
      %1269 = vmatpush1.bf16.msra.mxu0 0
      %1270 = vmatprep.subr.bf16.mxu0 0
      %1271 = vmatpush1.bf16.msra.mxu0 0
      %1272 = vmatprep.subr.bf16.mxu0 0
      %1273 = vmatpush1.bf16.msra.mxu0 %v1254
      %1274 = vmatprep.subr.bf16.mxu0 0
      %1275 = vmatpush1.bf16.msra.mxu0 %v1253
      %1276 = vmatprep.subr.bf16.mxu0 0
      %1277 = vmatpush2.bf16.msra.mxu0 0
      %1278 = vmatprep.subr.bf16.mxu0 0
      %1279 = vmatpush2.bf16.msra.mxu0 0
      %1280 = vmatprep.subr.bf16.mxu0 0
      %1281 = vmatpush2.bf16.msra.mxu0 0
      %1282 = vmatprep.subr.bf16.mxu0 0
      %1283 = vmatpush2.bf16.msra.mxu0 0
      %1284 = vmatprep.subr.bf16.mxu0 0
      %1285 = vmatpush2.bf16.msra.mxu0 0
      %1286 = vmatprep.subr.bf16.mxu0 0
      %1287 = vmatpush2.bf16.msra.mxu0 0
      %1288 = vmatprep.subr.bf16.mxu0 0
      %1289 = vmatpush2.bf16.msra.mxu0 0
      %1290 = vmatprep.subr.bf16.mxu0 0
      %1291 = vmatpush2.bf16.msra.mxu0 0
      %1292 = vmatprep.mubr.bf16.mxu0 0
      %1293 = vmatmul.mubr.bf16.gmra.mxu0 %v1258
      %v1294 = vpop.f32.mrf.mxu0
      %v1295 = vadd.f32 %v1243, %v1294
      %v1296 = vpop.f32.mrf.mxu0
      %v1297 = vpop.f32.mrf.mxu0
      %v1298 = vpop.f32.mrf.mxu0
      %1299 = vdwg.mxu0
      %v1300 = vld [vmem:[%s762] sm:$0xff]
      %v1301 = vpack.c.bf16 %v1228, %v1228
      %v1302 = vpack.c.bf16 %v1295, %v1295
      %v1304 = vsel %vm843, %v1301, 0
      %v1307 = vsel %vm843, %v1302, 0
      %1309 = vmatprep.subr.bf16.mxu0 0
      %1310 = vmatpush1.bf16.xpose.msra.mxu0 0
      %1311 = vmatprep.subr.bf16.mxu0 0
      %1312 = vmatpush1.bf16.xpose.msra.mxu0 0
      %1313 = vmatprep.subr.bf16.mxu0 0
      %1314 = vmatpush1.bf16.xpose.msra.mxu0 0
      %1315 = vmatprep.subr.bf16.mxu0 0
      %1316 = vmatpush1.bf16.xpose.msra.mxu0 0
      %1317 = vmatprep.subr.bf16.mxu0 0
      %1318 = vmatpush1.bf16.xpose.msra.mxu0 0
      %1319 = vmatprep.subr.bf16.mxu0 0
      %1320 = vmatpush1.bf16.xpose.msra.mxu0 0
      %1321 = vmatprep.subr.bf16.mxu0 0
      %1322 = vmatpush1.bf16.xpose.msra.mxu0 0
      %1323 = vmatprep.subr.bf16.mxu0 0
      %1324 = vmatpush1.bf16.xpose.msra.mxu0 %v1307
      %1325 = vmatprep.subr.bf16.mxu0 0
      %1326 = vmatpush2.bf16.xpose.msra.mxu0 0
      %1327 = vmatprep.subr.bf16.mxu0 0
      %1328 = vmatpush2.bf16.xpose.msra.mxu0 0
      %1329 = vmatprep.subr.bf16.mxu0 0
      %1330 = vmatpush2.bf16.xpose.msra.mxu0 0
      %1331 = vmatprep.subr.bf16.mxu0 0
      %1332 = vmatpush2.bf16.xpose.msra.mxu0 0
      %1333 = vmatprep.subr.bf16.mxu0 0
      %1334 = vmatpush2.bf16.xpose.msra.mxu0 0
      %1335 = vmatprep.subr.bf16.mxu0 0
      %1336 = vmatpush2.bf16.xpose.msra.mxu0 0
      %1337 = vmatprep.subr.bf16.mxu0 0
      %1338 = vmatpush2.bf16.xpose.msra.mxu0 0
      %1339 = vmatprep.subr.bf16.mxu0 0
      %1340 = vmatpush2.bf16.xpose.msra.mxu0 0
      %1341 = vmatprep.mubr.bf16.mxu0 0
      %1342 = vmatmul.mubr.bf16.gmra.mxu0 %v1304
      %v1343 = vpop.f32.mrf.mxu0
      %v1344 = vadd.f32 %v1300, %v1343
      %v1345 = vpop.f32.mrf.mxu0
      %v1346 = vpop.f32.mrf.mxu0
      %v1347 = vpop.f32.mrf.mxu0
      %1348 = vdwg.mxu0
      %v1349 = vsel %vm890, %v1344, -inf
      %1350 = vmax.xlane.f32.xlu0 %v1349
      %v1351 = vpop.xlane.xlu0 %1350
      %v1352 = vsub.f32 %v1344, %v1351
      %v1353 = vmul.f32 %v1352, 1.442695
      %v1354 = vpow.pop %v1353
      %v1355 = vsel %vm890, %v1354, 0.0
      %1356 = vadd.xlane.f32.xlu0 %v1355
      %v1357 = vpop.xlane.xlu0 %1356
      %v1358 = vrcp.pop %v1357
      %v1359 = vmul.f32 %v1354, %v1358
      %v1360 = vpack.c.bf16 %v1359, %v1359
      %1362 = vrot.lane.b32.xlu0 %v1302, 96
      %v1363 = vpop.permute.xlu0 %1362
      %v1365 = vsel %vm890, %v1360, 0
      %v1368 = vsel %vm908, %v1363, 0
      %1370 = vmatprep.subr.bf16.mxu0 0
      %1371 = vmatpush1.bf16.msra.mxu0 0
      %1372 = vmatprep.subr.bf16.mxu0 0
      %1373 = vmatpush1.bf16.msra.mxu0 0
      %1374 = vmatprep.subr.bf16.mxu0 0
      %1375 = vmatpush1.bf16.msra.mxu0 0
      %1376 = vmatprep.subr.bf16.mxu0 0
      %1377 = vmatpush1.bf16.msra.mxu0 0
      %1378 = vmatprep.subr.bf16.mxu0 0
      %1379 = vmatpush1.bf16.msra.mxu0 0
      %1380 = vmatprep.subr.bf16.mxu0 0
      %1381 = vmatpush1.bf16.msra.mxu0 0
      %1382 = vmatprep.subr.bf16.mxu0 0
      %1383 = vmatpush1.bf16.msra.mxu0 0
      %1384 = vmatprep.subr.bf16.mxu0 0
      %1385 = vmatpush1.bf16.msra.mxu0 %v1368
      %1386 = vmatprep.subr.bf16.mxu0 0
      %1387 = vmatpush2.bf16.msra.mxu0 0
      %1388 = vmatprep.subr.bf16.mxu0 0
      %1389 = vmatpush2.bf16.msra.mxu0 0
      %1390 = vmatprep.subr.bf16.mxu0 0
      %1391 = vmatpush2.bf16.msra.mxu0 0
      %1392 = vmatprep.subr.bf16.mxu0 0
      %1393 = vmatpush2.bf16.msra.mxu0 0
      %1394 = vmatprep.subr.bf16.mxu0 0
      %1395 = vmatpush2.bf16.msra.mxu0 0
      %1396 = vmatprep.subr.bf16.mxu0 0
      %1397 = vmatpush2.bf16.msra.mxu0 0
      %1398 = vmatprep.subr.bf16.mxu0 0
      %1399 = vmatpush2.bf16.msra.mxu0 0
      %1400 = vmatprep.subr.bf16.mxu0 0
      %1401 = vmatpush2.bf16.msra.mxu0 0
      %1402 = vmatprep.mubr.bf16.mxu0 0
      %1403 = vmatmul.mubr.bf16.gmra.mxu0 %v1365
      %v1404 = vpop.f32.mrf.mxu0
      %v1405 = vadd.f32 0.0, %v1404
      %v1406 = vpop.f32.mrf.mxu0
      %v1407 = vpop.f32.mrf.mxu0
      %v1408 = vpop.f32.mrf.mxu0
      %1409 = vdwg.mxu0
      %1411 = vrot.lane.b32.xlu0 %v1301, 112
      %v1412 = vpop.permute.xlu0 %1411
      %1413 = vrot.lane.b32.xlu0 %v1302, 112
      %v1414 = vpop.permute.xlu0 %1413
      %v1416 = vsel %vm843, %v1412, 0
      %v1419 = vsel %vm843, %v1414, 0
      %1421 = vmatprep.subr.bf16.mxu0 0
      %1422 = vmatpush1.bf16.xpose.msra.mxu0 0
      %1423 = vmatprep.subr.bf16.mxu0 0
      %1424 = vmatpush1.bf16.xpose.msra.mxu0 0
      %1425 = vmatprep.subr.bf16.mxu0 0
      %1426 = vmatpush1.bf16.xpose.msra.mxu0 0
      %1427 = vmatprep.subr.bf16.mxu0 0
      %1428 = vmatpush1.bf16.xpose.msra.mxu0 0
      %1429 = vmatprep.subr.bf16.mxu0 0
      %1430 = vmatpush1.bf16.xpose.msra.mxu0 0
      %1431 = vmatprep.subr.bf16.mxu0 0
      %1432 = vmatpush1.bf16.xpose.msra.mxu0 0
      %1433 = vmatprep.subr.bf16.mxu0 0
      %1434 = vmatpush1.bf16.xpose.msra.mxu0 0
      %1435 = vmatprep.subr.bf16.mxu0 0
      %1436 = vmatpush1.bf16.xpose.msra.mxu0 %v1419
      %1437 = vmatprep.subr.bf16.mxu0 0
      %1438 = vmatpush2.bf16.xpose.msra.mxu0 0
      %1439 = vmatprep.subr.bf16.mxu0 0
      %1440 = vmatpush2.bf16.xpose.msra.mxu0 0
      %1441 = vmatprep.subr.bf16.mxu0 0
      %1442 = vmatpush2.bf16.xpose.msra.mxu0 0
      %1443 = vmatprep.subr.bf16.mxu0 0
      %1444 = vmatpush2.bf16.xpose.msra.mxu0 0
      %1445 = vmatprep.subr.bf16.mxu0 0
      %1446 = vmatpush2.bf16.xpose.msra.mxu0 0
      %1447 = vmatprep.subr.bf16.mxu0 0
      %1448 = vmatpush2.bf16.xpose.msra.mxu0 0
      %1449 = vmatprep.subr.bf16.mxu0 0
      %1450 = vmatpush2.bf16.xpose.msra.mxu0 0
      %1451 = vmatprep.subr.bf16.mxu0 0
      %1452 = vmatpush2.bf16.xpose.msra.mxu0 0
      %1453 = vmatprep.mubr.bf16.mxu0 0
      %1454 = vmatmul.mubr.bf16.gmra.mxu0 %v1416
      %v1455 = vpop.f32.mrf.mxu0
      %v1456 = vadd.f32 %v1300, %v1455
      %v1457 = vpop.f32.mrf.mxu0
      %v1458 = vpop.f32.mrf.mxu0
      %v1459 = vpop.f32.mrf.mxu0
      %1460 = vdwg.mxu0
      %v1461 = vsel %vm890, %v1456, -inf
      %1462 = vmax.xlane.f32.xlu0 %v1461
      %v1463 = vpop.xlane.xlu0 %1462
      %v1464 = vsub.f32 %v1456, %v1463
      %v1465 = vmul.f32 %v1464, 1.442695
      %v1466 = vpow.pop %v1465
      %v1467 = vsel %vm890, %v1466, 0.0
      %1468 = vadd.xlane.f32.xlu0 %v1467
      %v1469 = vpop.xlane.xlu0 %1468
      %v1470 = vrcp.pop %v1469
      %v1471 = vmul.f32 %v1466, %v1470
      %v1472 = vpack.c.bf16 %v1471, %v1471
      %1473 = vrot.lane.b32.xlu0 %v1302, 80
      %v1474 = vpop.permute.xlu0 %1473
      %v1476 = vsel %vm890, %v1472, 0
      %v1479 = vsel %vm908, %v1474, 0
      %1481 = vmatprep.subr.bf16.mxu0 0
      %1482 = vmatpush1.bf16.msra.mxu0 0
      %1483 = vmatprep.subr.bf16.mxu0 0
      %1484 = vmatpush1.bf16.msra.mxu0 0
      %1485 = vmatprep.subr.bf16.mxu0 0
      %1486 = vmatpush1.bf16.msra.mxu0 0
      %1487 = vmatprep.subr.bf16.mxu0 0
      %1488 = vmatpush1.bf16.msra.mxu0 0
      %1489 = vmatprep.subr.bf16.mxu0 0
      %1490 = vmatpush1.bf16.msra.mxu0 0
      %1491 = vmatprep.subr.bf16.mxu0 0
      %1492 = vmatpush1.bf16.msra.mxu0 0
      %1493 = vmatprep.subr.bf16.mxu0 0
      %1494 = vmatpush1.bf16.msra.mxu0 0
      %1495 = vmatprep.subr.bf16.mxu0 0
      %1496 = vmatpush1.bf16.msra.mxu0 %v1479
      %1497 = vmatprep.subr.bf16.mxu0 0
      %1498 = vmatpush2.bf16.msra.mxu0 0
      %1499 = vmatprep.subr.bf16.mxu0 0
      %1500 = vmatpush2.bf16.msra.mxu0 0
      %1501 = vmatprep.subr.bf16.mxu0 0
      %1502 = vmatpush2.bf16.msra.mxu0 0
      %1503 = vmatprep.subr.bf16.mxu0 0
      %1504 = vmatpush2.bf16.msra.mxu0 0
      %1505 = vmatprep.subr.bf16.mxu0 0
      %1506 = vmatpush2.bf16.msra.mxu0 0
      %1507 = vmatprep.subr.bf16.mxu0 0
      %1508 = vmatpush2.bf16.msra.mxu0 0
      %1509 = vmatprep.subr.bf16.mxu0 0
      %1510 = vmatpush2.bf16.msra.mxu0 0
      %1511 = vmatprep.subr.bf16.mxu0 0
      %1512 = vmatpush2.bf16.msra.mxu0 0
      %1513 = vmatprep.mubr.bf16.mxu0 0
      %1514 = vmatmul.mubr.bf16.gmra.mxu0 %v1476
      %v1515 = vpop.f32.mrf.mxu0
      %v1516 = vadd.f32 0.0, %v1515
      %v1517 = vpop.f32.mrf.mxu0
      %v1518 = vpop.f32.mrf.mxu0
      %v1519 = vpop.f32.mrf.mxu0
      %1520 = vdwg.mxu0
      %1522 = vrot.lane.b32.xlu0 %v1516, 16
      %v1523 = vpop.permute.xlu0 %1522
      %v1525 = vsel %vm843, %v1405, %v1523
      %v1526 = vld [vmem:[%s14] sm:$0xf]
      %v1527 = vld [vmem:[%s14 + $0x4] sm:$0xf]
      %v1528 = vld [vmem:[%s14 + $0x8] sm:$0xf]
      %v1529 = vld [vmem:[%s14 + $0xc] sm:$0xf]
      %v1530 = vpack.c.bf16 %v1525, %v1525
      %v1535 = vunpack.c.l.b16 %v1526
      %v1536 = vunpack.c.l.b16 %v1527
      %v1537 = vunpack.c.l.b16 %v1528
      %v1538 = vunpack.c.l.b16 %v1529
      %v1539 = vpack.c.b16 %v1536, %v1535
      %v1540 = vpack.c.b16 %v1538, %v1537
      %v1544 = vsel %vm794, %v1530, 0
      %1546 = vmatprep.subr.bf16.mxu0 0
      %1547 = vmatpush1.bf16.msra.mxu0 0
      %1548 = vmatprep.subr.bf16.mxu0 0
      %1549 = vmatpush1.bf16.msra.mxu0 0
      %1550 = vmatprep.subr.bf16.mxu0 0
      %1551 = vmatpush1.bf16.msra.mxu0 0
      %1552 = vmatprep.subr.bf16.mxu0 0
      %1553 = vmatpush1.bf16.msra.mxu0 0
      %1554 = vmatprep.subr.bf16.mxu0 0
      %1555 = vmatpush1.bf16.msra.mxu0 0
      %1556 = vmatprep.subr.bf16.mxu0 0
      %1557 = vmatpush1.bf16.msra.mxu0 0
      %1558 = vmatprep.subr.bf16.mxu0 0
      %1559 = vmatpush1.bf16.msra.mxu0 %v1540
      %1560 = vmatprep.subr.bf16.mxu0 0
      %1561 = vmatpush1.bf16.msra.mxu0 %v1539
      %1562 = vmatprep.subr.bf16.mxu0 0
      %1563 = vmatpush2.bf16.msra.mxu0 0
      %1564 = vmatprep.subr.bf16.mxu0 0
      %1565 = vmatpush2.bf16.msra.mxu0 0
      %1566 = vmatprep.subr.bf16.mxu0 0
      %1567 = vmatpush2.bf16.msra.mxu0 0
      %1568 = vmatprep.subr.bf16.mxu0 0
      %1569 = vmatpush2.bf16.msra.mxu0 0
      %1570 = vmatprep.subr.bf16.mxu0 0
      %1571 = vmatpush2.bf16.msra.mxu0 0
      %1572 = vmatprep.subr.bf16.mxu0 0
      %1573 = vmatpush2.bf16.msra.mxu0 0
      %1574 = vmatprep.subr.bf16.mxu0 0
      %1575 = vmatpush2.bf16.msra.mxu0 0
      %1576 = vmatprep.subr.bf16.mxu0 0
      %1577 = vmatpush2.bf16.msra.mxu0 0
      %1578 = vmatprep.mubr.bf16.mxu0 0
      %1579 = vmatmul.mubr.bf16.gmra.mxu0 %v1544
      %v1580 = vpop.f32.mrf.mxu0
      %v1581 = vadd.f32 0.0, %v1580
      %v1582 = vpop.f32.mrf.mxu0
      %v1583 = vpop.f32.mrf.mxu0
      %v1584 = vpop.f32.mrf.mxu0
      %1585 = vdwg.mxu0
      %v1586 = vadd.f32 %v1165, %v1581
      %v1587 = vld [vmem:[%s15] sm:$0x1]
      %v1589 = vlaneseq
      %v1590 = vshrl.u32 %v1589, 7
      %v1591 = vsub.s32 0, %v1590
      %v1592 = vrot.slane %v1587, %v1591
      %v1594 = vadd.f32 %v1586, %v1592
      %v1595 = vld [vmem:[%s16] sm:$0x1]
      %v1596 = vld [vmem:[%s17] sm:$0x1]
      %v1597 = vsel %vm794, %v1594, 0.0
      %1598 = vadd.xlane.f32.xlu0 %v1597
      %v1599 = vpop.xlane.xlu0 %1598
      %v1600 = vmul.f32 %v1599, %v1141
      %v1601 = vsub.f32 %v1594, %v1600
      %v1602 = vmul.f32 %v1601, %v1601
      %v1603 = vsel %vm794, %v1602, 0.0
      %1604 = vadd.xlane.f32.xlu0 %v1603
      %v1605 = vpop.xlane.xlu0 %1604
      %v1606 = vmul.f32 %v1605, %v1141
      %v1607 = vadd.f32 %v1606, 1e-05
      %v1608 = vrsqrt.pop %v1607
      %v1609 = vmul.f32 %v1601, %v1608
      %v1611 = vlaneseq
      %v1612 = vshrl.u32 %v1611, 7
      %v1613 = vsub.s32 0, %v1612
      %v1614 = vrot.slane %v1595, %v1613
      %v1616 = vmul.f32 %v1609, %v1614
      %v1618 = vlaneseq
      %v1619 = vshrl.u32 %v1618, 7
      %v1620 = vsub.s32 0, %v1619
      %v1621 = vrot.slane %v1596, %v1620
      %v1623 = vadd.f32 %v1616, %v1621
      %v1624 = vld [vmem:[%s18] sm:$0xf]
      %v1625 = vld [vmem:[%s18 + $0x4] sm:$0xf]
      %v1626 = vld [vmem:[%s18 + $0x8] sm:$0xf]
      %v1627 = vld [vmem:[%s18 + $0xc] sm:$0xf]
      %v1628 = vpack.c.bf16 %v1623, %v1623
      %v1629 = vld [vmem:[%s19] sm:$0x1]
      %v1631 = vlaneseq
      %v1632 = vshrl.u32 %v1631, 7
      %v1633 = vsub.s32 0, %v1632
      %v1634 = vrot.slane %v1629, %v1633
      %v1640 = vunpack.c.l.b16 %v1624
      %v1641 = vunpack.c.l.b16 %v1625
      %v1642 = vunpack.c.l.b16 %v1626
      %v1643 = vunpack.c.l.b16 %v1627
      %v1644 = vpack.c.b16 %v1641, %v1640
      %v1645 = vpack.c.b16 %v1643, %v1642
      %v1649 = vsel %vm794, %v1628, 0
      %1651 = vmatprep.subr.bf16.mxu0 0
      %1652 = vmatpush1.bf16.msra.mxu0 0
      %1653 = vmatprep.subr.bf16.mxu0 0
      %1654 = vmatpush1.bf16.msra.mxu0 0
      %1655 = vmatprep.subr.bf16.mxu0 0
      %1656 = vmatpush1.bf16.msra.mxu0 0
      %1657 = vmatprep.subr.bf16.mxu0 0
      %1658 = vmatpush1.bf16.msra.mxu0 0
      %1659 = vmatprep.subr.bf16.mxu0 0
      %1660 = vmatpush1.bf16.msra.mxu0 0
      %1661 = vmatprep.subr.bf16.mxu0 0
      %1662 = vmatpush1.bf16.msra.mxu0 0
      %1663 = vmatprep.subr.bf16.mxu0 0
      %1664 = vmatpush1.bf16.msra.mxu0 %v1645
      %1665 = vmatprep.subr.bf16.mxu0 0
      %1666 = vmatpush1.bf16.msra.mxu0 %v1644
      %1667 = vmatprep.subr.bf16.mxu0 0
      %1668 = vmatpush2.bf16.msra.mxu0 0
      %1669 = vmatprep.subr.bf16.mxu0 0
      %1670 = vmatpush2.bf16.msra.mxu0 0
      %1671 = vmatprep.subr.bf16.mxu0 0
      %1672 = vmatpush2.bf16.msra.mxu0 0
      %1673 = vmatprep.subr.bf16.mxu0 0
      %1674 = vmatpush2.bf16.msra.mxu0 0
      %1675 = vmatprep.subr.bf16.mxu0 0
      %1676 = vmatpush2.bf16.msra.mxu0 0
      %1677 = vmatprep.subr.bf16.mxu0 0
      %1678 = vmatpush2.bf16.msra.mxu0 0
      %1679 = vmatprep.subr.bf16.mxu0 0
      %1680 = vmatpush2.bf16.msra.mxu0 0
      %1681 = vmatprep.subr.bf16.mxu0 0
      %1682 = vmatpush2.bf16.msra.mxu0 0
      %1683 = vmatprep.mubr.bf16.mxu0 0
      %1684 = vmatmul.mubr.bf16.gmra.mxu0 %v1649
      %v1685 = vpop.f32.mrf.mxu0
      %v1686 = vadd.f32 %v1634, %v1685
      %v1687 = vpop.f32.mrf.mxu0
      %v1688 = vpop.f32.mrf.mxu0
      %v1689 = vpop.f32.mrf.mxu0
      %1690 = vdwg.mxu0
      %v1691 = vmul.f32 %v1686, %v1686
      %v1692 = vmul.f32 %v1686, %v1691
      %v1693 = vmul.f32 %v1692, 0.044715
      %v1694 = vadd.f32 %v1686, %v1693
      %v1695 = vmul.f32 %v1694, 0.7978846
      %v1696 = vtanh.pop %v1695
      %v1697 = vadd.f32 %v1696, 1.0
      %v1698 = vmul.f32 %v1697, 0.5
      %v1699 = vmul.f32 %v1686, %v1698
      %v1700 = vld [vmem:[%s20] sm:$0xf]
      %v1701 = vld [vmem:[%s20 + $0x4] sm:$0xf]
      %v1702 = vld [vmem:[%s20 + $0x8] sm:$0xf]
      %v1703 = vld [vmem:[%s20 + $0xc] sm:$0xf]
      %v1704 = vld [vmem:[%s20 + $0x10] sm:$0xf]
      %v1705 = vld [vmem:[%s20 + $0x14] sm:$0xf]
      %v1706 = vld [vmem:[%s20 + $0x18] sm:$0xf]
      %v1707 = vld [vmem:[%s20 + $0x1c] sm:$0xf]
      %v1708 = vpack.c.bf16 %v1699, %v1699
      %v1709 = vld [vmem:[%s21] sm:$0x1]
      %v1711 = vlaneseq
      %v1712 = vshrl.u32 %v1711, 7
      %v1713 = vsub.s32 0, %v1712
      %v1714 = vrot.slane %v1709, %v1713
      %v1724 = vunpack.c.l.b16 %v1700
      %v1725 = vunpack.c.l.b16 %v1701
      %v1726 = vunpack.c.l.b16 %v1702
      %v1727 = vunpack.c.l.b16 %v1703
      %v1728 = vunpack.c.l.b16 %v1704
      %v1729 = vunpack.c.l.b16 %v1705
      %v1730 = vunpack.c.l.b16 %v1706
      %v1731 = vunpack.c.l.b16 %v1707
      %v1732 = vpack.c.b16 %v1725, %v1724
      %v1733 = vpack.c.b16 %v1727, %v1726
      %v1734 = vpack.c.b16 %v1729, %v1728
      %v1735 = vpack.c.b16 %v1731, %v1730
      %vm1740 = vcmask 523264
      %v1742 = vsel %vm1740, %v1708, 0
      %1744 = vmatprep.subr.bf16.mxu0 0
      %1745 = vmatpush1.bf16.msra.mxu0 0
      %1746 = vmatprep.subr.bf16.mxu0 0
      %1747 = vmatpush1.bf16.msra.mxu0 0
      %1748 = vmatprep.subr.bf16.mxu0 0
      %1749 = vmatpush1.bf16.msra.mxu0 0
      %1750 = vmatprep.subr.bf16.mxu0 0
      %1751 = vmatpush1.bf16.msra.mxu0 0
      %1752 = vmatprep.subr.bf16.mxu0 0
      %1753 = vmatpush1.bf16.msra.mxu0 %v1735
      %1754 = vmatprep.subr.bf16.mxu0 0
      %1755 = vmatpush1.bf16.msra.mxu0 %v1734
      %1756 = vmatprep.subr.bf16.mxu0 0
      %1757 = vmatpush1.bf16.msra.mxu0 %v1733
      %1758 = vmatprep.subr.bf16.mxu0 0
      %1759 = vmatpush1.bf16.msra.mxu0 %v1732
      %1760 = vmatprep.subr.bf16.mxu0 0
      %1761 = vmatpush2.bf16.msra.mxu0 0
      %1762 = vmatprep.subr.bf16.mxu0 0
      %1763 = vmatpush2.bf16.msra.mxu0 0
      %1764 = vmatprep.subr.bf16.mxu0 0
      %1765 = vmatpush2.bf16.msra.mxu0 0
      %1766 = vmatprep.subr.bf16.mxu0 0
      %1767 = vmatpush2.bf16.msra.mxu0 0
      %1768 = vmatprep.subr.bf16.mxu0 0
      %1769 = vmatpush2.bf16.msra.mxu0 0
      %1770 = vmatprep.subr.bf16.mxu0 0
      %1771 = vmatpush2.bf16.msra.mxu0 0
      %1772 = vmatprep.subr.bf16.mxu0 0
      %1773 = vmatpush2.bf16.msra.mxu0 0
      %1774 = vmatprep.subr.bf16.mxu0 0
      %1775 = vmatpush2.bf16.msra.mxu0 0
      %1776 = vmatprep.mubr.bf16.mxu0 0
      %1777 = vmatmul.mubr.bf16.gmra.mxu0 %v1742
      %v1778 = vpop.f32.mrf.mxu0
      %v1779 = vadd.f32 %v1714, %v1778
      %v1780 = vpop.f32.mrf.mxu0
      %v1781 = vpop.f32.mrf.mxu0
      %v1782 = vpop.f32.mrf.mxu0
      %1783 = vdwg.mxu0
      %v1784 = vadd.f32 %v1623, %v1779
      %v1785 = vld [vmem:[%s22] sm:$0x1]
      %v1786 = vld [vmem:[%s23] sm:$0x1]
      %v1787 = vsel %vm794, %v1784, 0.0
      %1788 = vadd.xlane.f32.xlu0 %v1787
      %v1789 = vpop.xlane.xlu0 %1788
      %v1790 = vmul.f32 %v1789, %v1141
      %v1791 = vsub.f32 %v1784, %v1790
      %v1792 = vmul.f32 %v1791, %v1791
      %v1793 = vsel %vm794, %v1792, 0.0
      %1794 = vadd.xlane.f32.xlu0 %v1793
      %v1795 = vpop.xlane.xlu0 %1794
      %v1796 = vmul.f32 %v1795, %v1141
      %v1797 = vadd.f32 %v1796, 1e-05
      %v1798 = vrsqrt.pop %v1797
      %v1799 = vmul.f32 %v1791, %v1798
      %v1801 = vlaneseq
      %v1802 = vshrl.u32 %v1801, 7
      %v1803 = vsub.s32 0, %v1802
      %v1804 = vrot.slane %v1785, %v1803
      %v1806 = vmul.f32 %v1799, %v1804
      %v1808 = vlaneseq
      %v1809 = vshrl.u32 %v1808, 7
      %v1810 = vsub.s32 0, %v1809
      %v1811 = vrot.slane %v1786, %v1810
      %v1813 = vadd.f32 %v1806, %v1811
      %1814 = vst.msk [vmem:[%s766] sm:$0xff] %vm794, %v1813
      %p1815 = scmp.lt.s32.totalorder %s35, 1
      %s1816 = scalar_select %p1815, %s35, 1
      %s1817 = smul.addr %s1816, 8
      %s1818 = scalar_lea.vmem %s24, %s1817
      // Predicated region
      $region117: #{comment_model_forward.8} parent=115 // pred_check
        %p1819 = pneg %p572
      $region118: #{comment_model_forward.8} parent=115 // pred_check_branch
        %1821 = sbr.rel (%p1819) target = $region120
      $region119: #{comment_model_forward.8} parent=115 // pred_region
        _
      $region120: #{comment_model_forward.8} parent=115 // pred_fallthru
        _
    $region116: #{comment_model_forward.8} parent=5 // pred_fallthru
      _
    %p1822 = scmp.le.s32.totalorder 2, %s30
    // Predicated region
    $region121: #{comment_model_forward.8} parent=5 // pred_check
      %p1823 = pneg %p1822
    $region122: #{comment_model_forward.8} parent=5 // pred_check_branch
      %1825 = sbr.rel (%p1823) target = $region124
    $region123: #{comment_model_forward.8} parent=5 // pred_region
      %s1826 = ssub.s32 %s30, 2
      // Predicated region
      $region125: #{comment_model_forward.8} parent=123 // pred_check
        %p1827 = pneg %p578
      $region126: #{comment_model_forward.8} parent=123 // pred_check_branch
        %1829 = sbr.rel (%p1827) target = $region128
      $region127: #{comment_model_forward.8} parent=123 // pred_region
        %p1830 = scmp.lt.s32.totalorder %s36, 1
        %s1831 = scalar_select %p1830, %s36, 1
        %s1832 = smul.addr %s1831, 8
        %s1833 = scalar_lea.vmem %s24, %s1832
      $region128: #{comment_model_forward.8} parent=123 // pred_fallthru
        _
    $region124: #{comment_model_forward.8} parent=5 // pred_fallthru
      _
  $region6: #{comment_model_forward.8} parent=0 // loop_footer
    %s34 = sadd.s32 1, %s30
  $region7: #{comment_model_forward.8} parent=0 // loop_footer_branch
    %29 = sbr.rel target = $region3
  $region8: #{comment_model_forward.8} parent=0 // loop_exit
    _

</llo_original>
